<compile_context>
chip_gen: v7x
topology: tpu7x:2x2x1
jax: 0.10.0
libtpu: 0.0.40
codegen_flags: <defaults>
</compile_context>

<pallas_src>
import functools

import jax
import jax.numpy as jnp
from jax import lax
from jax.experimental import pallas as pl
from jax.experimental.pallas import tpu as pltpu


_VMEM = pl.BlockSpec(memory_space=pltpu.MemorySpace.VMEM)


def _vmem_limit_bytes():
    """Generation-aware scoped-VMEM limit (~75% of capacity), safe fallback."""
    try:
        cap = pltpu.get_tpu_info().vmem_capacity_bytes
        return int(cap * 0.75)
    except Exception:
        return 48 * 1024 * 1024  # conservative (fits v7x's 64 MiB VMEM)


# ----------------------------------------------------------------------------
# Single fused kernel: embed -> L x (masked MHA + LN1 + FFN + LN2) -> final LN
#                      -> per-graph mean pool -> regressor head
# ----------------------------------------------------------------------------
def _fused_forward_kernel(
    x_ref, bidx_col_ref, bidx_row_ref,                 # (N,in), (N,1), (1,N)
    embed_w_ref,                                       # (in, d)
    wqkv_ref, bqkv_ref, wo_ref, bo_ref,                # (L,d,3d),(L,1,3d),(L,d,d),(L,1,d)
    ln1g_ref, ln1b_ref,                                # (L,1,d)
    w1_ref, b1_ref, w2_ref, b2_ref,                    # (L,d,dff),(L,1,dff),(L,dff,d),(L,1,d)
    ln2g_ref, ln2b_ref,                                # (L,1,d)
    flng_ref, flnb_ref,                                # (1,d)
    rw1_ref, rb1_ref, rw2_ref, rb2_ref,                # regressor head
    o_ref,                                             # (B, out_dim)
    *, num_layers, num_heads, num_graphs, eps,
):
    n = x_ref.shape[0]
    d = embed_w_ref.shape[1]
    dh = d // num_heads
    scale = 1.0 / float(dh) ** 0.5

    def layer_norm(h, g, b):
        mu = jnp.mean(h, axis=-1, keepdims=True)
        var = jnp.mean((h - mu) * (h - mu), axis=-1, keepdims=True)
        return (h - mu) * lax.rsqrt(var + eps) * g + b

    # ---- 1. node embedding: Linear(in_size -> d_model, bias=False) ----------
    h = jnp.dot(x_ref[...], embed_w_ref[...], preferred_element_type=jnp.float32)

    # ---- per-graph (block-diagonal) attention mask, hoisted out of the loop -
    same = bidx_col_ref[...] == bidx_row_ref[...]            # (N, N) bool

    # ---- 2. encoder layers (Python-unrolled, weights stay VMEM-resident) ----
    for l in range(num_layers):
        # fused lane-dense QKV projection: one (N,d) x (d,3d) matmul
        qkv = (jnp.dot(h, wqkv_ref[l], preferred_element_type=jnp.float32)
               + bqkv_ref[l])                                # (N, 3d)
        q = qkv[:, :d]
        k = qkv[:, d:2 * d]
        v = qkv[:, 2 * d:]
        # head split: (N, d) -> (H, N, dh)
        q_h = jnp.transpose(q.reshape(n, num_heads, dh), (1, 0, 2))
        k_h = jnp.transpose(k.reshape(n, num_heads, dh), (1, 0, 2))
        v_h = jnp.transpose(v.reshape(n, num_heads, dh), (1, 0, 2))

        # scores + per-graph mask as a direct select (no additive-bias temp)
        s = jnp.einsum("hqe,hke->hqk", q_h, k_h,
                       preferred_element_type=jnp.float32) * scale   # (H,N,N)
        s = jnp.where(same[None], s, jnp.float32(-1e30))

        # softmax (fp32, exact division)
        s = s - jnp.max(s, axis=-1, keepdims=True)
        p = jnp.exp(s)
        p = p / jnp.sum(p, axis=-1, keepdims=True)

        ctx = jnp.einsum("hqk,hke->hqe", p, v_h,
                         preferred_element_type=jnp.float32)          # (H,N,dh)
        # concat heads -> one full-depth (d) output projection
        ctx = jnp.transpose(ctx, (1, 0, 2)).reshape(n, d)             # (N, d)
        attn = (jnp.dot(ctx, wo_ref[l], preferred_element_type=jnp.float32)
                + bo_ref[l])

        # residual + LN1, FFN, residual + LN2
        y = layer_norm(h + attn, ln1g_ref[l], ln1b_ref[l])
        ff = jnp.maximum(
            jnp.dot(y, w1_ref[l], preferred_element_type=jnp.float32)
            + b1_ref[l], 0.0)
        ff = jnp.dot(ff, w2_ref[l], preferred_element_type=jnp.float32) + b2_ref[l]
        h = layer_norm(y + ff, ln2g_ref[l], ln2b_ref[l])

    # ---- 3. final encoder LayerNorm ------------------------------------------
    hn = layer_norm(h, flng_ref[...], flnb_ref[...])

    # ---- 4. per-graph mean pooling via in-kernel one-hot matmul --------------
    gid = lax.broadcasted_iota(jnp.int32, (num_graphs, n), 0)         # (B, N)
    onehot = (gid == bidx_row_ref[...]).astype(jnp.float32)           # (B, N)
    counts = jnp.maximum(jnp.sum(onehot, axis=-1, keepdims=True), 1.0)
    pooled = jnp.dot(onehot, hn, preferred_element_type=jnp.float32) / counts

    # ---- 5. regressor head: Linear -> ReLU -> Linear -------------------------
    r = jnp.maximum(
        jnp.dot(pooled, rw1_ref[...], preferred_element_type=jnp.float32)
        + rb1_ref[...], 0.0)
    pred = jnp.dot(r, rw2_ref[...], preferred_element_type=jnp.float32) + rb2_ref[...]
    o_ref[...] = pred.astype(o_ref.dtype)


# ----------------------------------------------------------------------------
# Parameter construction (mirrors module __init__ shapes)
# ----------------------------------------------------------------------------
def init_params(key, in_size, d_model, num_heads, dim_ff, num_layers, out_dim):
    def w(k, shape, scale=0.02):
        return scale * jax.random.normal(k, shape, dtype=jnp.float32)

    keys = iter(jax.random.split(key, 8 + num_layers * 8))
    p = {
        "embed_w": w(next(keys), (in_size, d_model)),   # Linear(in_size, d_model, bias=False)
        "layers": [],
        "final_ln_g": jnp.ones((d_model,), jnp.float32),
        "final_ln_b": jnp.zeros((d_model,), jnp.float32),
        "reg_w1": w(next(keys), (d_model, d_model // 2)),
        "reg_b1": jnp.zeros((d_model // 2,), jnp.float32),
        "reg_w2": w(next(keys), (d_model // 2, out_dim)),
        "reg_b2": jnp.zeros((out_dim,), jnp.float32),
    }
    for _ in range(num_layers):
        p["layers"].append({
            "wq": w(next(keys), (d_model, d_model)),
            "wk": w(next(keys), (d_model, d_model)),
            "wv": w(next(keys), (d_model, d_model)),
            "wo": w(next(keys), (d_model, d_model)),
            "bq": jnp.zeros((d_model,), jnp.float32),
            "bk": jnp.zeros((d_model,), jnp.float32),
            "bv": jnp.zeros((d_model,), jnp.float32),
            "bo": jnp.zeros((d_model,), jnp.float32),
            "ln1_g": jnp.ones((d_model,), jnp.float32),
            "ln1_b": jnp.zeros((d_model,), jnp.float32),
            "ffn_w1": w(next(keys), (d_model, dim_ff)),
            "ffn_b1": jnp.zeros((dim_ff,), jnp.float32),
            "ffn_w2": w(next(keys), (dim_ff, d_model)),
            "ffn_b2": jnp.zeros((d_model,), jnp.float32),
            "ln2_g": jnp.ones((d_model,), jnp.float32),
            "ln2_b": jnp.zeros((d_model,), jnp.float32),
        })
    return p


def prepare_params(params):
    """One-time host-side re-layout into the fused kernel layout.

    Hoisted out of the forward path per review feedback: QKV weights are
    concatenated to (d, 3d), biases reshaped to (1, f), and all per-layer
    tensors stacked along a leading layer axis so a single pallas_call can
    index them per layer while keeping everything VMEM-resident.
    """
    layers = params["layers"]

    def stack(fn):
        return jnp.stack([fn(lp) for lp in layers], axis=0)

    return {
        "embed_w": params["embed_w"],
        "wqkv": stack(lambda lp: jnp.concatenate([lp["wq"], lp["wk"], lp["wv"]], axis=1)),
        "bqkv": stack(lambda lp: jnp.concatenate(
            [lp["bq"], lp["bk"], lp["bv"]]).reshape(1, -1)),
        "wo": stack(lambda lp: lp["wo"]),
        "bo": stack(lambda lp: lp["bo"].reshape(1, -1)),
        "ln1_g": stack(lambda lp: lp["ln1_g"].reshape(1, -1)),
        "ln1_b": stack(lambda lp: lp["ln1_b"].reshape(1, -1)),
        "ffn_w1": stack(lambda lp: lp["ffn_w1"]),
        "ffn_b1": stack(lambda lp: lp["ffn_b1"].reshape(1, -1)),
        "ffn_w2": stack(lambda lp: lp["ffn_w2"]),
        "ffn_b2": stack(lambda lp: lp["ffn_b2"].reshape(1, -1)),
        "ln2_g": stack(lambda lp: lp["ln2_g"].reshape(1, -1)),
        "ln2_b": stack(lambda lp: lp["ln2_b"].reshape(1, -1)),
        "final_ln_g": params["final_ln_g"].reshape(1, -1),
        "final_ln_b": params["final_ln_b"].reshape(1, -1),
        "reg_w1": params["reg_w1"],
        "reg_b1": params["reg_b1"].reshape(1, -1),
        "reg_w2": params["reg_w2"],
        "reg_b2": params["reg_b2"].reshape(1, -1),
    }


# ----------------------------------------------------------------------------
# Full forward pass — a single pallas_call
# ----------------------------------------------------------------------------
def graph_transformer_regression_forward(fused_params, x, batch_idx, *,
                                         num_graphs, num_heads, num_layers,
                                         eps=1e-5):
    fp = fused_params
    bidx_col = batch_idx.reshape(-1, 1).astype(jnp.int32)   # (N, 1)
    bidx_row = batch_idx.reshape(1, -1).astype(jnp.int32)   # (1, N)
    out_dim = fp["reg_w2"].shape[1]

    args = (
        x, bidx_col, bidx_row,
        fp["embed_w"],
        fp["wqkv"], fp["bqkv"], fp["wo"], fp["bo"],
        fp["ln1_g"], fp["ln1_b"],
        fp["ffn_w1"], fp["ffn_b1"], fp["ffn_w2"], fp["ffn_b2"],
        fp["ln2_g"], fp["ln2_b"],
        fp["final_ln_g"], fp["final_ln_b"],
        fp["reg_w1"], fp["reg_b1"], fp["reg_w2"], fp["reg_b2"],
    )

    pred = pl.pallas_call(
        functools.partial(_fused_forward_kernel, num_layers=num_layers,
                          num_heads=num_heads, num_graphs=num_graphs, eps=eps),
        out_shape=jax.ShapeDtypeStruct((num_graphs, out_dim), jnp.float32),
        in_specs=[_VMEM] * len(args),
        out_specs=_VMEM,
        compiler_params=pltpu.CompilerParams(
            vmem_limit_bytes=_vmem_limit_bytes()),
    )(*args)

    if pred.shape[-1] == 1:
        pred = pred[:, 0]                                    # squeeze(-1)
    return pred


# ----------------------------------------------------------------------------
if __name__ == "__main__":
    # small, module-consistent shapes
    in_size = 12
    d_model = 32
    num_heads = 4
    dim_ff = 64
    num_layers = 2
    out_dim = 1

    num_graphs = 2
    nodes_per_graph = 8
    n_nodes = num_graphs * nodes_per_graph

    key = jax.random.PRNGKey(0)
    k_x, k_p = jax.random.split(key)

    x = jax.random.normal(k_x, (n_nodes, in_size), dtype=jnp.float32)          # data.x
    batch_idx = jnp.repeat(jnp.arange(num_graphs, dtype=jnp.int32),
                           nodes_per_graph)                                    # data.batch

    params = init_params(k_p, in_size, d_model, num_heads, dim_ff,
                         num_layers, out_dim)
    fused_params = prepare_params(params)   # one-time weight re-layout (hoisted)

    fwd = jax.jit(functools.partial(
        graph_transformer_regression_forward,
        num_graphs=num_graphs, num_heads=num_heads, num_layers=num_layers))

    pred = jax.block_until_ready(fwd(fused_params, x, batch_idx))

    assert pred.shape == (num_graphs,), pred.shape
    assert bool(jnp.all(jnp.isfinite(pred)))
    print("KERNEL_OK")
</pallas_src>

<mosaic_0001>
module attributes {stable_mosaic.version = 11 : i64} {
  func.func @_fused_forward_kernel(%arg0: memref<16x12xf32, #tpu.memory_space<vmem>>, %arg1: memref<16x1xi32, #tpu.memory_space<vmem>>, %arg2: memref<1x16xi32, #tpu.memory_space<vmem>>, %arg3: memref<12x32xf32, #tpu.memory_space<vmem>>, %arg4: memref<2x32x96xf32, #tpu.memory_space<vmem>>, %arg5: memref<2x1x96xf32, #tpu.memory_space<vmem>>, %arg6: memref<2x32x32xf32, #tpu.memory_space<vmem>>, %arg7: memref<2x1x32xf32, #tpu.memory_space<vmem>>, %arg8: memref<2x1x32xf32, #tpu.memory_space<vmem>>, %arg9: memref<2x1x32xf32, #tpu.memory_space<vmem>>, %arg10: memref<2x32x64xf32, #tpu.memory_space<vmem>>, %arg11: memref<2x1x64xf32, #tpu.memory_space<vmem>>, %arg12: memref<2x64x32xf32, #tpu.memory_space<vmem>>, %arg13: memref<2x1x32xf32, #tpu.memory_space<vmem>>, %arg14: memref<2x1x32xf32, #tpu.memory_space<vmem>>, %arg15: memref<2x1x32xf32, #tpu.memory_space<vmem>>, %arg16: memref<1x32xf32, #tpu.memory_space<vmem>>, %arg17: memref<1x32xf32, #tpu.memory_space<vmem>>, %arg18: memref<32x16xf32, #tpu.memory_space<vmem>>, %arg19: memref<1x16xf32, #tpu.memory_space<vmem>>, %arg20: memref<16x1xf32, #tpu.memory_space<vmem>>, %arg21: memref<1x1xf32, #tpu.memory_space<vmem>>, %arg22: memref<2x1xf32, #tpu.memory_space<vmem>>) attributes {dimension_semantics = [], scalar_prefetch = 0 : i64, scratch_operands = 0 : i64, tpu.core_type = #tpu.core_type<tc>} {
    %c0 = arith.constant 0 : index
    %c0_0 = arith.constant 0 : index
    %0 = vector.load %arg0[%c0, %c0_0] : memref<16x12xf32, #tpu.memory_space<vmem>>, vector<16x12xf32>
    %c0_1 = arith.constant 0 : index
    %c0_2 = arith.constant 0 : index
    %1 = vector.load %arg3[%c0_1, %c0_2] : memref<12x32xf32, #tpu.memory_space<vmem>>, vector<12x32xf32>
    %cst = arith.constant dense<0.000000e+00> : vector<16x32xf32>
    %2 = tpu.matmul %0, %1, %cst {dimension_numbers = #tpu.dot_dimension_numbers<[1], [0], [0], [1], [0, 0, 1, 1], [], []>} : vector<16x12xf32>, vector<12x32xf32>, vector<16x32xf32> -> vector<16x32xf32>
    %c0_3 = arith.constant 0 : index
    %c0_4 = arith.constant 0 : index
    %3 = vector.load %arg1[%c0_3, %c0_4] : memref<16x1xi32, #tpu.memory_space<vmem>>, vector<16x1xi32>
    %c0_5 = arith.constant 0 : index
    %c0_6 = arith.constant 0 : index
    %4 = vector.load %arg2[%c0_5, %c0_6] : memref<1x16xi32, #tpu.memory_space<vmem>>, vector<1x16xi32>
    %5 = vector.broadcast %3 : vector<16x1xi32> to vector<16x16xi32>
    %6 = vector.broadcast %4 : vector<1x16xi32> to vector<16x16xi32>
    %7 = arith.cmpi eq, %5, %6 : vector<16x16xi32>
    %c0_7 = arith.constant 0 : index
    %c0_8 = arith.constant 0 : index
    %c0_9 = arith.constant 0 : index
    %8 = vector.load %arg4[%c0_7, %c0_8, %c0_9] : memref<2x32x96xf32, #tpu.memory_space<vmem>>, vector<1x32x96xf32>
    %9 = vector.shape_cast %8 : vector<1x32x96xf32> to vector<32x96xf32>
    %cst_10 = arith.constant dense<0.000000e+00> : vector<16x96xf32>
    %10 = tpu.matmul %2, %9, %cst_10 {dimension_numbers = #tpu.dot_dimension_numbers<[1], [0], [0], [1], [0, 0, 1, 1], [], []>} : vector<16x32xf32>, vector<32x96xf32>, vector<16x96xf32> -> vector<16x96xf32>
    %c0_11 = arith.constant 0 : index
    %c0_12 = arith.constant 0 : index
    %c0_13 = arith.constant 0 : index
    %11 = vector.load %arg5[%c0_11, %c0_12, %c0_13] : memref<2x1x96xf32, #tpu.memory_space<vmem>>, vector<1x1x96xf32>
    %12 = vector.shape_cast %11 : vector<1x1x96xf32> to vector<1x96xf32>
    %13 = vector.broadcast %12 : vector<1x96xf32> to vector<16x96xf32>
    %14 = arith.addf %10, %13 : vector<16x96xf32>
    %15 = vector.extract_strided_slice %14 {offsets = [0, 0], sizes = [16, 32], strides = [1, 1]} : vector<16x96xf32> to vector<16x32xf32>
    %16 = vector.extract_strided_slice %14 {offsets = [0, 32], sizes = [16, 32], strides = [1, 1]} : vector<16x96xf32> to vector<16x32xf32>
    %17 = vector.extract_strided_slice %14 {offsets = [0, 64], sizes = [16, 32], strides = [1, 1]} : vector<16x96xf32> to vector<16x32xf32>
    %18 = vector.shape_cast %15 : vector<16x32xf32> to vector<16x4x8xf32>
    %19 = tpu.transpose %18, [1, 0, 2] : vector<16x4x8xf32> -> vector<4x16x8xf32>
    %20 = vector.shape_cast %16 : vector<16x32xf32> to vector<16x4x8xf32>
    %21 = tpu.transpose %20, [1, 0, 2] : vector<16x4x8xf32> -> vector<4x16x8xf32>
    %22 = vector.shape_cast %17 : vector<16x32xf32> to vector<16x4x8xf32>
    %23 = tpu.transpose %22, [1, 0, 2] : vector<16x4x8xf32> -> vector<4x16x8xf32>
    "tpu.trace_start"() <{level = 10 : i32, message = "hqe,hke->hqk"}> : () -> ()
    %cst_14 = arith.constant dense<0.000000e+00> : vector<4x16x16xf32>
    %24 = tpu.matmul %19, %21, %cst_14 {dimension_numbers = #tpu.dot_dimension_numbers<[2], [2], [1], [1], [0, 0, 0, 1, 1, 1], [0], [0]>} : vector<4x16x8xf32>, vector<4x16x8xf32>, vector<4x16x16xf32> -> vector<4x16x16xf32>
    "tpu.trace_stop"() : () -> ()
    %cst_15 = arith.constant 0.353553385 : f32
    %25 = vector.broadcast %cst_15 : f32 to vector<4x16x16xf32>
    %26 = arith.mulf %24, %25 : vector<4x16x16xf32>
    %27 = vector.shape_cast %7 : vector<16x16xi1> to vector<1x16x16xi1>
    %cst_16 = arith.constant -1.000000e+30 : f32
    %28 = vector.shape_cast %27 : vector<1x16x16xi1> to vector<1x16x16xi1>
    %29 = vector.broadcast %28 : vector<1x16x16xi1> to vector<4x16x16xi1>
    %30 = vector.broadcast %cst_16 : f32 to vector<4x16x16xf32>
    %31 = arith.select %29, %26, %30 : vector<4x16x16xi1>, vector<4x16x16xf32>
    %cst_17 = arith.constant dense<0xFF800000> : vector<4x16xf32>
    %32 = vector.multi_reduction <maximumf>, %31, %cst_17 [2] : vector<4x16x16xf32> to vector<4x16xf32>
    %33 = vector.shape_cast %32 : vector<4x16xf32> to vector<4x16x1xf32>
    %34 = vector.broadcast %33 : vector<4x16x1xf32> to vector<4x16x16xf32>
    %35 = arith.subf %31, %34 : vector<4x16x16xf32>
    %36 = math.exp %35 : vector<4x16x16xf32>
    %cst_18 = arith.constant dense<0.000000e+00> : vector<4x16xf32>
    %37 = vector.multi_reduction <add>, %36, %cst_18 [2] : vector<4x16x16xf32> to vector<4x16xf32>
    %38 = vector.shape_cast %37 : vector<4x16xf32> to vector<4x16x1xf32>
    %39 = vector.broadcast %38 : vector<4x16x1xf32> to vector<4x16x16xf32>
    %40 = arith.divf %36, %39 : vector<4x16x16xf32>
    "tpu.trace_start"() <{level = 10 : i32, message = "hqk,hke->hqe"}> : () -> ()
    %cst_19 = arith.constant dense<0.000000e+00> : vector<4x16x8xf32>
    %41 = tpu.matmul %40, %23, %cst_19 {dimension_numbers = #tpu.dot_dimension_numbers<[2], [1], [1], [2], [0, 0, 0, 1, 1, 2], [0], [0]>} : vector<4x16x16xf32>, vector<4x16x8xf32>, vector<4x16x8xf32> -> vector<4x16x8xf32>
    "tpu.trace_stop"() : () -> ()
    %42 = tpu.transpose %41, [1, 0, 2] : vector<4x16x8xf32> -> vector<16x4x8xf32>
    %43 = vector.shape_cast %42 : vector<16x4x8xf32> to vector<16x32xf32>
    %c0_20 = arith.constant 0 : index
    %c0_21 = arith.constant 0 : index
    %c0_22 = arith.constant 0 : index
    %44 = vector.load %arg6[%c0_20, %c0_21, %c0_22] : memref<2x32x32xf32, #tpu.memory_space<vmem>>, vector<1x32x32xf32>
    %45 = vector.shape_cast %44 : vector<1x32x32xf32> to vector<32x32xf32>
    %cst_23 = arith.constant dense<0.000000e+00> : vector<16x32xf32>
    %46 = tpu.matmul %43, %45, %cst_23 {dimension_numbers = #tpu.dot_dimension_numbers<[1], [0], [0], [1], [0, 0, 1, 1], [], []>} : vector<16x32xf32>, vector<32x32xf32>, vector<16x32xf32> -> vector<16x32xf32>
    %c0_24 = arith.constant 0 : index
    %c0_25 = arith.constant 0 : index
    %c0_26 = arith.constant 0 : index
    %47 = vector.load %arg7[%c0_24, %c0_25, %c0_26] : memref<2x1x32xf32, #tpu.memory_space<vmem>>, vector<1x1x32xf32>
    %48 = vector.shape_cast %47 : vector<1x1x32xf32> to vector<1x32xf32>
    %49 = vector.broadcast %48 : vector<1x32xf32> to vector<16x32xf32>
    %50 = arith.addf %46, %49 : vector<16x32xf32>
    %51 = arith.addf %2, %50 : vector<16x32xf32>
    %c0_27 = arith.constant 0 : index
    %c0_28 = arith.constant 0 : index
    %c0_29 = arith.constant 0 : index
    %52 = vector.load %arg8[%c0_27, %c0_28, %c0_29] : memref<2x1x32xf32, #tpu.memory_space<vmem>>, vector<1x1x32xf32>
    %53 = vector.shape_cast %52 : vector<1x1x32xf32> to vector<1x32xf32>
    %c0_30 = arith.constant 0 : index
    %c0_31 = arith.constant 0 : index
    %c0_32 = arith.constant 0 : index
    %54 = vector.load %arg9[%c0_30, %c0_31, %c0_32] : memref<2x1x32xf32, #tpu.memory_space<vmem>>, vector<1x1x32xf32>
    %55 = vector.shape_cast %54 : vector<1x1x32xf32> to vector<1x32xf32>
    %cst_33 = arith.constant dense<0.000000e+00> : vector<16xf32>
    %56 = vector.multi_reduction <add>, %51, %cst_33 [1] : vector<16x32xf32> to vector<16xf32>
    %57 = vector.shape_cast %56 : vector<16xf32> to vector<16x1xf32>
    %cst_34 = arith.constant 3.200000e+01 : f32
    %58 = vector.broadcast %cst_34 : f32 to vector<16x1xf32>
    %59 = arith.divf %57, %58 : vector<16x1xf32>
    %60 = vector.broadcast %59 : vector<16x1xf32> to vector<16x32xf32>
    %61 = arith.subf %51, %60 : vector<16x32xf32>
    %62 = vector.broadcast %59 : vector<16x1xf32> to vector<16x32xf32>
    %63 = arith.subf %51, %62 : vector<16x32xf32>
    %64 = arith.mulf %61, %63 : vector<16x32xf32>
    %cst_35 = arith.constant dense<0.000000e+00> : vector<16xf32>
    %65 = vector.multi_reduction <add>, %64, %cst_35 [1] : vector<16x32xf32> to vector<16xf32>
    %66 = vector.shape_cast %65 : vector<16xf32> to vector<16x1xf32>
    %cst_36 = arith.constant 3.200000e+01 : f32
    %67 = vector.broadcast %cst_36 : f32 to vector<16x1xf32>
    %68 = arith.divf %66, %67 : vector<16x1xf32>
    %69 = vector.broadcast %59 : vector<16x1xf32> to vector<16x32xf32>
    %70 = arith.subf %51, %69 : vector<16x32xf32>
    %cst_37 = arith.constant 9.99999974E-6 : f32
    %71 = vector.broadcast %cst_37 : f32 to vector<16x1xf32>
    %72 = arith.addf %68, %71 : vector<16x1xf32>
    %73 = math.rsqrt %72 : vector<16x1xf32>
    %74 = vector.broadcast %73 : vector<16x1xf32> to vector<16x32xf32>
    %75 = arith.mulf %70, %74 : vector<16x32xf32>
    %76 = vector.broadcast %53 : vector<1x32xf32> to vector<16x32xf32>
    %77 = arith.mulf %75, %76 : vector<16x32xf32>
    %78 = vector.broadcast %55 : vector<1x32xf32> to vector<16x32xf32>
    %79 = arith.addf %77, %78 : vector<16x32xf32>
    %c0_38 = arith.constant 0 : index
    %c0_39 = arith.constant 0 : index
    %c0_40 = arith.constant 0 : index
    %80 = vector.load %arg10[%c0_38, %c0_39, %c0_40] : memref<2x32x64xf32, #tpu.memory_space<vmem>>, vector<1x32x64xf32>
    %81 = vector.shape_cast %80 : vector<1x32x64xf32> to vector<32x64xf32>
    %cst_41 = arith.constant dense<0.000000e+00> : vector<16x64xf32>
    %82 = tpu.matmul %79, %81, %cst_41 {dimension_numbers = #tpu.dot_dimension_numbers<[1], [0], [0], [1], [0, 0, 1, 1], [], []>} : vector<16x32xf32>, vector<32x64xf32>, vector<16x64xf32> -> vector<16x64xf32>
    %c0_42 = arith.constant 0 : index
    %c0_43 = arith.constant 0 : index
    %c0_44 = arith.constant 0 : index
    %83 = vector.load %arg11[%c0_42, %c0_43, %c0_44] : memref<2x1x64xf32, #tpu.memory_space<vmem>>, vector<1x1x64xf32>
    %84 = vector.shape_cast %83 : vector<1x1x64xf32> to vector<1x64xf32>
    %85 = vector.broadcast %84 : vector<1x64xf32> to vector<16x64xf32>
    %86 = arith.addf %82, %85 : vector<16x64xf32>
    %cst_45 = arith.constant 0.000000e+00 : f32
    %87 = vector.broadcast %cst_45 : f32 to vector<16x64xf32>
    %88 = arith.maximumf %86, %87 : vector<16x64xf32>
    %c0_46 = arith.constant 0 : index
    %c0_47 = arith.constant 0 : index
    %c0_48 = arith.constant 0 : index
    %89 = vector.load %arg12[%c0_46, %c0_47, %c0_48] : memref<2x64x32xf32, #tpu.memory_space<vmem>>, vector<1x64x32xf32>
    %90 = vector.shape_cast %89 : vector<1x64x32xf32> to vector<64x32xf32>
    %cst_49 = arith.constant dense<0.000000e+00> : vector<16x32xf32>
    %91 = tpu.matmul %88, %90, %cst_49 {dimension_numbers = #tpu.dot_dimension_numbers<[1], [0], [0], [1], [0, 0, 1, 1], [], []>} : vector<16x64xf32>, vector<64x32xf32>, vector<16x32xf32> -> vector<16x32xf32>
    %c0_50 = arith.constant 0 : index
    %c0_51 = arith.constant 0 : index
    %c0_52 = arith.constant 0 : index
    %92 = vector.load %arg13[%c0_50, %c0_51, %c0_52] : memref<2x1x32xf32, #tpu.memory_space<vmem>>, vector<1x1x32xf32>
    %93 = vector.shape_cast %92 : vector<1x1x32xf32> to vector<1x32xf32>
    %94 = vector.broadcast %93 : vector<1x32xf32> to vector<16x32xf32>
    %95 = arith.addf %91, %94 : vector<16x32xf32>
    %96 = arith.addf %79, %95 : vector<16x32xf32>
    %c0_53 = arith.constant 0 : index
    %c0_54 = arith.constant 0 : index
    %c0_55 = arith.constant 0 : index
    %97 = vector.load %arg14[%c0_53, %c0_54, %c0_55] : memref<2x1x32xf32, #tpu.memory_space<vmem>>, vector<1x1x32xf32>
    %98 = vector.shape_cast %97 : vector<1x1x32xf32> to vector<1x32xf32>
    %c0_56 = arith.constant 0 : index
    %c0_57 = arith.constant 0 : index
    %c0_58 = arith.constant 0 : index
    %99 = vector.load %arg15[%c0_56, %c0_57, %c0_58] : memref<2x1x32xf32, #tpu.memory_space<vmem>>, vector<1x1x32xf32>
    %100 = vector.shape_cast %99 : vector<1x1x32xf32> to vector<1x32xf32>
    %cst_59 = arith.constant dense<0.000000e+00> : vector<16xf32>
    %101 = vector.multi_reduction <add>, %96, %cst_59 [1] : vector<16x32xf32> to vector<16xf32>
    %102 = vector.shape_cast %101 : vector<16xf32> to vector<16x1xf32>
    %cst_60 = arith.constant 3.200000e+01 : f32
    %103 = vector.broadcast %cst_60 : f32 to vector<16x1xf32>
    %104 = arith.divf %102, %103 : vector<16x1xf32>
    %105 = vector.broadcast %104 : vector<16x1xf32> to vector<16x32xf32>
    %106 = arith.subf %96, %105 : vector<16x32xf32>
    %107 = vector.broadcast %104 : vector<16x1xf32> to vector<16x32xf32>
    %108 = arith.subf %96, %107 : vector<16x32xf32>
    %109 = arith.mulf %106, %108 : vector<16x32xf32>
    %cst_61 = arith.constant dense<0.000000e+00> : vector<16xf32>
    %110 = vector.multi_reduction <add>, %109, %cst_61 [1] : vector<16x32xf32> to vector<16xf32>
    %111 = vector.shape_cast %110 : vector<16xf32> to vector<16x1xf32>
    %cst_62 = arith.constant 3.200000e+01 : f32
    %112 = vector.broadcast %cst_62 : f32 to vector<16x1xf32>
    %113 = arith.divf %111, %112 : vector<16x1xf32>
    %114 = vector.broadcast %104 : vector<16x1xf32> to vector<16x32xf32>
    %115 = arith.subf %96, %114 : vector<16x32xf32>
    %cst_63 = arith.constant 9.99999974E-6 : f32
    %116 = vector.broadcast %cst_63 : f32 to vector<16x1xf32>
    %117 = arith.addf %113, %116 : vector<16x1xf32>
    %118 = math.rsqrt %117 : vector<16x1xf32>
    %119 = vector.broadcast %118 : vector<16x1xf32> to vector<16x32xf32>
    %120 = arith.mulf %115, %119 : vector<16x32xf32>
    %121 = vector.broadcast %98 : vector<1x32xf32> to vector<16x32xf32>
    %122 = arith.mulf %120, %121 : vector<16x32xf32>
    %123 = vector.broadcast %100 : vector<1x32xf32> to vector<16x32xf32>
    %124 = arith.addf %122, %123 : vector<16x32xf32>
    %c1 = arith.constant 1 : index
    %c0_64 = arith.constant 0 : index
    %c0_65 = arith.constant 0 : index
    %125 = vector.load %arg4[%c1, %c0_64, %c0_65] : memref<2x32x96xf32, #tpu.memory_space<vmem>>, vector<1x32x96xf32>
    %126 = vector.shape_cast %125 : vector<1x32x96xf32> to vector<32x96xf32>
    %cst_66 = arith.constant dense<0.000000e+00> : vector<16x96xf32>
    %127 = tpu.matmul %124, %126, %cst_66 {dimension_numbers = #tpu.dot_dimension_numbers<[1], [0], [0], [1], [0, 0, 1, 1], [], []>} : vector<16x32xf32>, vector<32x96xf32>, vector<16x96xf32> -> vector<16x96xf32>
    %c1_67 = arith.constant 1 : index
    %c0_68 = arith.constant 0 : index
    %c0_69 = arith.constant 0 : index
    %128 = vector.load %arg5[%c1_67, %c0_68, %c0_69] : memref<2x1x96xf32, #tpu.memory_space<vmem>>, vector<1x1x96xf32>
    %129 = vector.shape_cast %128 : vector<1x1x96xf32> to vector<1x96xf32>
    %130 = vector.broadcast %129 : vector<1x96xf32> to vector<16x96xf32>
    %131 = arith.addf %127, %130 : vector<16x96xf32>
    %132 = vector.extract_strided_slice %131 {offsets = [0, 0], sizes = [16, 32], strides = [1, 1]} : vector<16x96xf32> to vector<16x32xf32>
    %133 = vector.extract_strided_slice %131 {offsets = [0, 32], sizes = [16, 32], strides = [1, 1]} : vector<16x96xf32> to vector<16x32xf32>
    %134 = vector.extract_strided_slice %131 {offsets = [0, 64], sizes = [16, 32], strides = [1, 1]} : vector<16x96xf32> to vector<16x32xf32>
    %135 = vector.shape_cast %132 : vector<16x32xf32> to vector<16x4x8xf32>
    %136 = tpu.transpose %135, [1, 0, 2] : vector<16x4x8xf32> -> vector<4x16x8xf32>
    %137 = vector.shape_cast %133 : vector<16x32xf32> to vector<16x4x8xf32>
    %138 = tpu.transpose %137, [1, 0, 2] : vector<16x4x8xf32> -> vector<4x16x8xf32>
    %139 = vector.shape_cast %134 : vector<16x32xf32> to vector<16x4x8xf32>
    %140 = tpu.transpose %139, [1, 0, 2] : vector<16x4x8xf32> -> vector<4x16x8xf32>
    "tpu.trace_start"() <{level = 10 : i32, message = "hqe,hke->hqk"}> : () -> ()
    %cst_70 = arith.constant dense<0.000000e+00> : vector<4x16x16xf32>
    %141 = tpu.matmul %136, %138, %cst_70 {dimension_numbers = #tpu.dot_dimension_numbers<[2], [2], [1], [1], [0, 0, 0, 1, 1, 1], [0], [0]>} : vector<4x16x8xf32>, vector<4x16x8xf32>, vector<4x16x16xf32> -> vector<4x16x16xf32>
    "tpu.trace_stop"() : () -> ()
    %cst_71 = arith.constant 0.353553385 : f32
    %142 = vector.broadcast %cst_71 : f32 to vector<4x16x16xf32>
    %143 = arith.mulf %141, %142 : vector<4x16x16xf32>
    %144 = vector.shape_cast %7 : vector<16x16xi1> to vector<1x16x16xi1>
    %cst_72 = arith.constant -1.000000e+30 : f32
    %145 = vector.shape_cast %144 : vector<1x16x16xi1> to vector<1x16x16xi1>
    %146 = vector.broadcast %145 : vector<1x16x16xi1> to vector<4x16x16xi1>
    %147 = vector.broadcast %cst_72 : f32 to vector<4x16x16xf32>
    %148 = arith.select %146, %143, %147 : vector<4x16x16xi1>, vector<4x16x16xf32>
    %cst_73 = arith.constant dense<0xFF800000> : vector<4x16xf32>
    %149 = vector.multi_reduction <maximumf>, %148, %cst_73 [2] : vector<4x16x16xf32> to vector<4x16xf32>
    %150 = vector.shape_cast %149 : vector<4x16xf32> to vector<4x16x1xf32>
    %151 = vector.broadcast %150 : vector<4x16x1xf32> to vector<4x16x16xf32>
    %152 = arith.subf %148, %151 : vector<4x16x16xf32>
    %153 = math.exp %152 : vector<4x16x16xf32>
    %cst_74 = arith.constant dense<0.000000e+00> : vector<4x16xf32>
    %154 = vector.multi_reduction <add>, %153, %cst_74 [2] : vector<4x16x16xf32> to vector<4x16xf32>
    %155 = vector.shape_cast %154 : vector<4x16xf32> to vector<4x16x1xf32>
    %156 = vector.broadcast %155 : vector<4x16x1xf32> to vector<4x16x16xf32>
    %157 = arith.divf %153, %156 : vector<4x16x16xf32>
    "tpu.trace_start"() <{level = 10 : i32, message = "hqk,hke->hqe"}> : () -> ()
    %cst_75 = arith.constant dense<0.000000e+00> : vector<4x16x8xf32>
    %158 = tpu.matmul %157, %140, %cst_75 {dimension_numbers = #tpu.dot_dimension_numbers<[2], [1], [1], [2], [0, 0, 0, 1, 1, 2], [0], [0]>} : vector<4x16x16xf32>, vector<4x16x8xf32>, vector<4x16x8xf32> -> vector<4x16x8xf32>
    "tpu.trace_stop"() : () -> ()
    %159 = tpu.transpose %158, [1, 0, 2] : vector<4x16x8xf32> -> vector<16x4x8xf32>
    %160 = vector.shape_cast %159 : vector<16x4x8xf32> to vector<16x32xf32>
    %c1_76 = arith.constant 1 : index
    %c0_77 = arith.constant 0 : index
    %c0_78 = arith.constant 0 : index
    %161 = vector.load %arg6[%c1_76, %c0_77, %c0_78] : memref<2x32x32xf32, #tpu.memory_space<vmem>>, vector<1x32x32xf32>
    %162 = vector.shape_cast %161 : vector<1x32x32xf32> to vector<32x32xf32>
    %cst_79 = arith.constant dense<0.000000e+00> : vector<16x32xf32>
    %163 = tpu.matmul %160, %162, %cst_79 {dimension_numbers = #tpu.dot_dimension_numbers<[1], [0], [0], [1], [0, 0, 1, 1], [], []>} : vector<16x32xf32>, vector<32x32xf32>, vector<16x32xf32> -> vector<16x32xf32>
    %c1_80 = arith.constant 1 : index
    %c0_81 = arith.constant 0 : index
    %c0_82 = arith.constant 0 : index
    %164 = vector.load %arg7[%c1_80, %c0_81, %c0_82] : memref<2x1x32xf32, #tpu.memory_space<vmem>>, vector<1x1x32xf32>
    %165 = vector.shape_cast %164 : vector<1x1x32xf32> to vector<1x32xf32>
    %166 = vector.broadcast %165 : vector<1x32xf32> to vector<16x32xf32>
    %167 = arith.addf %163, %166 : vector<16x32xf32>
    %168 = arith.addf %124, %167 : vector<16x32xf32>
    %c1_83 = arith.constant 1 : index
    %c0_84 = arith.constant 0 : index
    %c0_85 = arith.constant 0 : index
    %169 = vector.load %arg8[%c1_83, %c0_84, %c0_85] : memref<2x1x32xf32, #tpu.memory_space<vmem>>, vector<1x1x32xf32>
    %170 = vector.shape_cast %169 : vector<1x1x32xf32> to vector<1x32xf32>
    %c1_86 = arith.constant 1 : index
    %c0_87 = arith.constant 0 : index
    %c0_88 = arith.constant 0 : index
    %171 = vector.load %arg9[%c1_86, %c0_87, %c0_88] : memref<2x1x32xf32, #tpu.memory_space<vmem>>, vector<1x1x32xf32>
    %172 = vector.shape_cast %171 : vector<1x1x32xf32> to vector<1x32xf32>
    %cst_89 = arith.constant dense<0.000000e+00> : vector<16xf32>
    %173 = vector.multi_reduction <add>, %168, %cst_89 [1] : vector<16x32xf32> to vector<16xf32>
    %174 = vector.shape_cast %173 : vector<16xf32> to vector<16x1xf32>
    %cst_90 = arith.constant 3.200000e+01 : f32
    %175 = vector.broadcast %cst_90 : f32 to vector<16x1xf32>
    %176 = arith.divf %174, %175 : vector<16x1xf32>
    %177 = vector.broadcast %176 : vector<16x1xf32> to vector<16x32xf32>
    %178 = arith.subf %168, %177 : vector<16x32xf32>
    %179 = vector.broadcast %176 : vector<16x1xf32> to vector<16x32xf32>
    %180 = arith.subf %168, %179 : vector<16x32xf32>
    %181 = arith.mulf %178, %180 : vector<16x32xf32>
    %cst_91 = arith.constant dense<0.000000e+00> : vector<16xf32>
    %182 = vector.multi_reduction <add>, %181, %cst_91 [1] : vector<16x32xf32> to vector<16xf32>
    %183 = vector.shape_cast %182 : vector<16xf32> to vector<16x1xf32>
    %cst_92 = arith.constant 3.200000e+01 : f32
    %184 = vector.broadcast %cst_92 : f32 to vector<16x1xf32>
    %185 = arith.divf %183, %184 : vector<16x1xf32>
    %186 = vector.broadcast %176 : vector<16x1xf32> to vector<16x32xf32>
    %187 = arith.subf %168, %186 : vector<16x32xf32>
    %cst_93 = arith.constant 9.99999974E-6 : f32
    %188 = vector.broadcast %cst_93 : f32 to vector<16x1xf32>
    %189 = arith.addf %185, %188 : vector<16x1xf32>
    %190 = math.rsqrt %189 : vector<16x1xf32>
    %191 = vector.broadcast %190 : vector<16x1xf32> to vector<16x32xf32>
    %192 = arith.mulf %187, %191 : vector<16x32xf32>
    %193 = vector.broadcast %170 : vector<1x32xf32> to vector<16x32xf32>
    %194 = arith.mulf %192, %193 : vector<16x32xf32>
    %195 = vector.broadcast %172 : vector<1x32xf32> to vector<16x32xf32>
    %196 = arith.addf %194, %195 : vector<16x32xf32>
    %c1_94 = arith.constant 1 : index
    %c0_95 = arith.constant 0 : index
    %c0_96 = arith.constant 0 : index
    %197 = vector.load %arg10[%c1_94, %c0_95, %c0_96] : memref<2x32x64xf32, #tpu.memory_space<vmem>>, vector<1x32x64xf32>
    %198 = vector.shape_cast %197 : vector<1x32x64xf32> to vector<32x64xf32>
    %cst_97 = arith.constant dense<0.000000e+00> : vector<16x64xf32>
    %199 = tpu.matmul %196, %198, %cst_97 {dimension_numbers = #tpu.dot_dimension_numbers<[1], [0], [0], [1], [0, 0, 1, 1], [], []>} : vector<16x32xf32>, vector<32x64xf32>, vector<16x64xf32> -> vector<16x64xf32>
    %c1_98 = arith.constant 1 : index
    %c0_99 = arith.constant 0 : index
    %c0_100 = arith.constant 0 : index
    %200 = vector.load %arg11[%c1_98, %c0_99, %c0_100] : memref<2x1x64xf32, #tpu.memory_space<vmem>>, vector<1x1x64xf32>
    %201 = vector.shape_cast %200 : vector<1x1x64xf32> to vector<1x64xf32>
    %202 = vector.broadcast %201 : vector<1x64xf32> to vector<16x64xf32>
    %203 = arith.addf %199, %202 : vector<16x64xf32>
    %cst_101 = arith.constant 0.000000e+00 : f32
    %204 = vector.broadcast %cst_101 : f32 to vector<16x64xf32>
    %205 = arith.maximumf %203, %204 : vector<16x64xf32>
    %c1_102 = arith.constant 1 : index
    %c0_103 = arith.constant 0 : index
    %c0_104 = arith.constant 0 : index
    %206 = vector.load %arg12[%c1_102, %c0_103, %c0_104] : memref<2x64x32xf32, #tpu.memory_space<vmem>>, vector<1x64x32xf32>
    %207 = vector.shape_cast %206 : vector<1x64x32xf32> to vector<64x32xf32>
    %cst_105 = arith.constant dense<0.000000e+00> : vector<16x32xf32>
    %208 = tpu.matmul %205, %207, %cst_105 {dimension_numbers = #tpu.dot_dimension_numbers<[1], [0], [0], [1], [0, 0, 1, 1], [], []>} : vector<16x64xf32>, vector<64x32xf32>, vector<16x32xf32> -> vector<16x32xf32>
    %c1_106 = arith.constant 1 : index
    %c0_107 = arith.constant 0 : index
    %c0_108 = arith.constant 0 : index
    %209 = vector.load %arg13[%c1_106, %c0_107, %c0_108] : memref<2x1x32xf32, #tpu.memory_space<vmem>>, vector<1x1x32xf32>
    %210 = vector.shape_cast %209 : vector<1x1x32xf32> to vector<1x32xf32>
    %211 = vector.broadcast %210 : vector<1x32xf32> to vector<16x32xf32>
    %212 = arith.addf %208, %211 : vector<16x32xf32>
    %213 = arith.addf %196, %212 : vector<16x32xf32>
    %c1_109 = arith.constant 1 : index
    %c0_110 = arith.constant 0 : index
    %c0_111 = arith.constant 0 : index
    %214 = vector.load %arg14[%c1_109, %c0_110, %c0_111] : memref<2x1x32xf32, #tpu.memory_space<vmem>>, vector<1x1x32xf32>
    %215 = vector.shape_cast %214 : vector<1x1x32xf32> to vector<1x32xf32>
    %c1_112 = arith.constant 1 : index
    %c0_113 = arith.constant 0 : index
    %c0_114 = arith.constant 0 : index
    %216 = vector.load %arg15[%c1_112, %c0_113, %c0_114] : memref<2x1x32xf32, #tpu.memory_space<vmem>>, vector<1x1x32xf32>
    %217 = vector.shape_cast %216 : vector<1x1x32xf32> to vector<1x32xf32>
    %cst_115 = arith.constant dense<0.000000e+00> : vector<16xf32>
    %218 = vector.multi_reduction <add>, %213, %cst_115 [1] : vector<16x32xf32> to vector<16xf32>
    %219 = vector.shape_cast %218 : vector<16xf32> to vector<16x1xf32>
    %cst_116 = arith.constant 3.200000e+01 : f32
    %220 = vector.broadcast %cst_116 : f32 to vector<16x1xf32>
    %221 = arith.divf %219, %220 : vector<16x1xf32>
    %222 = vector.broadcast %221 : vector<16x1xf32> to vector<16x32xf32>
    %223 = arith.subf %213, %222 : vector<16x32xf32>
    %224 = vector.broadcast %221 : vector<16x1xf32> to vector<16x32xf32>
    %225 = arith.subf %213, %224 : vector<16x32xf32>
    %226 = arith.mulf %223, %225 : vector<16x32xf32>
    %cst_117 = arith.constant dense<0.000000e+00> : vector<16xf32>
    %227 = vector.multi_reduction <add>, %226, %cst_117 [1] : vector<16x32xf32> to vector<16xf32>
    %228 = vector.shape_cast %227 : vector<16xf32> to vector<16x1xf32>
    %cst_118 = arith.constant 3.200000e+01 : f32
    %229 = vector.broadcast %cst_118 : f32 to vector<16x1xf32>
    %230 = arith.divf %228, %229 : vector<16x1xf32>
    %231 = vector.broadcast %221 : vector<16x1xf32> to vector<16x32xf32>
    %232 = arith.subf %213, %231 : vector<16x32xf32>
    %cst_119 = arith.constant 9.99999974E-6 : f32
    %233 = vector.broadcast %cst_119 : f32 to vector<16x1xf32>
    %234 = arith.addf %230, %233 : vector<16x1xf32>
    %235 = math.rsqrt %234 : vector<16x1xf32>
    %236 = vector.broadcast %235 : vector<16x1xf32> to vector<16x32xf32>
    %237 = arith.mulf %232, %236 : vector<16x32xf32>
    %238 = vector.broadcast %215 : vector<1x32xf32> to vector<16x32xf32>
    %239 = arith.mulf %237, %238 : vector<16x32xf32>
    %240 = vector.broadcast %217 : vector<1x32xf32> to vector<16x32xf32>
    %241 = arith.addf %239, %240 : vector<16x32xf32>
    %c0_120 = arith.constant 0 : index
    %c0_121 = arith.constant 0 : index
    %242 = vector.load %arg16[%c0_120, %c0_121] : memref<1x32xf32, #tpu.memory_space<vmem>>, vector<1x32xf32>
    %c0_122 = arith.constant 0 : index
    %c0_123 = arith.constant 0 : index
    %243 = vector.load %arg17[%c0_122, %c0_123] : memref<1x32xf32, #tpu.memory_space<vmem>>, vector<1x32xf32>
    %cst_124 = arith.constant dense<0.000000e+00> : vector<16xf32>
    %244 = vector.multi_reduction <add>, %241, %cst_124 [1] : vector<16x32xf32> to vector<16xf32>
    %245 = vector.shape_cast %244 : vector<16xf32> to vector<16x1xf32>
    %cst_125 = arith.constant 3.200000e+01 : f32
    %246 = vector.broadcast %cst_125 : f32 to vector<16x1xf32>
    %247 = arith.divf %245, %246 : vector<16x1xf32>
    %248 = vector.broadcast %247 : vector<16x1xf32> to vector<16x32xf32>
    %249 = arith.subf %241, %248 : vector<16x32xf32>
    %250 = vector.broadcast %247 : vector<16x1xf32> to vector<16x32xf32>
    %251 = arith.subf %241, %250 : vector<16x32xf32>
    %252 = arith.mulf %249, %251 : vector<16x32xf32>
    %cst_126 = arith.constant dense<0.000000e+00> : vector<16xf32>
    %253 = vector.multi_reduction <add>, %252, %cst_126 [1] : vector<16x32xf32> to vector<16xf32>
    %254 = vector.shape_cast %253 : vector<16xf32> to vector<16x1xf32>
    %cst_127 = arith.constant 3.200000e+01 : f32
    %255 = vector.broadcast %cst_127 : f32 to vector<16x1xf32>
    %256 = arith.divf %254, %255 : vector<16x1xf32>
    %257 = vector.broadcast %247 : vector<16x1xf32> to vector<16x32xf32>
    %258 = arith.subf %241, %257 : vector<16x32xf32>
    %cst_128 = arith.constant 9.99999974E-6 : f32
    %259 = vector.broadcast %cst_128 : f32 to vector<16x1xf32>
    %260 = arith.addf %256, %259 : vector<16x1xf32>
    %261 = math.rsqrt %260 : vector<16x1xf32>
    %262 = vector.broadcast %261 : vector<16x1xf32> to vector<16x32xf32>
    %263 = arith.mulf %258, %262 : vector<16x32xf32>
    %264 = vector.broadcast %242 : vector<1x32xf32> to vector<16x32xf32>
    %265 = arith.mulf %263, %264 : vector<16x32xf32>
    %266 = vector.broadcast %243 : vector<1x32xf32> to vector<16x32xf32>
    %267 = arith.addf %265, %266 : vector<16x32xf32>
    %268 = tpu.iota {dimensions = array<i32: 0>} : vector<2x16xi32>
    %c0_129 = arith.constant 0 : index
    %c0_130 = arith.constant 0 : index
    %269 = vector.load %arg2[%c0_129, %c0_130] : memref<1x16xi32, #tpu.memory_space<vmem>>, vector<1x16xi32>
    %270 = vector.broadcast %269 : vector<1x16xi32> to vector<2x16xi32>
    %271 = arith.cmpi eq, %268, %270 : vector<2x16xi32>
    %272 = arith.extui %271 : vector<2x16xi1> to vector<2x16xi32>
    %273 = arith.sitofp %272 : vector<2x16xi32> to vector<2x16xf32>
    %cst_131 = arith.constant dense<0.000000e+00> : vector<2xf32>
    %274 = vector.multi_reduction <add>, %273, %cst_131 [1] : vector<2x16xf32> to vector<2xf32>
    %275 = vector.shape_cast %274 : vector<2xf32> to vector<2x1xf32>
    %cst_132 = arith.constant 1.000000e+00 : f32
    %276 = vector.broadcast %cst_132 : f32 to vector<2x1xf32>
    %277 = arith.maximumf %275, %276 : vector<2x1xf32>
    %cst_133 = arith.constant dense<0.000000e+00> : vector<2x32xf32>
    %278 = tpu.matmul %273, %267, %cst_133 {dimension_numbers = #tpu.dot_dimension_numbers<[1], [0], [0], [1], [0, 0, 1, 1], [], []>} : vector<2x16xf32>, vector<16x32xf32>, vector<2x32xf32> -> vector<2x32xf32>
    %279 = vector.broadcast %277 : vector<2x1xf32> to vector<2x32xf32>
    %280 = arith.divf %278, %279 : vector<2x32xf32>
    %c0_134 = arith.constant 0 : index
    %c0_135 = arith.constant 0 : index
    %281 = vector.load %arg18[%c0_134, %c0_135] : memref<32x16xf32, #tpu.memory_space<vmem>>, vector<32x16xf32>
    %cst_136 = arith.constant dense<0.000000e+00> : vector<2x16xf32>
    %282 = tpu.matmul %280, %281, %cst_136 {dimension_numbers = #tpu.dot_dimension_numbers<[1], [0], [0], [1], [0, 0, 1, 1], [], []>} : vector<2x32xf32>, vector<32x16xf32>, vector<2x16xf32> -> vector<2x16xf32>
    %c0_137 = arith.constant 0 : index
    %c0_138 = arith.constant 0 : index
    %283 = vector.load %arg19[%c0_137, %c0_138] : memref<1x16xf32, #tpu.memory_space<vmem>>, vector<1x16xf32>
    %284 = vector.broadcast %283 : vector<1x16xf32> to vector<2x16xf32>
    %285 = arith.addf %282, %284 : vector<2x16xf32>
    %cst_139 = arith.constant 0.000000e+00 : f32
    %286 = vector.broadcast %cst_139 : f32 to vector<2x16xf32>
    %287 = arith.maximumf %285, %286 : vector<2x16xf32>
    %c0_140 = arith.constant 0 : index
    %c0_141 = arith.constant 0 : index
    %288 = vector.load %arg20[%c0_140, %c0_141] : memref<16x1xf32, #tpu.memory_space<vmem>>, vector<16x1xf32>
    %cst_142 = arith.constant dense<0.000000e+00> : vector<2x1xf32>
    %289 = tpu.matmul %287, %288, %cst_142 {dimension_numbers = #tpu.dot_dimension_numbers<[1], [0], [0], [1], [0, 0, 1, 1], [], []>} : vector<2x16xf32>, vector<16x1xf32>, vector<2x1xf32> -> vector<2x1xf32>
    %c0_143 = arith.constant 0 : index
    %c0_144 = arith.constant 0 : index
    %290 = vector.load %arg21[%c0_143, %c0_144] : memref<1x1xf32, #tpu.memory_space<vmem>>, vector<1x1xf32>
    %291 = vector.broadcast %290 : vector<1x1xf32> to vector<2x1xf32>
    %292 = arith.addf %289, %291 : vector<2x1xf32>
    %c0_145 = arith.constant 0 : index
    %c0_146 = arith.constant 0 : index
    %293 = vector.load %arg22[%c0_145, %c0_146] : memref<2x1xf32, #tpu.memory_space<vmem>>, vector<2x1xf32>
    tpu.vector_store %arg22[%c0_145, %c0_146], %292 {strides = array<i32>} : memref<2x1xf32, #tpu.memory_space<vmem>>, vector<2x1xf32>,
    return
  }
}

</mosaic_0001>

<llo_original>
// kernel: graph_transformer_regression_forward.1
$region0: #{graph_transformer_regression_forward.1}
  #allocation0 [shape = 'u32[]', space=smem, size = 0x4, offset = 0x4, fixed_abs, tag = 'smem constant byte address 0x4 - core index']
  #allocation1 [shape = 'u32[144,128]{1,0:T(1,128)}', space=vmem, size = 0x12000, scoped, tag = 'internal scratch']
  #allocation2 [shape = 'f32[1,1]{1,0:T(1,128)S(1)}', space=vmem, size = 0x200, scoped, tag = 'scoped memory for graph_transformer_regression_forward.1']
  %s0 = inlined_call_operand.vmem [shape: f32[16,12], index: 0, kind: input, shape index: {}]
  %s1 = inlined_call_operand.vmem [shape: s32[16,1], index: 1, kind: input, shape index: {}]
  %s2 = inlined_call_operand.vmem [shape: s32[1,16], index: 2, kind: input, shape index: {}]
  %s3 = inlined_call_operand.vmem [shape: f32[12,32], index: 3, kind: input, shape index: {}]
  %s4 = inlined_call_operand.vmem [shape: f32[2,32,96], index: 4, kind: input, shape index: {}]
  %s5 = inlined_call_operand.vmem [shape: f32[2,1,96], index: 5, kind: input, shape index: {}]
  %s6 = inlined_call_operand.vmem [shape: f32[2,32,32], index: 6, kind: input, shape index: {}]
  %s7 = inlined_call_operand.vmem [shape: f32[2,1,32], index: 7, kind: input, shape index: {}]
  %s8 = inlined_call_operand.vmem [shape: f32[2,1,32], index: 8, kind: input, shape index: {}]
  %s9 = inlined_call_operand.vmem [shape: f32[2,1,32], index: 9, kind: input, shape index: {}]
  %s10 = inlined_call_operand.vmem [shape: f32[2,32,64], index: 10, kind: input, shape index: {}]
  %s11 = inlined_call_operand.hbm [shape: f32[2,1,64], index: 11, kind: input, shape index: {}]
  %s12 = inlined_call_operand.vmem [shape: f32[2,64,32], index: 12, kind: input, shape index: {}]
  %s13 = inlined_call_operand.hbm [shape: f32[2,1,32], index: 13, kind: input, shape index: {}]
  %s14 = inlined_call_operand.vmem [shape: f32[2,1,32], index: 14, kind: input, shape index: {}]
  %s15 = inlined_call_operand.vmem [shape: f32[2,1,32], index: 15, kind: input, shape index: {}]
  %s16 = inlined_call_operand.hbm [shape: f32[1,32], index: 16, kind: input, shape index: {}]
  %s17 = inlined_call_operand.hbm [shape: f32[1,32], index: 17, kind: input, shape index: {}]
  %s18 = inlined_call_operand.vmem [shape: f32[32,16], index: 18, kind: input, shape index: {}]
  %s19 = inlined_call_operand.vmem [shape: f32[1,16], index: 19, kind: input, shape index: {}]
  %s20 = inlined_call_operand.vmem [shape: f32[16,1], index: 20, kind: input, shape index: {}]
  %s21 = inlined_call_operand.<no memory space> [shape: f32[1,1], index: 21, kind: input, shape index: {}]
  %s22 = inlined_call_operand.vmem [shape: f32[2,1], index: 22, kind: output, shape index: {}]
  %s23 = sld [smem:[#allocation0]]
  $region114: #{graph_transformer_regression_forward.1} parent=0
    _
  %s25 = ssub.s32 1, %s23
  %s26 = scalar_select 0, %s25, %s23
  %v27 = vstv %s21
  %28 = vst [vmem:[#allocation2] sm:$0x1] %v27
  $region1: #{graph_transformer_regression_forward.1} parent=0
    #allocation3 [shape = 'u8[1024]{0}', space=vmem, size = 0x400, scoped, tag = 'input window, operand 11, single buffered']
    #allocation4 [shape = 's32[1]{0}', space=sflag, size = 0x4, scoped, tag = 'scoped memory for graph_transformer_regression_forward.1']
    #allocation5 [shape = 'u8[1024]{0}', space=vmem, size = 0x400, scoped, tag = 'input window, operand 13, single buffered']
    #allocation6 [shape = 's32[1]{0}', space=sflag, size = 0x4, scoped, tag = 'scoped memory for graph_transformer_regression_forward.1']
    #allocation7 [shape = 'u8[512]{0}', space=vmem, size = 0x400, scoped, tag = 'input window, operand 16, single buffered']
    #allocation8 [shape = 'u8[512]{0}', space=vmem, size = 0x400, scoped, tag = 'input window, operand 17, single buffered']
    #allocation9 [shape = 's32[1]{0}', space=sflag, size = 0x4, scoped, tag = 'scoped memory for graph_transformer_regression_forward.1']
    %29 = vsyncpa [#allocation4], 0
    %30 = vsyncpa [#allocation6], 0
    %31 = vsyncpa [#allocation9], 0
    // Predicated region
    $region2: #{graph_transformer_regression_forward.1} parent=1 // pred_check
      _
    $region3: #{graph_transformer_regression_forward.1} parent=1 // pred_check_branch
      %33 = sbr.rel (0) target = $region5
    $region4: #{graph_transformer_regression_forward.1} parent=1 // pred_region
      _
    $region5: #{graph_transformer_regression_forward.1} parent=1 // pred_fallthru
      _
    // Predicated region
    $region6: #{graph_transformer_regression_forward.1} parent=1 // pred_check
      _
    $region7: #{graph_transformer_regression_forward.1} parent=1 // pred_check_branch
      %35 = sbr.rel (0) target = $region9
    $region8: #{graph_transformer_regression_forward.1} parent=1 // pred_region
      _
    $region9: #{graph_transformer_regression_forward.1} parent=1 // pred_fallthru
      _
    // Predicated region
    $region10: #{graph_transformer_regression_forward.1} parent=1 // pred_check
      _
    $region11: #{graph_transformer_regression_forward.1} parent=1 // pred_check_branch
      %37 = sbr.rel (0) target = $region13
    $region12: #{graph_transformer_regression_forward.1} parent=1 // pred_region
      _
    $region13: #{graph_transformer_regression_forward.1} parent=1 // pred_fallthru
      _
    // Predicated region
    $region14: #{graph_transformer_regression_forward.1} parent=1 // pred_check
      _
    $region15: #{graph_transformer_regression_forward.1} parent=1 // pred_check_branch
      %39 = sbr.rel (0) target = $region17
    $region16: #{graph_transformer_regression_forward.1} parent=1 // pred_region
      _
    $region17: #{graph_transformer_regression_forward.1} parent=1 // pred_fallthru
      _
    // Predicated region
    $region18: #{graph_transformer_regression_forward.1} parent=1 // pred_check
      _
    $region19: #{graph_transformer_regression_forward.1} parent=1 // pred_check_branch
      %41 = sbr.rel (0) target = $region21
    $region20: #{graph_transformer_regression_forward.1} parent=1 // pred_region
      _
    $region21: #{graph_transformer_regression_forward.1} parent=1 // pred_fallthru
      _
    // Predicated region
    $region22: #{graph_transformer_regression_forward.1} parent=1 // pred_check
      _
    $region23: #{graph_transformer_regression_forward.1} parent=1 // pred_check_branch
      %43 = sbr.rel (0) target = $region25
    $region24: #{graph_transformer_regression_forward.1} parent=1 // pred_region
      _
    $region25: #{graph_transformer_regression_forward.1} parent=1 // pred_fallthru
      _
    // Predicated region
    $region26: #{graph_transformer_regression_forward.1} parent=1 // pred_check
      _
    $region27: #{graph_transformer_regression_forward.1} parent=1 // pred_check_branch
      %45 = sbr.rel (0) target = $region29
    $region28: #{graph_transformer_regression_forward.1} parent=1 // pred_region
      _
    $region29: #{graph_transformer_regression_forward.1} parent=1 // pred_fallthru
      _
    // Predicated region
    $region30: #{graph_transformer_regression_forward.1} parent=1 // pred_check
      _
    $region31: #{graph_transformer_regression_forward.1} parent=1 // pred_check_branch
      %47 = sbr.rel (0) target = $region33
    $region32: #{graph_transformer_regression_forward.1} parent=1 // pred_region
      _
    $region33: #{graph_transformer_regression_forward.1} parent=1 // pred_fallthru
      _
    // Predicated region
    $region34: #{graph_transformer_regression_forward.1} parent=1 // pred_check
      _
    $region35: #{graph_transformer_regression_forward.1} parent=1 // pred_check_branch
      %49 = sbr.rel (0) target = $region37
    $region36: #{graph_transformer_regression_forward.1} parent=1 // pred_region
      _
    $region37: #{graph_transformer_regression_forward.1} parent=1 // pred_fallthru
      _
    // Predicated region
    $region38: #{graph_transformer_regression_forward.1} parent=1 // pred_check
      _
    $region39: #{graph_transformer_regression_forward.1} parent=1 // pred_check_branch
      %51 = sbr.rel (0) target = $region41
    $region40: #{graph_transformer_regression_forward.1} parent=1 // pred_region
      _
    $region41: #{graph_transformer_regression_forward.1} parent=1 // pred_fallthru
      _
    // Predicated region
    $region42: #{graph_transformer_regression_forward.1} parent=1 // pred_check
      _
    $region43: #{graph_transformer_regression_forward.1} parent=1 // pred_check_branch
      %53 = sbr.rel (0) target = $region45
    $region44: #{graph_transformer_regression_forward.1} parent=1 // pred_region
      _
    $region45: #{graph_transformer_regression_forward.1} parent=1 // pred_fallthru
      _
    // Predicated region
    $region46: #{graph_transformer_regression_forward.1} parent=1 // pred_check
      _
    $region47: #{graph_transformer_regression_forward.1} parent=1 // pred_check_branch
      %55 = sbr.rel (0) target = $region49
    $region48: #{graph_transformer_regression_forward.1} parent=1 // pred_region
      %s57 = ssub.s32 32, 32
      %58 = vsyncadd [#allocation4], %s57
      %s59 = sshll.u32 [#allocation3], 4
      %s60 = int_to_ptr.vmem [resolvable:$true] %s59
      %65 = dma.hbm_to_vmem [thread:$0]  %s11, 32, %s60, [#allocation4], 16, 16, 1
    $region49: #{graph_transformer_regression_forward.1} parent=1 // pred_fallthru
      _
    // Predicated region
    $region50: #{graph_transformer_regression_forward.1} parent=1 // pred_check
      _
    $region51: #{graph_transformer_regression_forward.1} parent=1 // pred_check_branch
      %67 = sbr.rel (0) target = $region53
    $region52: #{graph_transformer_regression_forward.1} parent=1 // pred_region
      _
    $region53: #{graph_transformer_regression_forward.1} parent=1 // pred_fallthru
      _
    // Predicated region
    $region54: #{graph_transformer_regression_forward.1} parent=1 // pred_check
      _
    $region55: #{graph_transformer_regression_forward.1} parent=1 // pred_check_branch
      %69 = sbr.rel (0) target = $region57
    $region56: #{graph_transformer_regression_forward.1} parent=1 // pred_region
      %s71 = ssub.s32 32, 32
      %72 = vsyncadd [#allocation6], %s71
      %s73 = sshll.u32 [#allocation5], 4
      %s74 = int_to_ptr.vmem [resolvable:$true] %s73
      %79 = dma.hbm_to_vmem [thread:$0]  %s13, 32, %s74, [#allocation6], 16, 16, 1
    $region57: #{graph_transformer_regression_forward.1} parent=1 // pred_fallthru
      _
    // Predicated region
    $region58: #{graph_transformer_regression_forward.1} parent=1 // pred_check
      _
    $region59: #{graph_transformer_regression_forward.1} parent=1 // pred_check_branch
      %81 = sbr.rel (0) target = $region61
    $region60: #{graph_transformer_regression_forward.1} parent=1 // pred_region
      _
    $region61: #{graph_transformer_regression_forward.1} parent=1 // pred_fallthru
      _
    // Predicated region
    $region62: #{graph_transformer_regression_forward.1} parent=1 // pred_check
      _
    $region63: #{graph_transformer_regression_forward.1} parent=1 // pred_check_branch
      %83 = sbr.rel (0) target = $region65
    $region64: #{graph_transformer_regression_forward.1} parent=1 // pred_region
      _
    $region65: #{graph_transformer_regression_forward.1} parent=1 // pred_fallthru
      _
    // Predicated region
    $region66: #{graph_transformer_regression_forward.1} parent=1 // pred_check
      _
    $region67: #{graph_transformer_regression_forward.1} parent=1 // pred_check_branch
      %85 = sbr.rel (0) target = $region69
    $region68: #{graph_transformer_regression_forward.1} parent=1 // pred_region
      %s87 = ssub.s32 16, 16
      %88 = vsyncadd [#allocation6], %s87
      %s90 = sshll.u32 [#allocation7], 4
      %s91 = int_to_ptr.vmem [resolvable:$true] %s90
      %93 = dma.hbm_to_vmem [thread:$0]  %s16, 16, %s91, [#allocation6]
    $region69: #{graph_transformer_regression_forward.1} parent=1 // pred_fallthru
      _
    // Predicated region
    $region70: #{graph_transformer_regression_forward.1} parent=1 // pred_check
      _
    $region71: #{graph_transformer_regression_forward.1} parent=1 // pred_check_branch
      %95 = sbr.rel (0) target = $region73
    $region72: #{graph_transformer_regression_forward.1} parent=1 // pred_region
      %s97 = ssub.s32 16, 16
      %98 = vsyncadd [#allocation9], %s97
      %s100 = sshll.u32 [#allocation8], 4
      %s101 = int_to_ptr.vmem [resolvable:$true] %s100
      %103 = dma.hbm_to_vmem [thread:$0]  %s17, 16, %s101, [#allocation9]
    $region73: #{graph_transformer_regression_forward.1} parent=1 // pred_fallthru
      _
    // Predicated region
    $region74: #{graph_transformer_regression_forward.1} parent=1 // pred_check
      _
    $region75: #{graph_transformer_regression_forward.1} parent=1 // pred_check_branch
      %105 = sbr.rel (0) target = $region77
    $region76: #{graph_transformer_regression_forward.1} parent=1 // pred_region
      _
    $region77: #{graph_transformer_regression_forward.1} parent=1 // pred_fallthru
      _
    // Predicated region
    $region78: #{graph_transformer_regression_forward.1} parent=1 // pred_check
      _
    $region79: #{graph_transformer_regression_forward.1} parent=1 // pred_check_branch
      %107 = sbr.rel (0) target = $region81
    $region80: #{graph_transformer_regression_forward.1} parent=1 // pred_region
      _
    $region81: #{graph_transformer_regression_forward.1} parent=1 // pred_fallthru
      _
    // Predicated region
    $region82: #{graph_transformer_regression_forward.1} parent=1 // pred_check
      _
    $region83: #{graph_transformer_regression_forward.1} parent=1 // pred_check_branch
      %109 = sbr.rel (0) target = $region85
    $region84: #{graph_transformer_regression_forward.1} parent=1 // pred_region
      _
    $region85: #{graph_transformer_regression_forward.1} parent=1 // pred_fallthru
      _
    // Predicated region
    $region86: #{graph_transformer_regression_forward.1} parent=1 // pred_check
      _
    $region87: #{graph_transformer_regression_forward.1} parent=1 // pred_check_branch
      %111 = sbr.rel (0) target = $region89
    $region88: #{graph_transformer_regression_forward.1} parent=1 // pred_region
      _
    $region89: #{graph_transformer_regression_forward.1} parent=1 // pred_fallthru
      _
    // Predicated region
    $region90: #{graph_transformer_regression_forward.1} parent=1 // pred_check
      _
    $region91: #{graph_transformer_regression_forward.1} parent=1 // pred_check_branch
      %113 = sbr.rel (0) target = $region93
    $region92: #{graph_transformer_regression_forward.1} parent=1 // pred_region
      %114 = dma.done [#allocation4], 32
    $region93: #{graph_transformer_regression_forward.1} parent=1 // pred_fallthru
      _
    // Predicated region
    $region94: #{graph_transformer_regression_forward.1} parent=1 // pred_check
      _
    $region95: #{graph_transformer_regression_forward.1} parent=1 // pred_check_branch
      %116 = sbr.rel (0) target = $region97
    $region96: #{graph_transformer_regression_forward.1} parent=1 // pred_region
      %117 = dma.done [#allocation6], 32
    $region97: #{graph_transformer_regression_forward.1} parent=1 // pred_fallthru
      _
    // Predicated region
    $region98: #{graph_transformer_regression_forward.1} parent=1 // pred_check
      _
    $region99: #{graph_transformer_regression_forward.1} parent=1 // pred_check_branch
      %119 = sbr.rel (0) target = $region101
    $region100: #{graph_transformer_regression_forward.1} parent=1 // pred_region
      %120 = dma.done [#allocation6], 16
    $region101: #{graph_transformer_regression_forward.1} parent=1 // pred_fallthru
      _
    // Predicated region
    $region102: #{graph_transformer_regression_forward.1} parent=1 // pred_check
      _
    $region103: #{graph_transformer_regression_forward.1} parent=1 // pred_check_branch
      %122 = sbr.rel (0) target = $region105
    $region104: #{graph_transformer_regression_forward.1} parent=1 // pred_region
      %123 = dma.done [#allocation9], 16
    $region105: #{graph_transformer_regression_forward.1} parent=1 // pred_fallthru
      _
    %v124 = vld [vmem:[%s0] sm:$0xff]
    %v125 = vld [vmem:[%s0 + $0x8] sm:$0xff]
    %v126 = vld [vmem:[%s3] sm:$0xff]
    %v127 = vld [vmem:[%s3 + $0x8] sm:$0xf]
    %vm128 = vcmask 97280
    %v130 = vsel %vm128, %v124, 0
    %v133 = vsel %vm128, %v125, 0
    %vm135 = vcmask 1043456
    %v137 = vsel %vm135, %v127, 0
    %139 = vmatprep.subr.mxu0 0.0
    %140 = vmatpush1.msra.mxu0 %v126
    %141 = vmatprep.subr.mxu0 0.0
    %142 = vmatpush1.msra.mxu0 %v137
    %143 = vmatprep.subr.mxu0 0.0
    %144 = vmatpush1.msra.mxu0 0.0
    %145 = vmatprep.subr.mxu0 0.0
    %146 = vmatpush1.msra.mxu0 0.0
    %147 = vmatprep.subr.mxu0 0.0
    %148 = vmatpush1.msra.mxu0 0.0
    %149 = vmatprep.subr.mxu0 0.0
    %150 = vmatpush1.msra.mxu0 0.0
    %151 = vmatprep.subr.mxu0 0.0
    %152 = vmatpush1.msra.mxu0 0.0
    %153 = vmatprep.subr.mxu0 0.0
    %154 = vmatpush1.msra.mxu0 0.0
    %155 = vmatprep.subr.mxu0 0.0
    %156 = vmatpush1.msra.mxu0 0.0
    %157 = vmatprep.subr.mxu0 0.0
    %158 = vmatpush1.msra.mxu0 0.0
    %159 = vmatprep.subr.mxu0 0.0
    %160 = vmatpush1.msra.mxu0 0.0
    %161 = vmatprep.subr.mxu0 0.0
    %162 = vmatpush1.msra.mxu0 0.0
    %163 = vmatprep.subr.mxu0 0.0
    %164 = vmatpush1.msra.mxu0 0.0
    %165 = vmatprep.subr.mxu0 0.0
    %166 = vmatpush1.msra.mxu0 0.0
    %167 = vmatprep.subr.mxu0 0.0
    %168 = vmatpush1.msra.mxu0 0.0
    %169 = vmatprep.subr.mxu0 0.0
    %170 = vmatpush1.msra.mxu0 0.0
    %171 = vmatprep.subr.mxu0 0.0
    %172 = vmatpush1.msra.mxu0 0.0
    %173 = vmatprep.subr.mxu0 0.0
    %174 = vmatpush1.msra.mxu0 0.0
    %175 = vmatprep.subr.mxu0 0.0
    %176 = vmatpush1.msra.mxu0 0.0
    %177 = vmatprep.subr.mxu0 0.0
    %178 = vmatpush1.msra.mxu0 0.0
    %179 = vmatprep.subr.mxu0 0.0
    %180 = vmatpush1.msra.mxu0 0.0
    %181 = vmatprep.subr.mxu0 0.0
    %182 = vmatpush1.msra.mxu0 0.0
    %183 = vmatprep.subr.mxu0 0.0
    %184 = vmatpush1.msra.mxu0 0.0
    %185 = vmatprep.subr.mxu0 0.0
    %186 = vmatpush1.msra.mxu0 0.0
    %187 = vmatprep.subr.mxu0 0.0
    %188 = vmatpush1.msra.mxu0 0.0
    %189 = vmatprep.subr.mxu0 0.0
    %190 = vmatpush1.msra.mxu0 0.0
    %191 = vmatprep.subr.mxu0 0.0
    %192 = vmatpush1.msra.mxu0 0.0
    %193 = vmatprep.subr.mxu0 0.0
    %194 = vmatpush1.msra.mxu0 0.0
    %195 = vmatprep.subr.mxu0 0.0
    %196 = vmatpush1.msra.mxu0 0.0
    %197 = vmatprep.subr.mxu0 0.0
    %198 = vmatpush1.msra.mxu0 0.0
    %199 = vmatprep.subr.mxu0 0.0
    %200 = vmatpush1.msra.mxu0 0.0
    %201 = vmatprep.subr.mxu0 0.0
    %202 = vmatpush1.msra.mxu0 0.0
    %203 = vmatprep.mubr.f32.mxu0 0.0
    %204 = vmatmul.mubr.f32.gmra.mrb[0].mxu0 %v130
    %v205 = vpop.f32.mrb[0].mxu0
    %v206 = vadd.f32 0.0, %v205
    %v207 = vpop.f32.mrb[0].mxu0
    %208 = vmatprep.mubr.f32.mxu0 0.0
    %209 = vmatmul.mubr.f32.gmra.mrb[0].mxu0 %v133
    %v210 = vpop.f32.mrb[0].mxu0
    %v211 = vadd.f32 0.0, %v210
    %v212 = vpop.f32.mrb[0].mxu0
    %213 = vdwg.mxu0
    %v214 = vld [vmem:[%s1] sm:$0xff]
    %v215 = vld [vmem:[%s1 + $0x8] sm:$0xff]
    %v216 = vld [vmem:[%s2] sm:$0x1]
    %217 = vset.pattern.permute.xlu0 0
    %218 = vperm.xlu0 %217, %v214
    %v219 = vpop.permute.xlu0 %218
    %220 = vset.pattern.permute.xlu0 0
    %221 = vperm.xlu0 %220, %v215
    %v222 = vpop.permute.xlu0 %221
    %v223 = vlaneseq
    %v224 = vshrl.u32 %v223, 7
    %v225 = vsub.s32 0, %v224
    %v226 = vrot.slane %v216, %v225
    %vm227 = vcmp.eq.s32.totalorder %v219, %v226
    %vm228 = vcmp.eq.s32.totalorder %v222, %v226
    %v229 = vld [vmem:[%s4] sm:$0xff]
    %v230 = vld [vmem:[%s4 + $0x8] sm:$0xff]
    %v231 = vld [vmem:[%s4 + $0x10] sm:$0xff]
    %v232 = vld [vmem:[%s4 + $0x18] sm:$0xff]
    %v233 = vld [vmem:[%s5] sm:$0x1]
    %v235 = vlaneseq
    %v236 = vshrl.u32 %v235, 7
    %v237 = vsub.s32 0, %v236
    %v238 = vrot.slane %v233, %v237
    %vm240 = vcmask 261120
    %v242 = vsel %vm240, %v206, 0
    %v245 = vsel %vm240, %v211, 0
    %247 = vmatprep.subr.mxu0 0.0
    %248 = vmatpush1.msra.mxu0 %v229
    %249 = vmatprep.subr.mxu0 0.0
    %250 = vmatpush1.msra.mxu0 %v230
    %251 = vmatprep.subr.mxu0 0.0
    %252 = vmatpush1.msra.mxu0 %v231
    %253 = vmatprep.subr.mxu0 0.0
    %254 = vmatpush1.msra.mxu0 %v232
    %255 = vmatprep.subr.mxu0 0.0
    %256 = vmatpush1.msra.mxu0 0.0
    %257 = vmatprep.subr.mxu0 0.0
    %258 = vmatpush1.msra.mxu0 0.0
    %259 = vmatprep.subr.mxu0 0.0
    %260 = vmatpush1.msra.mxu0 0.0
    %261 = vmatprep.subr.mxu0 0.0
    %262 = vmatpush1.msra.mxu0 0.0
    %263 = vmatprep.subr.mxu0 0.0
    %264 = vmatpush1.msra.mxu0 0.0
    %265 = vmatprep.subr.mxu0 0.0
    %266 = vmatpush1.msra.mxu0 0.0
    %267 = vmatprep.subr.mxu0 0.0
    %268 = vmatpush1.msra.mxu0 0.0
    %269 = vmatprep.subr.mxu0 0.0
    %270 = vmatpush1.msra.mxu0 0.0
    %271 = vmatprep.subr.mxu0 0.0
    %272 = vmatpush1.msra.mxu0 0.0
    %273 = vmatprep.subr.mxu0 0.0
    %274 = vmatpush1.msra.mxu0 0.0
    %275 = vmatprep.subr.mxu0 0.0
    %276 = vmatpush1.msra.mxu0 0.0
    %277 = vmatprep.subr.mxu0 0.0
    %278 = vmatpush1.msra.mxu0 0.0
    %279 = vmatprep.subr.mxu0 0.0
    %280 = vmatpush1.msra.mxu0 0.0
    %281 = vmatprep.subr.mxu0 0.0
    %282 = vmatpush1.msra.mxu0 0.0
    %283 = vmatprep.subr.mxu0 0.0
    %284 = vmatpush1.msra.mxu0 0.0
    %285 = vmatprep.subr.mxu0 0.0
    %286 = vmatpush1.msra.mxu0 0.0
    %287 = vmatprep.subr.mxu0 0.0
    %288 = vmatpush1.msra.mxu0 0.0
    %289 = vmatprep.subr.mxu0 0.0
    %290 = vmatpush1.msra.mxu0 0.0
    %291 = vmatprep.subr.mxu0 0.0
    %292 = vmatpush1.msra.mxu0 0.0
    %293 = vmatprep.subr.mxu0 0.0
    %294 = vmatpush1.msra.mxu0 0.0
    %295 = vmatprep.subr.mxu0 0.0
    %296 = vmatpush1.msra.mxu0 0.0
    %297 = vmatprep.subr.mxu0 0.0
    %298 = vmatpush1.msra.mxu0 0.0
    %299 = vmatprep.subr.mxu0 0.0
    %300 = vmatpush1.msra.mxu0 0.0
    %301 = vmatprep.subr.mxu0 0.0
    %302 = vmatpush1.msra.mxu0 0.0
    %303 = vmatprep.subr.mxu0 0.0
    %304 = vmatpush1.msra.mxu0 0.0
    %305 = vmatprep.subr.mxu0 0.0
    %306 = vmatpush1.msra.mxu0 0.0
    %307 = vmatprep.subr.mxu0 0.0
    %308 = vmatpush1.msra.mxu0 0.0
    %309 = vmatprep.subr.mxu0 0.0
    %310 = vmatpush1.msra.mxu0 0.0
    %311 = vmatprep.mubr.f32.mxu0 0.0
    %312 = vmatmul.mubr.f32.gmra.mrb[0].mxu0 %v242
    %v313 = vpop.f32.mrb[0].mxu0
    %v314 = vadd.f32 %v238, %v313
    %v315 = vpop.f32.mrb[0].mxu0
    %316 = vmatprep.mubr.f32.mxu0 0.0
    %317 = vmatmul.mubr.f32.gmra.mrb[0].mxu0 %v245
    %v318 = vpop.f32.mrb[0].mxu0
    %v319 = vadd.f32 %v238, %v318
    %v320 = vpop.f32.mrb[0].mxu0
    %321 = vdwg.mxu0
    %324 = vrot.lane.b32.xlu0 %v314, 120
    %v325 = vpop.permute.xlu0 %324
    %326 = vrot.lane.b32.xlu0 %v319, 120
    %v327 = vpop.permute.xlu0 %326
    %330 = vrot.lane.b32.xlu0 %v314, 112
    %v331 = vpop.permute.xlu0 %330
    %332 = vrot.lane.b32.xlu0 %v319, 112
    %v333 = vpop.permute.xlu0 %332
    %336 = vrot.lane.b32.xlu0 %v314, 104
    %v337 = vpop.permute.xlu0 %336
    %338 = vrot.lane.b32.xlu0 %v319, 104
    %v339 = vpop.permute.xlu0 %338
    %v342 = vcombine.low %v314, %v331
    %v343 = vcombine.high %v314, %v331
    %v345 = vunpack.c.l.s4 1983009808
    %v346 = vunpack.c.0.s8 %v345
    %v347 = vlaneseq
    %v348 = vshrl.u32 %v347, 7
    %v349 = vsub.s32 %v346, %v348
    %v350 = vrot.slane %v342, %v349
    %v352 = vunpack.c.l.s4 1983009808
    %v353 = vunpack.c.0.s8 %v352
    %v354 = vlaneseq
    %v355 = vshrl.u32 %v354, 7
    %v356 = vsub.s32 %v353, %v355
    %v357 = vrot.slane %v343, %v356
    %v358 = vcombine.low %v325, %v337
    %v359 = vcombine.high %v325, %v337
    %v361 = vunpack.c.l.s4 1983009808
    %v362 = vunpack.c.0.s8 %v361
    %v363 = vlaneseq
    %v364 = vshrl.u32 %v363, 7
    %v365 = vsub.s32 %v362, %v364
    %v366 = vrot.slane %v358, %v365
    %v368 = vunpack.c.l.s4 1983009808
    %v369 = vunpack.c.0.s8 %v368
    %v370 = vlaneseq
    %v371 = vshrl.u32 %v370, 7
    %v372 = vsub.s32 %v369, %v371
    %v373 = vrot.slane %v359, %v372
    %v374 = vcombine.low %v350, %v366
    %v375 = vcombine.high %v350, %v366
    %v377 = vunpack.c.l.s4 1934713408
    %v378 = vunpack.c.0.s8 %v377
    %v379 = vlaneseq
    %v380 = vshrl.u32 %v379, 7
    %v381 = vsub.s32 %v378, %v380
    %v382 = vrot.slane %v374, %v381
    %v384 = vunpack.c.l.s4 1934713408
    %v385 = vunpack.c.0.s8 %v384
    %v386 = vlaneseq
    %v387 = vshrl.u32 %v386, 7
    %v388 = vsub.s32 %v385, %v387
    %v389 = vrot.slane %v375, %v388
    %v390 = vcombine.low %v357, %v373
    %v391 = vcombine.high %v357, %v373
    %v393 = vunpack.c.l.s4 1934713408
    %v394 = vunpack.c.0.s8 %v393
    %v395 = vlaneseq
    %v396 = vshrl.u32 %v395, 7
    %v397 = vsub.s32 %v394, %v396
    %v398 = vrot.slane %v390, %v397
    %v400 = vunpack.c.l.s4 1934713408
    %v401 = vunpack.c.0.s8 %v400
    %v402 = vlaneseq
    %v403 = vshrl.u32 %v402, 7
    %v404 = vsub.s32 %v401, %v403
    %v405 = vrot.slane %v391, %v404
    %v406 = vcombine.high %v382, 0.0
    %v407 = vcombine.high %v389, 0.0
    %v408 = vcombine.high %v398, 0.0
    %v409 = vcombine.high %v405, 0.0
    %v410 = vcombine.low %v319, %v333
    %v411 = vcombine.high %v319, %v333
    %v413 = vunpack.c.l.s4 1983009808
    %v414 = vunpack.c.0.s8 %v413
    %v415 = vlaneseq
    %v416 = vshrl.u32 %v415, 7
    %v417 = vsub.s32 %v414, %v416
    %v418 = vrot.slane %v410, %v417
    %v420 = vunpack.c.l.s4 1983009808
    %v421 = vunpack.c.0.s8 %v420
    %v422 = vlaneseq
    %v423 = vshrl.u32 %v422, 7
    %v424 = vsub.s32 %v421, %v423
    %v425 = vrot.slane %v411, %v424
    %v426 = vcombine.low %v327, %v339
    %v427 = vcombine.high %v327, %v339
    %v429 = vunpack.c.l.s4 1983009808
    %v430 = vunpack.c.0.s8 %v429
    %v431 = vlaneseq
    %v432 = vshrl.u32 %v431, 7
    %v433 = vsub.s32 %v430, %v432
    %v434 = vrot.slane %v426, %v433
    %v436 = vunpack.c.l.s4 1983009808
    %v437 = vunpack.c.0.s8 %v436
    %v438 = vlaneseq
    %v439 = vshrl.u32 %v438, 7
    %v440 = vsub.s32 %v437, %v439
    %v441 = vrot.slane %v427, %v440
    %v442 = vcombine.low %v418, %v434
    %v443 = vcombine.high %v418, %v434
    %v445 = vunpack.c.l.s4 1934713408
    %v446 = vunpack.c.0.s8 %v445
    %v447 = vlaneseq
    %v448 = vshrl.u32 %v447, 7
    %v449 = vsub.s32 %v446, %v448
    %v450 = vrot.slane %v442, %v449
    %v452 = vunpack.c.l.s4 1934713408
    %v453 = vunpack.c.0.s8 %v452
    %v454 = vlaneseq
    %v455 = vshrl.u32 %v454, 7
    %v456 = vsub.s32 %v453, %v455
    %v457 = vrot.slane %v443, %v456
    %v458 = vcombine.low %v425, %v441
    %v459 = vcombine.high %v425, %v441
    %v461 = vunpack.c.l.s4 1934713408
    %v462 = vunpack.c.0.s8 %v461
    %v463 = vlaneseq
    %v464 = vshrl.u32 %v463, 7
    %v465 = vsub.s32 %v462, %v464
    %v466 = vrot.slane %v458, %v465
    %v468 = vunpack.c.l.s4 1934713408
    %v469 = vunpack.c.0.s8 %v468
    %v470 = vlaneseq
    %v471 = vshrl.u32 %v470, 7
    %v472 = vsub.s32 %v469, %v471
    %v473 = vrot.slane %v459, %v472
    %v474 = vcombine.high %v450, 0.0
    %v475 = vcombine.high %v457, 0.0
    %v476 = vcombine.high %v466, 0.0
    %v477 = vcombine.high %v473, 0.0
    %v478 = vcombine.low %v382, %v389
    %v480 = vunpack.c.l.s4 1983009808
    %v481 = vunpack.c.0.s8 %v480
    %v482 = vlaneseq
    %v483 = vshrl.u32 %v482, 7
    %v484 = vsub.s32 %v481, %v483
    %v485 = vrot.slane %v478, %v484
    %v486 = vcombine.low %v406, %v407
    %v488 = vunpack.c.l.s4 1983009808
    %v489 = vunpack.c.0.s8 %v488
    %v490 = vlaneseq
    %v491 = vshrl.u32 %v490, 7
    %v492 = vsub.s32 %v489, %v491
    %v493 = vrot.slane %v486, %v492
    %v494 = vcombine.low %v398, %v405
    %v496 = vunpack.c.l.s4 1983009808
    %v497 = vunpack.c.0.s8 %v496
    %v498 = vlaneseq
    %v499 = vshrl.u32 %v498, 7
    %v500 = vsub.s32 %v497, %v499
    %v501 = vrot.slane %v494, %v500
    %v502 = vcombine.low %v408, %v409
    %v504 = vunpack.c.l.s4 1983009808
    %v505 = vunpack.c.0.s8 %v504
    %v506 = vlaneseq
    %v507 = vshrl.u32 %v506, 7
    %v508 = vsub.s32 %v505, %v507
    %v509 = vrot.slane %v502, %v508
    %v510 = vcombine.low %v485, %v493
    %v511 = vcombine.high %v485, %v493
    %v513 = vunpack.c.l.s4 1934713408
    %v514 = vunpack.c.0.s8 %v513
    %v515 = vlaneseq
    %v516 = vshrl.u32 %v515, 7
    %v517 = vsub.s32 %v514, %v516
    %v518 = vrot.slane %v510, %v517
    %v520 = vunpack.c.l.s4 1934713408
    %v521 = vunpack.c.0.s8 %v520
    %v522 = vlaneseq
    %v523 = vshrl.u32 %v522, 7
    %v524 = vsub.s32 %v521, %v523
    %v525 = vrot.slane %v511, %v524
    %v526 = vcombine.low %v501, %v509
    %v527 = vcombine.high %v501, %v509
    %v529 = vunpack.c.l.s4 1934713408
    %v530 = vunpack.c.0.s8 %v529
    %v531 = vlaneseq
    %v532 = vshrl.u32 %v531, 7
    %v533 = vsub.s32 %v530, %v532
    %v534 = vrot.slane %v526, %v533
    %v536 = vunpack.c.l.s4 1934713408
    %v537 = vunpack.c.0.s8 %v536
    %v538 = vlaneseq
    %v539 = vshrl.u32 %v538, 7
    %v540 = vsub.s32 %v537, %v539
    %v541 = vrot.slane %v527, %v540
    %v542 = vcombine.low %v518, %v534
    %v543 = vcombine.high %v518, %v534
    %v544 = vcombine.low %v525, %v541
    %v545 = vcombine.high %v525, %v541
    %v546 = vcombine.low %v450, %v457
    %v548 = vunpack.c.l.s4 1983009808
    %v549 = vunpack.c.0.s8 %v548
    %v550 = vlaneseq
    %v551 = vshrl.u32 %v550, 7
    %v552 = vsub.s32 %v549, %v551
    %v553 = vrot.slane %v546, %v552
    %v554 = vcombine.low %v474, %v475
    %v556 = vunpack.c.l.s4 1983009808
    %v557 = vunpack.c.0.s8 %v556
    %v558 = vlaneseq
    %v559 = vshrl.u32 %v558, 7
    %v560 = vsub.s32 %v557, %v559
    %v561 = vrot.slane %v554, %v560
    %v562 = vcombine.low %v466, %v473
    %v564 = vunpack.c.l.s4 1983009808
    %v565 = vunpack.c.0.s8 %v564
    %v566 = vlaneseq
    %v567 = vshrl.u32 %v566, 7
    %v568 = vsub.s32 %v565, %v567
    %v569 = vrot.slane %v562, %v568
    %v570 = vcombine.low %v476, %v477
    %v572 = vunpack.c.l.s4 1983009808
    %v573 = vunpack.c.0.s8 %v572
    %v574 = vlaneseq
    %v575 = vshrl.u32 %v574, 7
    %v576 = vsub.s32 %v573, %v575
    %v577 = vrot.slane %v570, %v576
    %v578 = vcombine.low %v553, %v561
    %v579 = vcombine.high %v553, %v561
    %v581 = vunpack.c.l.s4 1934713408
    %v582 = vunpack.c.0.s8 %v581
    %v583 = vlaneseq
    %v584 = vshrl.u32 %v583, 7
    %v585 = vsub.s32 %v582, %v584
    %v586 = vrot.slane %v578, %v585
    %v588 = vunpack.c.l.s4 1934713408
    %v589 = vunpack.c.0.s8 %v588
    %v590 = vlaneseq
    %v591 = vshrl.u32 %v590, 7
    %v592 = vsub.s32 %v589, %v591
    %v593 = vrot.slane %v579, %v592
    %v594 = vcombine.low %v569, %v577
    %v595 = vcombine.high %v569, %v577
    %v597 = vunpack.c.l.s4 1934713408
    %v598 = vunpack.c.0.s8 %v597
    %v599 = vlaneseq
    %v600 = vshrl.u32 %v599, 7
    %v601 = vsub.s32 %v598, %v600
    %v602 = vrot.slane %v594, %v601
    %v604 = vunpack.c.l.s4 1934713408
    %v605 = vunpack.c.0.s8 %v604
    %v606 = vlaneseq
    %v607 = vshrl.u32 %v606, 7
    %v608 = vsub.s32 %v605, %v607
    %v609 = vrot.slane %v595, %v608
    %v610 = vcombine.low %v586, %v602
    %v611 = vcombine.high %v586, %v602
    %v612 = vcombine.low %v593, %v609
    %v613 = vcombine.high %v593, %v609
    %614 = vrot.lane.b32.xlu0 %v314, 96
    %v615 = vpop.permute.xlu0 %614
    %616 = vrot.lane.b32.xlu0 %v319, 96
    %v617 = vpop.permute.xlu0 %616
    %618 = vrot.lane.b32.xlu0 %v325, 96
    %v619 = vpop.permute.xlu0 %618
    %620 = vrot.lane.b32.xlu0 %v327, 96
    %v621 = vpop.permute.xlu0 %620
    %622 = vrot.lane.b32.xlu0 %v331, 96
    %v623 = vpop.permute.xlu0 %622
    %624 = vrot.lane.b32.xlu0 %v333, 96
    %v625 = vpop.permute.xlu0 %624
    %626 = vrot.lane.b32.xlu0 %v337, 96
    %v627 = vpop.permute.xlu0 %626
    %628 = vrot.lane.b32.xlu0 %v339, 96
    %v629 = vpop.permute.xlu0 %628
    %v638 = vcombine.low %v615, %v623
    %v639 = vcombine.high %v615, %v623
    %v641 = vunpack.c.l.s4 1983009808
    %v642 = vunpack.c.0.s8 %v641
    %v643 = vlaneseq
    %v644 = vshrl.u32 %v643, 7
    %v645 = vsub.s32 %v642, %v644
    %v646 = vrot.slane %v638, %v645
    %v648 = vunpack.c.l.s4 1983009808
    %v649 = vunpack.c.0.s8 %v648
    %v650 = vlaneseq
    %v651 = vshrl.u32 %v650, 7
    %v652 = vsub.s32 %v649, %v651
    %v653 = vrot.slane %v639, %v652
    %v654 = vcombine.low %v619, %v627
    %v655 = vcombine.high %v619, %v627
    %v657 = vunpack.c.l.s4 1983009808
    %v658 = vunpack.c.0.s8 %v657
    %v659 = vlaneseq
    %v660 = vshrl.u32 %v659, 7
    %v661 = vsub.s32 %v658, %v660
    %v662 = vrot.slane %v654, %v661
    %v664 = vunpack.c.l.s4 1983009808
    %v665 = vunpack.c.0.s8 %v664
    %v666 = vlaneseq
    %v667 = vshrl.u32 %v666, 7
    %v668 = vsub.s32 %v665, %v667
    %v669 = vrot.slane %v655, %v668
    %v670 = vcombine.low %v646, %v662
    %v671 = vcombine.high %v646, %v662
    %v673 = vunpack.c.l.s4 1934713408
    %v674 = vunpack.c.0.s8 %v673
    %v675 = vlaneseq
    %v676 = vshrl.u32 %v675, 7
    %v677 = vsub.s32 %v674, %v676
    %v678 = vrot.slane %v670, %v677
    %v680 = vunpack.c.l.s4 1934713408
    %v681 = vunpack.c.0.s8 %v680
    %v682 = vlaneseq
    %v683 = vshrl.u32 %v682, 7
    %v684 = vsub.s32 %v681, %v683
    %v685 = vrot.slane %v671, %v684
    %v686 = vcombine.low %v653, %v669
    %v687 = vcombine.high %v653, %v669
    %v689 = vunpack.c.l.s4 1934713408
    %v690 = vunpack.c.0.s8 %v689
    %v691 = vlaneseq
    %v692 = vshrl.u32 %v691, 7
    %v693 = vsub.s32 %v690, %v692
    %v694 = vrot.slane %v686, %v693
    %v696 = vunpack.c.l.s4 1934713408
    %v697 = vunpack.c.0.s8 %v696
    %v698 = vlaneseq
    %v699 = vshrl.u32 %v698, 7
    %v700 = vsub.s32 %v697, %v699
    %v701 = vrot.slane %v687, %v700
    %v702 = vcombine.high %v678, 0.0
    %v703 = vcombine.high %v685, 0.0
    %v704 = vcombine.high %v694, 0.0
    %v705 = vcombine.high %v701, 0.0
    %v706 = vcombine.low %v617, %v625
    %v707 = vcombine.high %v617, %v625
    %v709 = vunpack.c.l.s4 1983009808
    %v710 = vunpack.c.0.s8 %v709
    %v711 = vlaneseq
    %v712 = vshrl.u32 %v711, 7
    %v713 = vsub.s32 %v710, %v712
    %v714 = vrot.slane %v706, %v713
    %v716 = vunpack.c.l.s4 1983009808
    %v717 = vunpack.c.0.s8 %v716
    %v718 = vlaneseq
    %v719 = vshrl.u32 %v718, 7
    %v720 = vsub.s32 %v717, %v719
    %v721 = vrot.slane %v707, %v720
    %v722 = vcombine.low %v621, %v629
    %v723 = vcombine.high %v621, %v629
    %v725 = vunpack.c.l.s4 1983009808
    %v726 = vunpack.c.0.s8 %v725
    %v727 = vlaneseq
    %v728 = vshrl.u32 %v727, 7
    %v729 = vsub.s32 %v726, %v728
    %v730 = vrot.slane %v722, %v729
    %v732 = vunpack.c.l.s4 1983009808
    %v733 = vunpack.c.0.s8 %v732
    %v734 = vlaneseq
    %v735 = vshrl.u32 %v734, 7
    %v736 = vsub.s32 %v733, %v735
    %v737 = vrot.slane %v723, %v736
    %v738 = vcombine.low %v714, %v730
    %v739 = vcombine.high %v714, %v730
    %v741 = vunpack.c.l.s4 1934713408
    %v742 = vunpack.c.0.s8 %v741
    %v743 = vlaneseq
    %v744 = vshrl.u32 %v743, 7
    %v745 = vsub.s32 %v742, %v744
    %v746 = vrot.slane %v738, %v745
    %v748 = vunpack.c.l.s4 1934713408
    %v749 = vunpack.c.0.s8 %v748
    %v750 = vlaneseq
    %v751 = vshrl.u32 %v750, 7
    %v752 = vsub.s32 %v749, %v751
    %v753 = vrot.slane %v739, %v752
    %v754 = vcombine.low %v721, %v737
    %v755 = vcombine.high %v721, %v737
    %v757 = vunpack.c.l.s4 1934713408
    %v758 = vunpack.c.0.s8 %v757
    %v759 = vlaneseq
    %v760 = vshrl.u32 %v759, 7
    %v761 = vsub.s32 %v758, %v760
    %v762 = vrot.slane %v754, %v761
    %v764 = vunpack.c.l.s4 1934713408
    %v765 = vunpack.c.0.s8 %v764
    %v766 = vlaneseq
    %v767 = vshrl.u32 %v766, 7
    %v768 = vsub.s32 %v765, %v767
    %v769 = vrot.slane %v755, %v768
    %v770 = vcombine.high %v746, 0.0
    %v771 = vcombine.high %v753, 0.0
    %v772 = vcombine.high %v762, 0.0
    %v773 = vcombine.high %v769, 0.0
    %v774 = vcombine.low %v678, %v685
    %v776 = vunpack.c.l.s4 1983009808
    %v777 = vunpack.c.0.s8 %v776
    %v778 = vlaneseq
    %v779 = vshrl.u32 %v778, 7
    %v780 = vsub.s32 %v777, %v779
    %v781 = vrot.slane %v774, %v780
    %v782 = vcombine.low %v702, %v703
    %v784 = vunpack.c.l.s4 1983009808
    %v785 = vunpack.c.0.s8 %v784
    %v786 = vlaneseq
    %v787 = vshrl.u32 %v786, 7
    %v788 = vsub.s32 %v785, %v787
    %v789 = vrot.slane %v782, %v788
    %v790 = vcombine.low %v694, %v701
    %v792 = vunpack.c.l.s4 1983009808
    %v793 = vunpack.c.0.s8 %v792
    %v794 = vlaneseq
    %v795 = vshrl.u32 %v794, 7
    %v796 = vsub.s32 %v793, %v795
    %v797 = vrot.slane %v790, %v796
    %v798 = vcombine.low %v704, %v705
    %v800 = vunpack.c.l.s4 1983009808
    %v801 = vunpack.c.0.s8 %v800
    %v802 = vlaneseq
    %v803 = vshrl.u32 %v802, 7
    %v804 = vsub.s32 %v801, %v803
    %v805 = vrot.slane %v798, %v804
    %v806 = vcombine.low %v781, %v789
    %v807 = vcombine.high %v781, %v789
    %v809 = vunpack.c.l.s4 1934713408
    %v810 = vunpack.c.0.s8 %v809
    %v811 = vlaneseq
    %v812 = vshrl.u32 %v811, 7
    %v813 = vsub.s32 %v810, %v812
    %v814 = vrot.slane %v806, %v813
    %v816 = vunpack.c.l.s4 1934713408
    %v817 = vunpack.c.0.s8 %v816
    %v818 = vlaneseq
    %v819 = vshrl.u32 %v818, 7
    %v820 = vsub.s32 %v817, %v819
    %v821 = vrot.slane %v807, %v820
    %v822 = vcombine.low %v797, %v805
    %v823 = vcombine.high %v797, %v805
    %v825 = vunpack.c.l.s4 1934713408
    %v826 = vunpack.c.0.s8 %v825
    %v827 = vlaneseq
    %v828 = vshrl.u32 %v827, 7
    %v829 = vsub.s32 %v826, %v828
    %v830 = vrot.slane %v822, %v829
    %v832 = vunpack.c.l.s4 1934713408
    %v833 = vunpack.c.0.s8 %v832
    %v834 = vlaneseq
    %v835 = vshrl.u32 %v834, 7
    %v836 = vsub.s32 %v833, %v835
    %v837 = vrot.slane %v823, %v836
    %v838 = vcombine.low %v814, %v830
    %v839 = vcombine.high %v814, %v830
    %v840 = vcombine.low %v821, %v837
    %v841 = vcombine.high %v821, %v837
    %v842 = vcombine.low %v746, %v753
    %v844 = vunpack.c.l.s4 1983009808
    %v845 = vunpack.c.0.s8 %v844
    %v846 = vlaneseq
    %v847 = vshrl.u32 %v846, 7
    %v848 = vsub.s32 %v845, %v847
    %v849 = vrot.slane %v842, %v848
    %v850 = vcombine.low %v770, %v771
    %v852 = vunpack.c.l.s4 1983009808
    %v853 = vunpack.c.0.s8 %v852
    %v854 = vlaneseq
    %v855 = vshrl.u32 %v854, 7
    %v856 = vsub.s32 %v853, %v855
    %v857 = vrot.slane %v850, %v856
    %v858 = vcombine.low %v762, %v769
    %v860 = vunpack.c.l.s4 1983009808
    %v861 = vunpack.c.0.s8 %v860
    %v862 = vlaneseq
    %v863 = vshrl.u32 %v862, 7
    %v864 = vsub.s32 %v861, %v863
    %v865 = vrot.slane %v858, %v864
    %v866 = vcombine.low %v772, %v773
    %v868 = vunpack.c.l.s4 1983009808
    %v869 = vunpack.c.0.s8 %v868
    %v870 = vlaneseq
    %v871 = vshrl.u32 %v870, 7
    %v872 = vsub.s32 %v869, %v871
    %v873 = vrot.slane %v866, %v872
    %v874 = vcombine.low %v849, %v857
    %v875 = vcombine.high %v849, %v857
    %v877 = vunpack.c.l.s4 1934713408
    %v878 = vunpack.c.0.s8 %v877
    %v879 = vlaneseq
    %v880 = vshrl.u32 %v879, 7
    %v881 = vsub.s32 %v878, %v880
    %v882 = vrot.slane %v874, %v881
    %v884 = vunpack.c.l.s4 1934713408
    %v885 = vunpack.c.0.s8 %v884
    %v886 = vlaneseq
    %v887 = vshrl.u32 %v886, 7
    %v888 = vsub.s32 %v885, %v887
    %v889 = vrot.slane %v875, %v888
    %v890 = vcombine.low %v865, %v873
    %v891 = vcombine.high %v865, %v873
    %v893 = vunpack.c.l.s4 1934713408
    %v894 = vunpack.c.0.s8 %v893
    %v895 = vlaneseq
    %v896 = vshrl.u32 %v895, 7
    %v897 = vsub.s32 %v894, %v896
    %v898 = vrot.slane %v890, %v897
    %v900 = vunpack.c.l.s4 1934713408
    %v901 = vunpack.c.0.s8 %v900
    %v902 = vlaneseq
    %v903 = vshrl.u32 %v902, 7
    %v904 = vsub.s32 %v901, %v903
    %v905 = vrot.slane %v891, %v904
    %v906 = vcombine.low %v882, %v898
    %v907 = vcombine.high %v882, %v898
    %v908 = vcombine.low %v889, %v905
    %v909 = vcombine.high %v889, %v905
    %910 = vrot.lane.b32.xlu0 %v314, 64
    %v911 = vpop.permute.xlu0 %910
    %912 = vrot.lane.b32.xlu0 %v319, 64
    %v913 = vpop.permute.xlu0 %912
    %914 = vrot.lane.b32.xlu0 %v325, 64
    %v915 = vpop.permute.xlu0 %914
    %916 = vrot.lane.b32.xlu0 %v327, 64
    %v917 = vpop.permute.xlu0 %916
    %918 = vrot.lane.b32.xlu0 %v331, 64
    %v919 = vpop.permute.xlu0 %918
    %920 = vrot.lane.b32.xlu0 %v333, 64
    %v921 = vpop.permute.xlu0 %920
    %922 = vrot.lane.b32.xlu0 %v337, 64
    %v923 = vpop.permute.xlu0 %922
    %924 = vrot.lane.b32.xlu0 %v339, 64
    %v925 = vpop.permute.xlu0 %924
    %v934 = vcombine.low %v911, %v919
    %v935 = vcombine.high %v911, %v919
    %v937 = vunpack.c.l.s4 1983009808
    %v938 = vunpack.c.0.s8 %v937
    %v939 = vlaneseq
    %v940 = vshrl.u32 %v939, 7
    %v941 = vsub.s32 %v938, %v940
    %v942 = vrot.slane %v934, %v941
    %v944 = vunpack.c.l.s4 1983009808
    %v945 = vunpack.c.0.s8 %v944
    %v946 = vlaneseq
    %v947 = vshrl.u32 %v946, 7
    %v948 = vsub.s32 %v945, %v947
    %v949 = vrot.slane %v935, %v948
    %v950 = vcombine.low %v915, %v923
    %v951 = vcombine.high %v915, %v923
    %v953 = vunpack.c.l.s4 1983009808
    %v954 = vunpack.c.0.s8 %v953
    %v955 = vlaneseq
    %v956 = vshrl.u32 %v955, 7
    %v957 = vsub.s32 %v954, %v956
    %v958 = vrot.slane %v950, %v957
    %v960 = vunpack.c.l.s4 1983009808
    %v961 = vunpack.c.0.s8 %v960
    %v962 = vlaneseq
    %v963 = vshrl.u32 %v962, 7
    %v964 = vsub.s32 %v961, %v963
    %v965 = vrot.slane %v951, %v964
    %v966 = vcombine.low %v942, %v958
    %v967 = vcombine.high %v942, %v958
    %v969 = vunpack.c.l.s4 1934713408
    %v970 = vunpack.c.0.s8 %v969
    %v971 = vlaneseq
    %v972 = vshrl.u32 %v971, 7
    %v973 = vsub.s32 %v970, %v972
    %v974 = vrot.slane %v966, %v973
    %v976 = vunpack.c.l.s4 1934713408
    %v977 = vunpack.c.0.s8 %v976
    %v978 = vlaneseq
    %v979 = vshrl.u32 %v978, 7
    %v980 = vsub.s32 %v977, %v979
    %v981 = vrot.slane %v967, %v980
    %v982 = vcombine.low %v949, %v965
    %v983 = vcombine.high %v949, %v965
    %v985 = vunpack.c.l.s4 1934713408
    %v986 = vunpack.c.0.s8 %v985
    %v987 = vlaneseq
    %v988 = vshrl.u32 %v987, 7
    %v989 = vsub.s32 %v986, %v988
    %v990 = vrot.slane %v982, %v989
    %v992 = vunpack.c.l.s4 1934713408
    %v993 = vunpack.c.0.s8 %v992
    %v994 = vlaneseq
    %v995 = vshrl.u32 %v994, 7
    %v996 = vsub.s32 %v993, %v995
    %v997 = vrot.slane %v983, %v996
    %v998 = vcombine.high %v974, 0.0
    %v999 = vcombine.high %v981, 0.0
    %v1000 = vcombine.high %v990, 0.0
    %v1001 = vcombine.high %v997, 0.0
    %v1002 = vcombine.low %v913, %v921
    %v1003 = vcombine.high %v913, %v921
    %v1005 = vunpack.c.l.s4 1983009808
    %v1006 = vunpack.c.0.s8 %v1005
    %v1007 = vlaneseq
    %v1008 = vshrl.u32 %v1007, 7
    %v1009 = vsub.s32 %v1006, %v1008
    %v1010 = vrot.slane %v1002, %v1009
    %v1012 = vunpack.c.l.s4 1983009808
    %v1013 = vunpack.c.0.s8 %v1012
    %v1014 = vlaneseq
    %v1015 = vshrl.u32 %v1014, 7
    %v1016 = vsub.s32 %v1013, %v1015
    %v1017 = vrot.slane %v1003, %v1016
    %v1018 = vcombine.low %v917, %v925
    %v1019 = vcombine.high %v917, %v925
    %v1021 = vunpack.c.l.s4 1983009808
    %v1022 = vunpack.c.0.s8 %v1021
    %v1023 = vlaneseq
    %v1024 = vshrl.u32 %v1023, 7
    %v1025 = vsub.s32 %v1022, %v1024
    %v1026 = vrot.slane %v1018, %v1025
    %v1028 = vunpack.c.l.s4 1983009808
    %v1029 = vunpack.c.0.s8 %v1028
    %v1030 = vlaneseq
    %v1031 = vshrl.u32 %v1030, 7
    %v1032 = vsub.s32 %v1029, %v1031
    %v1033 = vrot.slane %v1019, %v1032
    %v1034 = vcombine.low %v1010, %v1026
    %v1035 = vcombine.high %v1010, %v1026
    %v1037 = vunpack.c.l.s4 1934713408
    %v1038 = vunpack.c.0.s8 %v1037
    %v1039 = vlaneseq
    %v1040 = vshrl.u32 %v1039, 7
    %v1041 = vsub.s32 %v1038, %v1040
    %v1042 = vrot.slane %v1034, %v1041
    %v1044 = vunpack.c.l.s4 1934713408
    %v1045 = vunpack.c.0.s8 %v1044
    %v1046 = vlaneseq
    %v1047 = vshrl.u32 %v1046, 7
    %v1048 = vsub.s32 %v1045, %v1047
    %v1049 = vrot.slane %v1035, %v1048
    %v1050 = vcombine.low %v1017, %v1033
    %v1051 = vcombine.high %v1017, %v1033
    %v1053 = vunpack.c.l.s4 1934713408
    %v1054 = vunpack.c.0.s8 %v1053
    %v1055 = vlaneseq
    %v1056 = vshrl.u32 %v1055, 7
    %v1057 = vsub.s32 %v1054, %v1056
    %v1058 = vrot.slane %v1050, %v1057
    %v1060 = vunpack.c.l.s4 1934713408
    %v1061 = vunpack.c.0.s8 %v1060
    %v1062 = vlaneseq
    %v1063 = vshrl.u32 %v1062, 7
    %v1064 = vsub.s32 %v1061, %v1063
    %v1065 = vrot.slane %v1051, %v1064
    %v1066 = vcombine.high %v1042, 0.0
    %v1067 = vcombine.high %v1049, 0.0
    %v1068 = vcombine.high %v1058, 0.0
    %v1069 = vcombine.high %v1065, 0.0
    %v1070 = vcombine.low %v974, %v981
    %v1072 = vunpack.c.l.s4 1983009808
    %v1073 = vunpack.c.0.s8 %v1072
    %v1074 = vlaneseq
    %v1075 = vshrl.u32 %v1074, 7
    %v1076 = vsub.s32 %v1073, %v1075
    %v1077 = vrot.slane %v1070, %v1076
    %v1078 = vcombine.low %v998, %v999
    %v1080 = vunpack.c.l.s4 1983009808
    %v1081 = vunpack.c.0.s8 %v1080
    %v1082 = vlaneseq
    %v1083 = vshrl.u32 %v1082, 7
    %v1084 = vsub.s32 %v1081, %v1083
    %v1085 = vrot.slane %v1078, %v1084
    %v1086 = vcombine.low %v990, %v997
    %v1088 = vunpack.c.l.s4 1983009808
    %v1089 = vunpack.c.0.s8 %v1088
    %v1090 = vlaneseq
    %v1091 = vshrl.u32 %v1090, 7
    %v1092 = vsub.s32 %v1089, %v1091
    %v1093 = vrot.slane %v1086, %v1092
    %v1094 = vcombine.low %v1000, %v1001
    %v1096 = vunpack.c.l.s4 1983009808
    %v1097 = vunpack.c.0.s8 %v1096
    %v1098 = vlaneseq
    %v1099 = vshrl.u32 %v1098, 7
    %v1100 = vsub.s32 %v1097, %v1099
    %v1101 = vrot.slane %v1094, %v1100
    %v1102 = vcombine.low %v1077, %v1085
    %v1103 = vcombine.high %v1077, %v1085
    %v1105 = vunpack.c.l.s4 1934713408
    %v1106 = vunpack.c.0.s8 %v1105
    %v1107 = vlaneseq
    %v1108 = vshrl.u32 %v1107, 7
    %v1109 = vsub.s32 %v1106, %v1108
    %v1110 = vrot.slane %v1102, %v1109
    %v1112 = vunpack.c.l.s4 1934713408
    %v1113 = vunpack.c.0.s8 %v1112
    %v1114 = vlaneseq
    %v1115 = vshrl.u32 %v1114, 7
    %v1116 = vsub.s32 %v1113, %v1115
    %v1117 = vrot.slane %v1103, %v1116
    %v1118 = vcombine.low %v1093, %v1101
    %v1119 = vcombine.high %v1093, %v1101
    %v1121 = vunpack.c.l.s4 1934713408
    %v1122 = vunpack.c.0.s8 %v1121
    %v1123 = vlaneseq
    %v1124 = vshrl.u32 %v1123, 7
    %v1125 = vsub.s32 %v1122, %v1124
    %v1126 = vrot.slane %v1118, %v1125
    %v1128 = vunpack.c.l.s4 1934713408
    %v1129 = vunpack.c.0.s8 %v1128
    %v1130 = vlaneseq
    %v1131 = vshrl.u32 %v1130, 7
    %v1132 = vsub.s32 %v1129, %v1131
    %v1133 = vrot.slane %v1119, %v1132
    %v1134 = vcombine.low %v1110, %v1126
    %v1135 = vcombine.high %v1110, %v1126
    %v1136 = vcombine.low %v1117, %v1133
    %v1137 = vcombine.high %v1117, %v1133
    %v1138 = vcombine.low %v1042, %v1049
    %v1140 = vunpack.c.l.s4 1983009808
    %v1141 = vunpack.c.0.s8 %v1140
    %v1142 = vlaneseq
    %v1143 = vshrl.u32 %v1142, 7
    %v1144 = vsub.s32 %v1141, %v1143
    %v1145 = vrot.slane %v1138, %v1144
    %v1146 = vcombine.low %v1066, %v1067
    %v1148 = vunpack.c.l.s4 1983009808
    %v1149 = vunpack.c.0.s8 %v1148
    %v1150 = vlaneseq
    %v1151 = vshrl.u32 %v1150, 7
    %v1152 = vsub.s32 %v1149, %v1151
    %v1153 = vrot.slane %v1146, %v1152
    %v1154 = vcombine.low %v1058, %v1065
    %v1156 = vunpack.c.l.s4 1983009808
    %v1157 = vunpack.c.0.s8 %v1156
    %v1158 = vlaneseq
    %v1159 = vshrl.u32 %v1158, 7
    %v1160 = vsub.s32 %v1157, %v1159
    %v1161 = vrot.slane %v1154, %v1160
    %v1162 = vcombine.low %v1068, %v1069
    %v1164 = vunpack.c.l.s4 1983009808
    %v1165 = vunpack.c.0.s8 %v1164
    %v1166 = vlaneseq
    %v1167 = vshrl.u32 %v1166, 7
    %v1168 = vsub.s32 %v1165, %v1167
    %v1169 = vrot.slane %v1162, %v1168
    %v1170 = vcombine.low %v1145, %v1153
    %v1171 = vcombine.high %v1145, %v1153
    %v1173 = vunpack.c.l.s4 1934713408
    %v1174 = vunpack.c.0.s8 %v1173
    %v1175 = vlaneseq
    %v1176 = vshrl.u32 %v1175, 7
    %v1177 = vsub.s32 %v1174, %v1176
    %v1178 = vrot.slane %v1170, %v1177
    %v1180 = vunpack.c.l.s4 1934713408
    %v1181 = vunpack.c.0.s8 %v1180
    %v1182 = vlaneseq
    %v1183 = vshrl.u32 %v1182, 7
    %v1184 = vsub.s32 %v1181, %v1183
    %v1185 = vrot.slane %v1171, %v1184
    %v1186 = vcombine.low %v1161, %v1169
    %v1187 = vcombine.high %v1161, %v1169
    %v1189 = vunpack.c.l.s4 1934713408
    %v1190 = vunpack.c.0.s8 %v1189
    %v1191 = vlaneseq
    %v1192 = vshrl.u32 %v1191, 7
    %v1193 = vsub.s32 %v1190, %v1192
    %v1194 = vrot.slane %v1186, %v1193
    %v1196 = vunpack.c.l.s4 1934713408
    %v1197 = vunpack.c.0.s8 %v1196
    %v1198 = vlaneseq
    %v1199 = vshrl.u32 %v1198, 7
    %v1200 = vsub.s32 %v1197, %v1199
    %v1201 = vrot.slane %v1187, %v1200
    %v1202 = vcombine.low %v1178, %v1194
    %v1203 = vcombine.high %v1178, %v1194
    %v1204 = vcombine.low %v1185, %v1201
    %v1205 = vcombine.high %v1185, %v1201
    %vm1206 = vcmask 64512
    %v1208 = vsel %vm1206, %v542, 0
    %v1211 = vsel %vm1206, %v610, 0
    %v1214 = vsel %vm1206, %v838, 0
    %v1217 = vsel %vm1206, %v906, 0
    %1219 = vmatprep.subr.mxu0 0.0
    %1220 = vmatpush1.xpose.msra.mxu0 %v1214
    %1221 = vmatprep.subr.mxu0 0.0
    %1222 = vmatpush1.xpose.msra.mxu0 %v1217
    %1223 = vmatprep.subr.mxu0 0.0
    %1224 = vmatpush1.xpose.msra.mxu0 0.0
    %1225 = vmatprep.subr.mxu0 0.0
    %1226 = vmatpush1.xpose.msra.mxu0 0.0
    %1227 = vmatprep.subr.mxu0 0.0
    %1228 = vmatpush1.xpose.msra.mxu0 0.0
    %1229 = vmatprep.subr.mxu0 0.0
    %1230 = vmatpush1.xpose.msra.mxu0 0.0
    %1231 = vmatprep.subr.mxu0 0.0
    %1232 = vmatpush1.xpose.msra.mxu0 0.0
    %1233 = vmatprep.subr.mxu0 0.0
    %1234 = vmatpush1.xpose.msra.mxu0 0.0
    %1235 = vmatprep.subr.mxu0 0.0
    %1236 = vmatpush1.xpose.msra.mxu0 0.0
    %1237 = vmatprep.subr.mxu0 0.0
    %1238 = vmatpush1.xpose.msra.mxu0 0.0
    %1239 = vmatprep.subr.mxu0 0.0
    %1240 = vmatpush1.xpose.msra.mxu0 0.0
    %1241 = vmatprep.subr.mxu0 0.0
    %1242 = vmatpush1.xpose.msra.mxu0 0.0
    %1243 = vmatprep.subr.mxu0 0.0
    %1244 = vmatpush1.xpose.msra.mxu0 0.0
    %1245 = vmatprep.subr.mxu0 0.0
    %1246 = vmatpush1.xpose.msra.mxu0 0.0
    %1247 = vmatprep.subr.mxu0 0.0
    %1248 = vmatpush1.xpose.msra.mxu0 0.0
    %1249 = vmatprep.subr.mxu0 0.0
    %1250 = vmatpush1.xpose.msra.mxu0 0.0
    %1251 = vmatprep.subr.mxu0 0.0
    %1252 = vmatpush1.xpose.msra.mxu0 0.0
    %1253 = vmatprep.subr.mxu0 0.0
    %1254 = vmatpush1.xpose.msra.mxu0 0.0
    %1255 = vmatprep.subr.mxu0 0.0
    %1256 = vmatpush1.xpose.msra.mxu0 0.0
    %1257 = vmatprep.subr.mxu0 0.0
    %1258 = vmatpush1.xpose.msra.mxu0 0.0
    %1259 = vmatprep.subr.mxu0 0.0
    %1260 = vmatpush1.xpose.msra.mxu0 0.0
    %1261 = vmatprep.subr.mxu0 0.0
    %1262 = vmatpush1.xpose.msra.mxu0 0.0
    %1263 = vmatprep.subr.mxu0 0.0
    %1264 = vmatpush1.xpose.msra.mxu0 0.0
    %1265 = vmatprep.subr.mxu0 0.0
    %1266 = vmatpush1.xpose.msra.mxu0 0.0
    %1267 = vmatprep.subr.mxu0 0.0
    %1268 = vmatpush1.xpose.msra.mxu0 0.0
    %1269 = vmatprep.subr.mxu0 0.0
    %1270 = vmatpush1.xpose.msra.mxu0 0.0
    %1271 = vmatprep.subr.mxu0 0.0
    %1272 = vmatpush1.xpose.msra.mxu0 0.0
    %1273 = vmatprep.subr.mxu0 0.0
    %1274 = vmatpush1.xpose.msra.mxu0 0.0
    %1275 = vmatprep.subr.mxu0 0.0
    %1276 = vmatpush1.xpose.msra.mxu0 0.0
    %1277 = vmatprep.subr.mxu0 0.0
    %1278 = vmatpush1.xpose.msra.mxu0 0.0
    %1279 = vmatprep.subr.mxu0 0.0
    %1280 = vmatpush1.xpose.msra.mxu0 0.0
    %1281 = vmatprep.subr.mxu0 0.0
    %1282 = vmatpush1.xpose.msra.mxu0 0.0
    %1283 = vmatprep.mubr.f32.mxu0 0.0
    %1284 = vmatmul.mubr.f32.gmra.mrb[0].mxu0 %v1208
    %v1285 = vpop.f32.mrb[0].mxu0
    %v1286 = vadd.f32 0.0, %v1285
    %v1287 = vpop.f32.mrb[0].mxu0
    %1288 = vmatprep.mubr.f32.mxu0 0.0
    %1289 = vmatmul.mubr.f32.gmra.mrb[0].mxu0 %v1211
    %v1290 = vpop.f32.mrb[0].mxu0
    %v1291 = vadd.f32 0.0, %v1290
    %v1292 = vpop.f32.mrb[0].mxu0
    %1293 = vdwg.mxu0
    %v1295 = vsel %vm1206, %v543, 0
    %v1298 = vsel %vm1206, %v611, 0
    %v1301 = vsel %vm1206, %v839, 0
    %v1304 = vsel %vm1206, %v907, 0
    %1306 = vmatprep.subr.mxu0 0.0
    %1307 = vmatpush1.xpose.msra.mxu0 %v1301
    %1308 = vmatprep.subr.mxu0 0.0
    %1309 = vmatpush1.xpose.msra.mxu0 %v1304
    %1310 = vmatprep.subr.mxu0 0.0
    %1311 = vmatpush1.xpose.msra.mxu0 0.0
    %1312 = vmatprep.subr.mxu0 0.0
    %1313 = vmatpush1.xpose.msra.mxu0 0.0
    %1314 = vmatprep.subr.mxu0 0.0
    %1315 = vmatpush1.xpose.msra.mxu0 0.0
    %1316 = vmatprep.subr.mxu0 0.0
    %1317 = vmatpush1.xpose.msra.mxu0 0.0
    %1318 = vmatprep.subr.mxu0 0.0
    %1319 = vmatpush1.xpose.msra.mxu0 0.0
    %1320 = vmatprep.subr.mxu0 0.0
    %1321 = vmatpush1.xpose.msra.mxu0 0.0
    %1322 = vmatprep.subr.mxu0 0.0
    %1323 = vmatpush1.xpose.msra.mxu0 0.0
    %1324 = vmatprep.subr.mxu0 0.0
    %1325 = vmatpush1.xpose.msra.mxu0 0.0
    %1326 = vmatprep.subr.mxu0 0.0
    %1327 = vmatpush1.xpose.msra.mxu0 0.0
    %1328 = vmatprep.subr.mxu0 0.0
    %1329 = vmatpush1.xpose.msra.mxu0 0.0
    %1330 = vmatprep.subr.mxu0 0.0
    %1331 = vmatpush1.xpose.msra.mxu0 0.0
    %1332 = vmatprep.subr.mxu0 0.0
    %1333 = vmatpush1.xpose.msra.mxu0 0.0
    %1334 = vmatprep.subr.mxu0 0.0
    %1335 = vmatpush1.xpose.msra.mxu0 0.0
    %1336 = vmatprep.subr.mxu0 0.0
    %1337 = vmatpush1.xpose.msra.mxu0 0.0
    %1338 = vmatprep.subr.mxu0 0.0
    %1339 = vmatpush1.xpose.msra.mxu0 0.0
    %1340 = vmatprep.subr.mxu0 0.0
    %1341 = vmatpush1.xpose.msra.mxu0 0.0
    %1342 = vmatprep.subr.mxu0 0.0
    %1343 = vmatpush1.xpose.msra.mxu0 0.0
    %1344 = vmatprep.subr.mxu0 0.0
    %1345 = vmatpush1.xpose.msra.mxu0 0.0
    %1346 = vmatprep.subr.mxu0 0.0
    %1347 = vmatpush1.xpose.msra.mxu0 0.0
    %1348 = vmatprep.subr.mxu0 0.0
    %1349 = vmatpush1.xpose.msra.mxu0 0.0
    %1350 = vmatprep.subr.mxu0 0.0
    %1351 = vmatpush1.xpose.msra.mxu0 0.0
    %1352 = vmatprep.subr.mxu0 0.0
    %1353 = vmatpush1.xpose.msra.mxu0 0.0
    %1354 = vmatprep.subr.mxu0 0.0
    %1355 = vmatpush1.xpose.msra.mxu0 0.0
    %1356 = vmatprep.subr.mxu0 0.0
    %1357 = vmatpush1.xpose.msra.mxu0 0.0
    %1358 = vmatprep.subr.mxu0 0.0
    %1359 = vmatpush1.xpose.msra.mxu0 0.0
    %1360 = vmatprep.subr.mxu0 0.0
    %1361 = vmatpush1.xpose.msra.mxu0 0.0
    %1362 = vmatprep.subr.mxu0 0.0
    %1363 = vmatpush1.xpose.msra.mxu0 0.0
    %1364 = vmatprep.subr.mxu0 0.0
    %1365 = vmatpush1.xpose.msra.mxu0 0.0
    %1366 = vmatprep.subr.mxu0 0.0
    %1367 = vmatpush1.xpose.msra.mxu0 0.0
    %1368 = vmatprep.subr.mxu0 0.0
    %1369 = vmatpush1.xpose.msra.mxu0 0.0
    %1370 = vmatprep.mubr.f32.mxu0 0.0
    %1371 = vmatmul.mubr.f32.gmra.mrb[0].mxu0 %v1295
    %v1372 = vpop.f32.mrb[0].mxu0
    %v1373 = vadd.f32 0.0, %v1372
    %v1374 = vpop.f32.mrb[0].mxu0
    %1375 = vmatprep.mubr.f32.mxu0 0.0
    %1376 = vmatmul.mubr.f32.gmra.mrb[0].mxu0 %v1298
    %v1377 = vpop.f32.mrb[0].mxu0
    %v1378 = vadd.f32 0.0, %v1377
    %v1379 = vpop.f32.mrb[0].mxu0
    %1380 = vdwg.mxu0
    %v1382 = vsel %vm1206, %v544, 0
    %v1385 = vsel %vm1206, %v612, 0
    %v1388 = vsel %vm1206, %v840, 0
    %v1391 = vsel %vm1206, %v908, 0
    %1393 = vmatprep.subr.mxu0 0.0
    %1394 = vmatpush1.xpose.msra.mxu0 %v1388
    %1395 = vmatprep.subr.mxu0 0.0
    %1396 = vmatpush1.xpose.msra.mxu0 %v1391
    %1397 = vmatprep.subr.mxu0 0.0
    %1398 = vmatpush1.xpose.msra.mxu0 0.0
    %1399 = vmatprep.subr.mxu0 0.0
    %1400 = vmatpush1.xpose.msra.mxu0 0.0
    %1401 = vmatprep.subr.mxu0 0.0
    %1402 = vmatpush1.xpose.msra.mxu0 0.0
    %1403 = vmatprep.subr.mxu0 0.0
    %1404 = vmatpush1.xpose.msra.mxu0 0.0
    %1405 = vmatprep.subr.mxu0 0.0
    %1406 = vmatpush1.xpose.msra.mxu0 0.0
    %1407 = vmatprep.subr.mxu0 0.0
    %1408 = vmatpush1.xpose.msra.mxu0 0.0
    %1409 = vmatprep.subr.mxu0 0.0
    %1410 = vmatpush1.xpose.msra.mxu0 0.0
    %1411 = vmatprep.subr.mxu0 0.0
    %1412 = vmatpush1.xpose.msra.mxu0 0.0
    %1413 = vmatprep.subr.mxu0 0.0
    %1414 = vmatpush1.xpose.msra.mxu0 0.0
    %1415 = vmatprep.subr.mxu0 0.0
    %1416 = vmatpush1.xpose.msra.mxu0 0.0
    %1417 = vmatprep.subr.mxu0 0.0
    %1418 = vmatpush1.xpose.msra.mxu0 0.0
    %1419 = vmatprep.subr.mxu0 0.0
    %1420 = vmatpush1.xpose.msra.mxu0 0.0
    %1421 = vmatprep.subr.mxu0 0.0
    %1422 = vmatpush1.xpose.msra.mxu0 0.0
    %1423 = vmatprep.subr.mxu0 0.0
    %1424 = vmatpush1.xpose.msra.mxu0 0.0
    %1425 = vmatprep.subr.mxu0 0.0
    %1426 = vmatpush1.xpose.msra.mxu0 0.0
    %1427 = vmatprep.subr.mxu0 0.0
    %1428 = vmatpush1.xpose.msra.mxu0 0.0
    %1429 = vmatprep.subr.mxu0 0.0
    %1430 = vmatpush1.xpose.msra.mxu0 0.0
    %1431 = vmatprep.subr.mxu0 0.0
    %1432 = vmatpush1.xpose.msra.mxu0 0.0
    %1433 = vmatprep.subr.mxu0 0.0
    %1434 = vmatpush1.xpose.msra.mxu0 0.0
    %1435 = vmatprep.subr.mxu0 0.0
    %1436 = vmatpush1.xpose.msra.mxu0 0.0
    %1437 = vmatprep.subr.mxu0 0.0
    %1438 = vmatpush1.xpose.msra.mxu0 0.0
    %1439 = vmatprep.subr.mxu0 0.0
    %1440 = vmatpush1.xpose.msra.mxu0 0.0
    %1441 = vmatprep.subr.mxu0 0.0
    %1442 = vmatpush1.xpose.msra.mxu0 0.0
    %1443 = vmatprep.subr.mxu0 0.0
    %1444 = vmatpush1.xpose.msra.mxu0 0.0
    %1445 = vmatprep.subr.mxu0 0.0
    %1446 = vmatpush1.xpose.msra.mxu0 0.0
    %1447 = vmatprep.subr.mxu0 0.0
    %1448 = vmatpush1.xpose.msra.mxu0 0.0
    %1449 = vmatprep.subr.mxu0 0.0
    %1450 = vmatpush1.xpose.msra.mxu0 0.0
    %1451 = vmatprep.subr.mxu0 0.0
    %1452 = vmatpush1.xpose.msra.mxu0 0.0
    %1453 = vmatprep.subr.mxu0 0.0
    %1454 = vmatpush1.xpose.msra.mxu0 0.0
    %1455 = vmatprep.subr.mxu0 0.0
    %1456 = vmatpush1.xpose.msra.mxu0 0.0
    %1457 = vmatprep.mubr.f32.mxu0 0.0
    %1458 = vmatmul.mubr.f32.gmra.mrb[0].mxu0 %v1382
    %v1459 = vpop.f32.mrb[0].mxu0
    %v1460 = vadd.f32 0.0, %v1459
    %v1461 = vpop.f32.mrb[0].mxu0
    %1462 = vmatprep.mubr.f32.mxu0 0.0
    %1463 = vmatmul.mubr.f32.gmra.mrb[0].mxu0 %v1385
    %v1464 = vpop.f32.mrb[0].mxu0
    %v1465 = vadd.f32 0.0, %v1464
    %v1466 = vpop.f32.mrb[0].mxu0
    %1467 = vdwg.mxu0
    %v1469 = vsel %vm1206, %v545, 0
    %v1472 = vsel %vm1206, %v613, 0
    %v1475 = vsel %vm1206, %v841, 0
    %v1478 = vsel %vm1206, %v909, 0
    %1480 = vmatprep.subr.mxu0 0.0
    %1481 = vmatpush1.xpose.msra.mxu0 %v1475
    %1482 = vmatprep.subr.mxu0 0.0
    %1483 = vmatpush1.xpose.msra.mxu0 %v1478
    %1484 = vmatprep.subr.mxu0 0.0
    %1485 = vmatpush1.xpose.msra.mxu0 0.0
    %1486 = vmatprep.subr.mxu0 0.0
    %1487 = vmatpush1.xpose.msra.mxu0 0.0
    %1488 = vmatprep.subr.mxu0 0.0
    %1489 = vmatpush1.xpose.msra.mxu0 0.0
    %1490 = vmatprep.subr.mxu0 0.0
    %1491 = vmatpush1.xpose.msra.mxu0 0.0
    %1492 = vmatprep.subr.mxu0 0.0
    %1493 = vmatpush1.xpose.msra.mxu0 0.0
    %1494 = vmatprep.subr.mxu0 0.0
    %1495 = vmatpush1.xpose.msra.mxu0 0.0
    %1496 = vmatprep.subr.mxu0 0.0
    %1497 = vmatpush1.xpose.msra.mxu0 0.0
    %1498 = vmatprep.subr.mxu0 0.0
    %1499 = vmatpush1.xpose.msra.mxu0 0.0
    %1500 = vmatprep.subr.mxu0 0.0
    %1501 = vmatpush1.xpose.msra.mxu0 0.0
    %1502 = vmatprep.subr.mxu0 0.0
    %1503 = vmatpush1.xpose.msra.mxu0 0.0
    %1504 = vmatprep.subr.mxu0 0.0
    %1505 = vmatpush1.xpose.msra.mxu0 0.0
    %1506 = vmatprep.subr.mxu0 0.0
    %1507 = vmatpush1.xpose.msra.mxu0 0.0
    %1508 = vmatprep.subr.mxu0 0.0
    %1509 = vmatpush1.xpose.msra.mxu0 0.0
    %1510 = vmatprep.subr.mxu0 0.0
    %1511 = vmatpush1.xpose.msra.mxu0 0.0
    %1512 = vmatprep.subr.mxu0 0.0
    %1513 = vmatpush1.xpose.msra.mxu0 0.0
    %1514 = vmatprep.subr.mxu0 0.0
    %1515 = vmatpush1.xpose.msra.mxu0 0.0
    %1516 = vmatprep.subr.mxu0 0.0
    %1517 = vmatpush1.xpose.msra.mxu0 0.0
    %1518 = vmatprep.subr.mxu0 0.0
    %1519 = vmatpush1.xpose.msra.mxu0 0.0
    %1520 = vmatprep.subr.mxu0 0.0
    %1521 = vmatpush1.xpose.msra.mxu0 0.0
    %1522 = vmatprep.subr.mxu0 0.0
    %1523 = vmatpush1.xpose.msra.mxu0 0.0
    %1524 = vmatprep.subr.mxu0 0.0
    %1525 = vmatpush1.xpose.msra.mxu0 0.0
    %1526 = vmatprep.subr.mxu0 0.0
    %1527 = vmatpush1.xpose.msra.mxu0 0.0
    %1528 = vmatprep.subr.mxu0 0.0
    %1529 = vmatpush1.xpose.msra.mxu0 0.0
    %1530 = vmatprep.subr.mxu0 0.0
    %1531 = vmatpush1.xpose.msra.mxu0 0.0
    %1532 = vmatprep.subr.mxu0 0.0
    %1533 = vmatpush1.xpose.msra.mxu0 0.0
    %1534 = vmatprep.subr.mxu0 0.0
    %1535 = vmatpush1.xpose.msra.mxu0 0.0
    %1536 = vmatprep.subr.mxu0 0.0
    %1537 = vmatpush1.xpose.msra.mxu0 0.0
    %1538 = vmatprep.subr.mxu0 0.0
    %1539 = vmatpush1.xpose.msra.mxu0 0.0
    %1540 = vmatprep.subr.mxu0 0.0
    %1541 = vmatpush1.xpose.msra.mxu0 0.0
    %1542 = vmatprep.subr.mxu0 0.0
    %1543 = vmatpush1.xpose.msra.mxu0 0.0
    %1544 = vmatprep.mubr.f32.mxu0 0.0
    %1545 = vmatmul.mubr.f32.gmra.mrb[0].mxu0 %v1469
    %v1546 = vpop.f32.mrb[0].mxu0
    %v1547 = vadd.f32 0.0, %v1546
    %v1548 = vpop.f32.mrb[0].mxu0
    %1549 = vmatprep.mubr.f32.mxu0 0.0
    %1550 = vmatmul.mubr.f32.gmra.mrb[0].mxu0 %v1472
    %v1551 = vpop.f32.mrb[0].mxu0
    %v1552 = vadd.f32 0.0, %v1551
    %v1553 = vpop.f32.mrb[0].mxu0
    %1554 = vdwg.mxu0
    %v1555 = vmul.f32 %v1286, 0.35355338
    %v1556 = vmul.f32 %v1291, 0.35355338
    %v1557 = vmul.f32 %v1373, 0.35355338
    %v1558 = vmul.f32 %v1378, 0.35355338
    %v1559 = vmul.f32 %v1460, 0.35355338
    %v1560 = vmul.f32 %v1465, 0.35355338
    %v1561 = vmul.f32 %v1547, 0.35355338
    %v1562 = vmul.f32 %v1552, 0.35355338
    %v1563 = vsel %vm227, 1, 0
    %v1564 = vsel %vm228, 1, 0
    %vm1565 = vcmp.eq.s32.totalorder %v1563, 1
    %vm1566 = vcmp.eq.s32.totalorder %v1564, 1
    %v1567 = vsel %vm1565, %v1555, -1e+30
    %v1568 = vsel %vm1566, %v1556, -1e+30
    %v1569 = vsel %vm1565, %v1557, -1e+30
    %v1570 = vsel %vm1566, %v1558, -1e+30
    %v1571 = vsel %vm1565, %v1559, -1e+30
    %v1572 = vsel %vm1566, %v1560, -1e+30
    %v1573 = vsel %vm1565, %v1561, -1e+30
    %v1574 = vsel %vm1566, %v1562, -1e+30
    %vm1575 = vcmask 130048
    %v1576 = vsel %vm1575, %v1567, -inf
    %1577 = vmax.xlane.f32.xlu0 %v1576
    %v1578 = vpop.xlane.xlu0 %1577
    %v1579 = vsel %vm1575, %v1568, -inf
    %1580 = vmax.xlane.f32.xlu0 %v1579
    %v1581 = vpop.xlane.xlu0 %1580
    %v1582 = vsel %vm1575, %v1569, -inf
    %1583 = vmax.xlane.f32.xlu0 %v1582
    %v1584 = vpop.xlane.xlu0 %1583
    %v1585 = vsel %vm1575, %v1570, -inf
    %1586 = vmax.xlane.f32.xlu0 %v1585
    %v1587 = vpop.xlane.xlu0 %1586
    %v1588 = vsel %vm1575, %v1571, -inf
    %1589 = vmax.xlane.f32.xlu0 %v1588
    %v1590 = vpop.xlane.xlu0 %1589
    %v1591 = vsel %vm1575, %v1572, -inf
    %1592 = vmax.xlane.f32.xlu0 %v1591
    %v1593 = vpop.xlane.xlu0 %1592
    %v1594 = vsel %vm1575, %v1573, -inf
    %1595 = vmax.xlane.f32.xlu0 %v1594
    %v1596 = vpop.xlane.xlu0 %1595
    %v1597 = vsel %vm1575, %v1574, -inf
    %1598 = vmax.xlane.f32.xlu0 %v1597
    %v1599 = vpop.xlane.xlu0 %1598
    %v1600 = vsub.f32 %v1567, %v1578
    %v1601 = vsub.f32 %v1568, %v1581
    %v1602 = vsub.f32 %v1569, %v1584
    %v1603 = vsub.f32 %v1570, %v1587
    %v1604 = vsub.f32 %v1571, %v1590
    %v1605 = vsub.f32 %v1572, %v1593
    %v1606 = vsub.f32 %v1573, %v1596
    %v1607 = vsub.f32 %v1574, %v1599
    %v1608 = vmul.f32 %v1600, 1.442695
    %v1609 = vpow.pop %v1608
    %v1610 = vmul.f32 %v1601, 1.442695
    %v1611 = vpow.pop %v1610
    %v1612 = vmul.f32 %v1602, 1.442695
    %v1613 = vpow.pop %v1612
    %v1614 = vmul.f32 %v1603, 1.442695
    %v1615 = vpow.pop %v1614
    %v1616 = vmul.f32 %v1604, 1.442695
    %v1617 = vpow.pop %v1616
    %v1618 = vmul.f32 %v1605, 1.442695
    %v1619 = vpow.pop %v1618
    %v1620 = vmul.f32 %v1606, 1.442695
    %v1621 = vpow.pop %v1620
    %v1622 = vmul.f32 %v1607, 1.442695
    %v1623 = vpow.pop %v1622
    %v1624 = vsel %vm1575, %v1609, 0.0
    %1625 = vadd.xlane.f32.xlu0 %v1624
    %v1626 = vpop.xlane.xlu0 %1625
    %v1627 = vsel %vm1575, %v1611, 0.0
    %1628 = vadd.xlane.f32.xlu0 %v1627
    %v1629 = vpop.xlane.xlu0 %1628
    %v1630 = vsel %vm1575, %v1613, 0.0
    %1631 = vadd.xlane.f32.xlu0 %v1630
    %v1632 = vpop.xlane.xlu0 %1631
    %v1633 = vsel %vm1575, %v1615, 0.0
    %1634 = vadd.xlane.f32.xlu0 %v1633
    %v1635 = vpop.xlane.xlu0 %1634
    %v1636 = vsel %vm1575, %v1617, 0.0
    %1637 = vadd.xlane.f32.xlu0 %v1636
    %v1638 = vpop.xlane.xlu0 %1637
    %v1639 = vsel %vm1575, %v1619, 0.0
    %1640 = vadd.xlane.f32.xlu0 %v1639
    %v1641 = vpop.xlane.xlu0 %1640
    %v1642 = vsel %vm1575, %v1621, 0.0
    %1643 = vadd.xlane.f32.xlu0 %v1642
    %v1644 = vpop.xlane.xlu0 %1643
    %v1645 = vsel %vm1575, %v1623, 0.0
    %1646 = vadd.xlane.f32.xlu0 %v1645
    %v1647 = vpop.xlane.xlu0 %1646
    %v1648 = vrcp.pop %v1626
    %v1649 = vmul.f32 %v1609, %v1648
    %v1650 = vrcp.pop %v1629
    %v1651 = vmul.f32 %v1611, %v1650
    %v1652 = vrcp.pop %v1632
    %v1653 = vmul.f32 %v1613, %v1652
    %v1654 = vrcp.pop %v1635
    %v1655 = vmul.f32 %v1615, %v1654
    %v1656 = vrcp.pop %v1638
    %v1657 = vmul.f32 %v1617, %v1656
    %v1658 = vrcp.pop %v1641
    %v1659 = vmul.f32 %v1619, %v1658
    %v1660 = vrcp.pop %v1644
    %v1661 = vmul.f32 %v1621, %v1660
    %v1662 = vrcp.pop %v1647
    %v1663 = vmul.f32 %v1623, %v1662
    %v1665 = vsel %vm1575, %v1649, 0
    %v1668 = vsel %vm1575, %v1651, 0
    %1670 = vmatprep.subr.mxu0 0.0
    %1671 = vmatpush1.msra.mxu0 %v1134
    %1672 = vmatprep.subr.mxu0 0.0
    %1673 = vmatpush1.msra.mxu0 %v1202
    %1674 = vmatprep.subr.mxu0 0.0
    %1675 = vmatpush1.msra.mxu0 0.0
    %1676 = vmatprep.subr.mxu0 0.0
    %1677 = vmatpush1.msra.mxu0 0.0
    %1678 = vmatprep.subr.mxu0 0.0
    %1679 = vmatpush1.msra.mxu0 0.0
    %1680 = vmatprep.subr.mxu0 0.0
    %1681 = vmatpush1.msra.mxu0 0.0
    %1682 = vmatprep.subr.mxu0 0.0
    %1683 = vmatpush1.msra.mxu0 0.0
    %1684 = vmatprep.subr.mxu0 0.0
    %1685 = vmatpush1.msra.mxu0 0.0
    %1686 = vmatprep.subr.mxu0 0.0
    %1687 = vmatpush1.msra.mxu0 0.0
    %1688 = vmatprep.subr.mxu0 0.0
    %1689 = vmatpush1.msra.mxu0 0.0
    %1690 = vmatprep.subr.mxu0 0.0
    %1691 = vmatpush1.msra.mxu0 0.0
    %1692 = vmatprep.subr.mxu0 0.0
    %1693 = vmatpush1.msra.mxu0 0.0
    %1694 = vmatprep.subr.mxu0 0.0
    %1695 = vmatpush1.msra.mxu0 0.0
    %1696 = vmatprep.subr.mxu0 0.0
    %1697 = vmatpush1.msra.mxu0 0.0
    %1698 = vmatprep.subr.mxu0 0.0
    %1699 = vmatpush1.msra.mxu0 0.0
    %1700 = vmatprep.subr.mxu0 0.0
    %1701 = vmatpush1.msra.mxu0 0.0
    %1702 = vmatprep.subr.mxu0 0.0
    %1703 = vmatpush1.msra.mxu0 0.0
    %1704 = vmatprep.subr.mxu0 0.0
    %1705 = vmatpush1.msra.mxu0 0.0
    %1706 = vmatprep.subr.mxu0 0.0
    %1707 = vmatpush1.msra.mxu0 0.0
    %1708 = vmatprep.subr.mxu0 0.0
    %1709 = vmatpush1.msra.mxu0 0.0
    %1710 = vmatprep.subr.mxu0 0.0
    %1711 = vmatpush1.msra.mxu0 0.0
    %1712 = vmatprep.subr.mxu0 0.0
    %1713 = vmatpush1.msra.mxu0 0.0
    %1714 = vmatprep.subr.mxu0 0.0
    %1715 = vmatpush1.msra.mxu0 0.0
    %1716 = vmatprep.subr.mxu0 0.0
    %1717 = vmatpush1.msra.mxu0 0.0
    %1718 = vmatprep.subr.mxu0 0.0
    %1719 = vmatpush1.msra.mxu0 0.0
    %1720 = vmatprep.subr.mxu0 0.0
    %1721 = vmatpush1.msra.mxu0 0.0
    %1722 = vmatprep.subr.mxu0 0.0
    %1723 = vmatpush1.msra.mxu0 0.0
    %1724 = vmatprep.subr.mxu0 0.0
    %1725 = vmatpush1.msra.mxu0 0.0
    %1726 = vmatprep.subr.mxu0 0.0
    %1727 = vmatpush1.msra.mxu0 0.0
    %1728 = vmatprep.subr.mxu0 0.0
    %1729 = vmatpush1.msra.mxu0 0.0
    %1730 = vmatprep.subr.mxu0 0.0
    %1731 = vmatpush1.msra.mxu0 0.0
    %1732 = vmatprep.subr.mxu0 0.0
    %1733 = vmatpush1.msra.mxu0 0.0
    %1734 = vmatprep.mubr.f32.mxu0 0.0
    %1735 = vmatmul.mubr.f32.gmra.mrb[0].mxu0 %v1665
    %v1736 = vpop.f32.mrb[0].mxu0
    %v1737 = vadd.f32 0.0, %v1736
    %v1738 = vpop.f32.mrb[0].mxu0
    %1739 = vmatprep.mubr.f32.mxu0 0.0
    %1740 = vmatmul.mubr.f32.gmra.mrb[0].mxu0 %v1668
    %v1741 = vpop.f32.mrb[0].mxu0
    %v1742 = vadd.f32 0.0, %v1741
    %v1743 = vpop.f32.mrb[0].mxu0
    %1744 = vdwg.mxu0
    %v1746 = vsel %vm1575, %v1653, 0
    %v1749 = vsel %vm1575, %v1655, 0
    %1751 = vmatprep.subr.mxu0 0.0
    %1752 = vmatpush1.msra.mxu0 %v1135
    %1753 = vmatprep.subr.mxu0 0.0
    %1754 = vmatpush1.msra.mxu0 %v1203
    %1755 = vmatprep.subr.mxu0 0.0
    %1756 = vmatpush1.msra.mxu0 0.0
    %1757 = vmatprep.subr.mxu0 0.0
    %1758 = vmatpush1.msra.mxu0 0.0
    %1759 = vmatprep.subr.mxu0 0.0
    %1760 = vmatpush1.msra.mxu0 0.0
    %1761 = vmatprep.subr.mxu0 0.0
    %1762 = vmatpush1.msra.mxu0 0.0
    %1763 = vmatprep.subr.mxu0 0.0
    %1764 = vmatpush1.msra.mxu0 0.0
    %1765 = vmatprep.subr.mxu0 0.0
    %1766 = vmatpush1.msra.mxu0 0.0
    %1767 = vmatprep.subr.mxu0 0.0
    %1768 = vmatpush1.msra.mxu0 0.0
    %1769 = vmatprep.subr.mxu0 0.0
    %1770 = vmatpush1.msra.mxu0 0.0
    %1771 = vmatprep.subr.mxu0 0.0
    %1772 = vmatpush1.msra.mxu0 0.0
    %1773 = vmatprep.subr.mxu0 0.0
    %1774 = vmatpush1.msra.mxu0 0.0
    %1775 = vmatprep.subr.mxu0 0.0
    %1776 = vmatpush1.msra.mxu0 0.0
    %1777 = vmatprep.subr.mxu0 0.0
    %1778 = vmatpush1.msra.mxu0 0.0
    %1779 = vmatprep.subr.mxu0 0.0
    %1780 = vmatpush1.msra.mxu0 0.0
    %1781 = vmatprep.subr.mxu0 0.0
    %1782 = vmatpush1.msra.mxu0 0.0
    %1783 = vmatprep.subr.mxu0 0.0
    %1784 = vmatpush1.msra.mxu0 0.0
    %1785 = vmatprep.subr.mxu0 0.0
    %1786 = vmatpush1.msra.mxu0 0.0
    %1787 = vmatprep.subr.mxu0 0.0
    %1788 = vmatpush1.msra.mxu0 0.0
    %1789 = vmatprep.subr.mxu0 0.0
    %1790 = vmatpush1.msra.mxu0 0.0
    %1791 = vmatprep.subr.mxu0 0.0
    %1792 = vmatpush1.msra.mxu0 0.0
    %1793 = vmatprep.subr.mxu0 0.0
    %1794 = vmatpush1.msra.mxu0 0.0
    %1795 = vmatprep.subr.mxu0 0.0
    %1796 = vmatpush1.msra.mxu0 0.0
    %1797 = vmatprep.subr.mxu0 0.0
    %1798 = vmatpush1.msra.mxu0 0.0
    %1799 = vmatprep.subr.mxu0 0.0
    %1800 = vmatpush1.msra.mxu0 0.0
    %1801 = vmatprep.subr.mxu0 0.0
    %1802 = vmatpush1.msra.mxu0 0.0
    %1803 = vmatprep.subr.mxu0 0.0
    %1804 = vmatpush1.msra.mxu0 0.0
    %1805 = vmatprep.subr.mxu0 0.0
    %1806 = vmatpush1.msra.mxu0 0.0
    %1807 = vmatprep.subr.mxu0 0.0
    %1808 = vmatpush1.msra.mxu0 0.0
    %1809 = vmatprep.subr.mxu0 0.0
    %1810 = vmatpush1.msra.mxu0 0.0
    %1811 = vmatprep.subr.mxu0 0.0
    %1812 = vmatpush1.msra.mxu0 0.0
    %1813 = vmatprep.subr.mxu0 0.0
    %1814 = vmatpush1.msra.mxu0 0.0
    %1815 = vmatprep.mubr.f32.mxu0 0.0
    %1816 = vmatmul.mubr.f32.gmra.mrb[0].mxu0 %v1746
    %v1817 = vpop.f32.mrb[0].mxu0
    %v1818 = vadd.f32 0.0, %v1817
    %v1819 = vpop.f32.mrb[0].mxu0
    %1820 = vmatprep.mubr.f32.mxu0 0.0
    %1821 = vmatmul.mubr.f32.gmra.mrb[0].mxu0 %v1749
    %v1822 = vpop.f32.mrb[0].mxu0
    %v1823 = vadd.f32 0.0, %v1822
    %v1824 = vpop.f32.mrb[0].mxu0
    %1825 = vdwg.mxu0
    %v1827 = vsel %vm1575, %v1657, 0
    %v1830 = vsel %vm1575, %v1659, 0
    %1832 = vmatprep.subr.mxu0 0.0
    %1833 = vmatpush1.msra.mxu0 %v1136
    %1834 = vmatprep.subr.mxu0 0.0
    %1835 = vmatpush1.msra.mxu0 %v1204
    %1836 = vmatprep.subr.mxu0 0.0
    %1837 = vmatpush1.msra.mxu0 0.0
    %1838 = vmatprep.subr.mxu0 0.0
    %1839 = vmatpush1.msra.mxu0 0.0
    %1840 = vmatprep.subr.mxu0 0.0
    %1841 = vmatpush1.msra.mxu0 0.0
    %1842 = vmatprep.subr.mxu0 0.0
    %1843 = vmatpush1.msra.mxu0 0.0
    %1844 = vmatprep.subr.mxu0 0.0
    %1845 = vmatpush1.msra.mxu0 0.0
    %1846 = vmatprep.subr.mxu0 0.0
    %1847 = vmatpush1.msra.mxu0 0.0
    %1848 = vmatprep.subr.mxu0 0.0
    %1849 = vmatpush1.msra.mxu0 0.0
    %1850 = vmatprep.subr.mxu0 0.0
    %1851 = vmatpush1.msra.mxu0 0.0
    %1852 = vmatprep.subr.mxu0 0.0
    %1853 = vmatpush1.msra.mxu0 0.0
    %1854 = vmatprep.subr.mxu0 0.0
    %1855 = vmatpush1.msra.mxu0 0.0
    %1856 = vmatprep.subr.mxu0 0.0
    %1857 = vmatpush1.msra.mxu0 0.0
    %1858 = vmatprep.subr.mxu0 0.0
    %1859 = vmatpush1.msra.mxu0 0.0
    %1860 = vmatprep.subr.mxu0 0.0
    %1861 = vmatpush1.msra.mxu0 0.0
    %1862 = vmatprep.subr.mxu0 0.0
    %1863 = vmatpush1.msra.mxu0 0.0
    %1864 = vmatprep.subr.mxu0 0.0
    %1865 = vmatpush1.msra.mxu0 0.0
    %1866 = vmatprep.subr.mxu0 0.0
    %1867 = vmatpush1.msra.mxu0 0.0
    %1868 = vmatprep.subr.mxu0 0.0
    %1869 = vmatpush1.msra.mxu0 0.0
    %1870 = vmatprep.subr.mxu0 0.0
    %1871 = vmatpush1.msra.mxu0 0.0
    %1872 = vmatprep.subr.mxu0 0.0
    %1873 = vmatpush1.msra.mxu0 0.0
    %1874 = vmatprep.subr.mxu0 0.0
    %1875 = vmatpush1.msra.mxu0 0.0
    %1876 = vmatprep.subr.mxu0 0.0
    %1877 = vmatpush1.msra.mxu0 0.0
    %1878 = vmatprep.subr.mxu0 0.0
    %1879 = vmatpush1.msra.mxu0 0.0
    %1880 = vmatprep.subr.mxu0 0.0
    %1881 = vmatpush1.msra.mxu0 0.0
    %1882 = vmatprep.subr.mxu0 0.0
    %1883 = vmatpush1.msra.mxu0 0.0
    %1884 = vmatprep.subr.mxu0 0.0
    %1885 = vmatpush1.msra.mxu0 0.0
    %1886 = vmatprep.subr.mxu0 0.0
    %1887 = vmatpush1.msra.mxu0 0.0
    %1888 = vmatprep.subr.mxu0 0.0
    %1889 = vmatpush1.msra.mxu0 0.0
    %1890 = vmatprep.subr.mxu0 0.0
    %1891 = vmatpush1.msra.mxu0 0.0
    %1892 = vmatprep.subr.mxu0 0.0
    %1893 = vmatpush1.msra.mxu0 0.0
    %1894 = vmatprep.subr.mxu0 0.0
    %1895 = vmatpush1.msra.mxu0 0.0
    %1896 = vmatprep.mubr.f32.mxu0 0.0
    %1897 = vmatmul.mubr.f32.gmra.mrb[0].mxu0 %v1827
    %v1898 = vpop.f32.mrb[0].mxu0
    %v1899 = vadd.f32 0.0, %v1898
    %v1900 = vpop.f32.mrb[0].mxu0
    %1901 = vmatprep.mubr.f32.mxu0 0.0
    %1902 = vmatmul.mubr.f32.gmra.mrb[0].mxu0 %v1830
    %v1903 = vpop.f32.mrb[0].mxu0
    %v1904 = vadd.f32 0.0, %v1903
    %v1905 = vpop.f32.mrb[0].mxu0
    %1906 = vdwg.mxu0
    %v1908 = vsel %vm1575, %v1661, 0
    %v1911 = vsel %vm1575, %v1663, 0
    %1913 = vmatprep.subr.mxu0 0.0
    %1914 = vmatpush1.msra.mxu0 %v1137
    %1915 = vmatprep.subr.mxu0 0.0
    %1916 = vmatpush1.msra.mxu0 %v1205
    %1917 = vmatprep.subr.mxu0 0.0
    %1918 = vmatpush1.msra.mxu0 0.0
    %1919 = vmatprep.subr.mxu0 0.0
    %1920 = vmatpush1.msra.mxu0 0.0
    %1921 = vmatprep.subr.mxu0 0.0
    %1922 = vmatpush1.msra.mxu0 0.0
    %1923 = vmatprep.subr.mxu0 0.0
    %1924 = vmatpush1.msra.mxu0 0.0
    %1925 = vmatprep.subr.mxu0 0.0
    %1926 = vmatpush1.msra.mxu0 0.0
    %1927 = vmatprep.subr.mxu0 0.0
    %1928 = vmatpush1.msra.mxu0 0.0
    %1929 = vmatprep.subr.mxu0 0.0
    %1930 = vmatpush1.msra.mxu0 0.0
    %1931 = vmatprep.subr.mxu0 0.0
    %1932 = vmatpush1.msra.mxu0 0.0
    %1933 = vmatprep.subr.mxu0 0.0
    %1934 = vmatpush1.msra.mxu0 0.0
    %1935 = vmatprep.subr.mxu0 0.0
    %1936 = vmatpush1.msra.mxu0 0.0
    %1937 = vmatprep.subr.mxu0 0.0
    %1938 = vmatpush1.msra.mxu0 0.0
    %1939 = vmatprep.subr.mxu0 0.0
    %1940 = vmatpush1.msra.mxu0 0.0
    %1941 = vmatprep.subr.mxu0 0.0
    %1942 = vmatpush1.msra.mxu0 0.0
    %1943 = vmatprep.subr.mxu0 0.0
    %1944 = vmatpush1.msra.mxu0 0.0
    %1945 = vmatprep.subr.mxu0 0.0
    %1946 = vmatpush1.msra.mxu0 0.0
    %1947 = vmatprep.subr.mxu0 0.0
    %1948 = vmatpush1.msra.mxu0 0.0
    %1949 = vmatprep.subr.mxu0 0.0
    %1950 = vmatpush1.msra.mxu0 0.0
    %1951 = vmatprep.subr.mxu0 0.0
    %1952 = vmatpush1.msra.mxu0 0.0
    %1953 = vmatprep.subr.mxu0 0.0
    %1954 = vmatpush1.msra.mxu0 0.0
    %1955 = vmatprep.subr.mxu0 0.0
    %1956 = vmatpush1.msra.mxu0 0.0
    %1957 = vmatprep.subr.mxu0 0.0
    %1958 = vmatpush1.msra.mxu0 0.0
    %1959 = vmatprep.subr.mxu0 0.0
    %1960 = vmatpush1.msra.mxu0 0.0
    %1961 = vmatprep.subr.mxu0 0.0
    %1962 = vmatpush1.msra.mxu0 0.0
    %1963 = vmatprep.subr.mxu0 0.0
    %1964 = vmatpush1.msra.mxu0 0.0
    %1965 = vmatprep.subr.mxu0 0.0
    %1966 = vmatpush1.msra.mxu0 0.0
    %1967 = vmatprep.subr.mxu0 0.0
    %1968 = vmatpush1.msra.mxu0 0.0
    %1969 = vmatprep.subr.mxu0 0.0
    %1970 = vmatpush1.msra.mxu0 0.0
    %1971 = vmatprep.subr.mxu0 0.0
    %1972 = vmatpush1.msra.mxu0 0.0
    %1973 = vmatprep.subr.mxu0 0.0
    %1974 = vmatpush1.msra.mxu0 0.0
    %1975 = vmatprep.subr.mxu0 0.0
    %1976 = vmatpush1.msra.mxu0 0.0
    %1977 = vmatprep.mubr.f32.mxu0 0.0
    %1978 = vmatmul.mubr.f32.gmra.mrb[0].mxu0 %v1908
    %v1979 = vpop.f32.mrb[0].mxu0
    %v1980 = vadd.f32 0.0, %v1979
    %v1981 = vpop.f32.mrb[0].mxu0
    %1982 = vmatprep.mubr.f32.mxu0 0.0
    %1983 = vmatmul.mubr.f32.gmra.mrb[0].mxu0 %v1911
    %v1984 = vpop.f32.mrb[0].mxu0
    %v1985 = vadd.f32 0.0, %v1984
    %v1986 = vpop.f32.mrb[0].mxu0
    %1987 = vdwg.mxu0
    %v1988 = vcombine.low %v1737, %v1899
    %v1989 = vcombine.high %v1737, %v1899
    %v1991 = vunpack.c.l.s4 1983009808
    %v1992 = vunpack.c.0.s8 %v1991
    %v1993 = vlaneseq
    %v1994 = vshrl.u32 %v1993, 7
    %v1995 = vsub.s32 %v1992, %v1994
    %v1996 = vrot.slane %v1988, %v1995
    %v1998 = vunpack.c.l.s4 1983009808
    %v1999 = vunpack.c.0.s8 %v1998
    %v2000 = vlaneseq
    %v2001 = vshrl.u32 %v2000, 7
    %v2002 = vsub.s32 %v1999, %v2001
    %v2003 = vrot.slane %v1989, %v2002
    %v2004 = vcombine.low %v1818, %v1980
    %v2005 = vcombine.high %v1818, %v1980
    %v2007 = vunpack.c.l.s4 1983009808
    %v2008 = vunpack.c.0.s8 %v2007
    %v2009 = vlaneseq
    %v2010 = vshrl.u32 %v2009, 7
    %v2011 = vsub.s32 %v2008, %v2010
    %v2012 = vrot.slane %v2004, %v2011
    %v2014 = vunpack.c.l.s4 1983009808
    %v2015 = vunpack.c.0.s8 %v2014
    %v2016 = vlaneseq
    %v2017 = vshrl.u32 %v2016, 7
    %v2018 = vsub.s32 %v2015, %v2017
    %v2019 = vrot.slane %v2005, %v2018
    %v2020 = vcombine.low %v1996, %v2012
    %v2021 = vcombine.high %v1996, %v2012
    %v2023 = vunpack.c.l.s4 1934713408
    %v2024 = vunpack.c.0.s8 %v2023
    %v2025 = vlaneseq
    %v2026 = vshrl.u32 %v2025, 7
    %v2027 = vsub.s32 %v2024, %v2026
    %v2028 = vrot.slane %v2020, %v2027
    %v2030 = vunpack.c.l.s4 1934713408
    %v2031 = vunpack.c.0.s8 %v2030
    %v2032 = vlaneseq
    %v2033 = vshrl.u32 %v2032, 7
    %v2034 = vsub.s32 %v2031, %v2033
    %v2035 = vrot.slane %v2021, %v2034
    %v2036 = vcombine.low %v2003, %v2019
    %v2037 = vcombine.high %v2003, %v2019
    %v2039 = vunpack.c.l.s4 1934713408
    %v2040 = vunpack.c.0.s8 %v2039
    %v2041 = vlaneseq
    %v2042 = vshrl.u32 %v2041, 7
    %v2043 = vsub.s32 %v2040, %v2042
    %v2044 = vrot.slane %v2036, %v2043
    %v2046 = vunpack.c.l.s4 1934713408
    %v2047 = vunpack.c.0.s8 %v2046
    %v2048 = vlaneseq
    %v2049 = vshrl.u32 %v2048, 7
    %v2050 = vsub.s32 %v2047, %v2049
    %v2051 = vrot.slane %v2037, %v2050
    %v2052 = vcombine.high %v2028, 0.0
    %v2053 = vcombine.high %v2035, 0.0
    %v2054 = vcombine.high %v2044, 0.0
    %v2055 = vcombine.high %v2051, 0.0
    %v2056 = vcombine.low %v1742, %v1904
    %v2057 = vcombine.high %v1742, %v1904
    %v2059 = vunpack.c.l.s4 1983009808
    %v2060 = vunpack.c.0.s8 %v2059
    %v2061 = vlaneseq
    %v2062 = vshrl.u32 %v2061, 7
    %v2063 = vsub.s32 %v2060, %v2062
    %v2064 = vrot.slane %v2056, %v2063
    %v2066 = vunpack.c.l.s4 1983009808
    %v2067 = vunpack.c.0.s8 %v2066
    %v2068 = vlaneseq
    %v2069 = vshrl.u32 %v2068, 7
    %v2070 = vsub.s32 %v2067, %v2069
    %v2071 = vrot.slane %v2057, %v2070
    %v2072 = vcombine.low %v1823, %v1985
    %v2073 = vcombine.high %v1823, %v1985
    %v2075 = vunpack.c.l.s4 1983009808
    %v2076 = vunpack.c.0.s8 %v2075
    %v2077 = vlaneseq
    %v2078 = vshrl.u32 %v2077, 7
    %v2079 = vsub.s32 %v2076, %v2078
    %v2080 = vrot.slane %v2072, %v2079
    %v2082 = vunpack.c.l.s4 1983009808
    %v2083 = vunpack.c.0.s8 %v2082
    %v2084 = vlaneseq
    %v2085 = vshrl.u32 %v2084, 7
    %v2086 = vsub.s32 %v2083, %v2085
    %v2087 = vrot.slane %v2073, %v2086
    %v2088 = vcombine.low %v2064, %v2080
    %v2089 = vcombine.high %v2064, %v2080
    %v2091 = vunpack.c.l.s4 1934713408
    %v2092 = vunpack.c.0.s8 %v2091
    %v2093 = vlaneseq
    %v2094 = vshrl.u32 %v2093, 7
    %v2095 = vsub.s32 %v2092, %v2094
    %v2096 = vrot.slane %v2088, %v2095
    %v2098 = vunpack.c.l.s4 1934713408
    %v2099 = vunpack.c.0.s8 %v2098
    %v2100 = vlaneseq
    %v2101 = vshrl.u32 %v2100, 7
    %v2102 = vsub.s32 %v2099, %v2101
    %v2103 = vrot.slane %v2089, %v2102
    %v2104 = vcombine.low %v2071, %v2087
    %v2105 = vcombine.high %v2071, %v2087
    %v2107 = vunpack.c.l.s4 1934713408
    %v2108 = vunpack.c.0.s8 %v2107
    %v2109 = vlaneseq
    %v2110 = vshrl.u32 %v2109, 7
    %v2111 = vsub.s32 %v2108, %v2110
    %v2112 = vrot.slane %v2104, %v2111
    %v2114 = vunpack.c.l.s4 1934713408
    %v2115 = vunpack.c.0.s8 %v2114
    %v2116 = vlaneseq
    %v2117 = vshrl.u32 %v2116, 7
    %v2118 = vsub.s32 %v2115, %v2117
    %v2119 = vrot.slane %v2105, %v2118
    %v2120 = vcombine.high %v2096, 0.0
    %v2121 = vcombine.high %v2103, 0.0
    %v2122 = vcombine.high %v2112, 0.0
    %v2123 = vcombine.high %v2119, 0.0
    %v2124 = vcombine.low %v2028, %v2035
    %v2126 = vunpack.c.l.s4 1983009808
    %v2127 = vunpack.c.0.s8 %v2126
    %v2128 = vlaneseq
    %v2129 = vshrl.u32 %v2128, 7
    %v2130 = vsub.s32 %v2127, %v2129
    %v2131 = vrot.slane %v2124, %v2130
    %v2132 = vcombine.low %v2052, %v2053
    %v2134 = vunpack.c.l.s4 1983009808
    %v2135 = vunpack.c.0.s8 %v2134
    %v2136 = vlaneseq
    %v2137 = vshrl.u32 %v2136, 7
    %v2138 = vsub.s32 %v2135, %v2137
    %v2139 = vrot.slane %v2132, %v2138
    %v2140 = vcombine.low %v2044, %v2051
    %v2142 = vunpack.c.l.s4 1983009808
    %v2143 = vunpack.c.0.s8 %v2142
    %v2144 = vlaneseq
    %v2145 = vshrl.u32 %v2144, 7
    %v2146 = vsub.s32 %v2143, %v2145
    %v2147 = vrot.slane %v2140, %v2146
    %v2148 = vcombine.low %v2054, %v2055
    %v2150 = vunpack.c.l.s4 1983009808
    %v2151 = vunpack.c.0.s8 %v2150
    %v2152 = vlaneseq
    %v2153 = vshrl.u32 %v2152, 7
    %v2154 = vsub.s32 %v2151, %v2153
    %v2155 = vrot.slane %v2148, %v2154
    %v2156 = vcombine.low %v2131, %v2139
    %v2157 = vcombine.high %v2131, %v2139
    %v2159 = vunpack.c.l.s4 1934713408
    %v2160 = vunpack.c.0.s8 %v2159
    %v2161 = vlaneseq
    %v2162 = vshrl.u32 %v2161, 7
    %v2163 = vsub.s32 %v2160, %v2162
    %v2164 = vrot.slane %v2156, %v2163
    %v2166 = vunpack.c.l.s4 1934713408
    %v2167 = vunpack.c.0.s8 %v2166
    %v2168 = vlaneseq
    %v2169 = vshrl.u32 %v2168, 7
    %v2170 = vsub.s32 %v2167, %v2169
    %v2171 = vrot.slane %v2157, %v2170
    %v2172 = vcombine.low %v2147, %v2155
    %v2173 = vcombine.high %v2147, %v2155
    %v2175 = vunpack.c.l.s4 1934713408
    %v2176 = vunpack.c.0.s8 %v2175
    %v2177 = vlaneseq
    %v2178 = vshrl.u32 %v2177, 7
    %v2179 = vsub.s32 %v2176, %v2178
    %v2180 = vrot.slane %v2172, %v2179
    %v2182 = vunpack.c.l.s4 1934713408
    %v2183 = vunpack.c.0.s8 %v2182
    %v2184 = vlaneseq
    %v2185 = vshrl.u32 %v2184, 7
    %v2186 = vsub.s32 %v2183, %v2185
    %v2187 = vrot.slane %v2173, %v2186
    %v2188 = vcombine.low %v2164, %v2180
    %v2189 = vcombine.high %v2164, %v2180
    %v2190 = vcombine.low %v2171, %v2187
    %v2191 = vcombine.high %v2171, %v2187
    %v2192 = vcombine.low %v2096, %v2103
    %v2194 = vunpack.c.l.s4 1983009808
    %v2195 = vunpack.c.0.s8 %v2194
    %v2196 = vlaneseq
    %v2197 = vshrl.u32 %v2196, 7
    %v2198 = vsub.s32 %v2195, %v2197
    %v2199 = vrot.slane %v2192, %v2198
    %v2200 = vcombine.low %v2120, %v2121
    %v2202 = vunpack.c.l.s4 1983009808
    %v2203 = vunpack.c.0.s8 %v2202
    %v2204 = vlaneseq
    %v2205 = vshrl.u32 %v2204, 7
    %v2206 = vsub.s32 %v2203, %v2205
    %v2207 = vrot.slane %v2200, %v2206
    %v2208 = vcombine.low %v2112, %v2119
    %v2210 = vunpack.c.l.s4 1983009808
    %v2211 = vunpack.c.0.s8 %v2210
    %v2212 = vlaneseq
    %v2213 = vshrl.u32 %v2212, 7
    %v2214 = vsub.s32 %v2211, %v2213
    %v2215 = vrot.slane %v2208, %v2214
    %v2216 = vcombine.low %v2122, %v2123
    %v2218 = vunpack.c.l.s4 1983009808
    %v2219 = vunpack.c.0.s8 %v2218
    %v2220 = vlaneseq
    %v2221 = vshrl.u32 %v2220, 7
    %v2222 = vsub.s32 %v2219, %v2221
    %v2223 = vrot.slane %v2216, %v2222
    %v2224 = vcombine.low %v2199, %v2207
    %v2225 = vcombine.high %v2199, %v2207
    %v2227 = vunpack.c.l.s4 1934713408
    %v2228 = vunpack.c.0.s8 %v2227
    %v2229 = vlaneseq
    %v2230 = vshrl.u32 %v2229, 7
    %v2231 = vsub.s32 %v2228, %v2230
    %v2232 = vrot.slane %v2224, %v2231
    %v2234 = vunpack.c.l.s4 1934713408
    %v2235 = vunpack.c.0.s8 %v2234
    %v2236 = vlaneseq
    %v2237 = vshrl.u32 %v2236, 7
    %v2238 = vsub.s32 %v2235, %v2237
    %v2239 = vrot.slane %v2225, %v2238
    %v2240 = vcombine.low %v2215, %v2223
    %v2241 = vcombine.high %v2215, %v2223
    %v2243 = vunpack.c.l.s4 1934713408
    %v2244 = vunpack.c.0.s8 %v2243
    %v2245 = vlaneseq
    %v2246 = vshrl.u32 %v2245, 7
    %v2247 = vsub.s32 %v2244, %v2246
    %v2248 = vrot.slane %v2240, %v2247
    %v2250 = vunpack.c.l.s4 1934713408
    %v2251 = vunpack.c.0.s8 %v2250
    %v2252 = vlaneseq
    %v2253 = vshrl.u32 %v2252, 7
    %v2254 = vsub.s32 %v2251, %v2253
    %v2255 = vrot.slane %v2241, %v2254
    %v2256 = vcombine.low %v2232, %v2248
    %v2257 = vcombine.high %v2232, %v2248
    %v2258 = vcombine.low %v2239, %v2255
    %v2259 = vcombine.high %v2239, %v2255
    %2262 = vrot.lane.b32.xlu0 %v2189, 8
    %v2263 = vpop.permute.xlu0 %2262
    %2264 = vrot.lane.b32.xlu0 %v2257, 8
    %v2265 = vpop.permute.xlu0 %2264
    %2270 = vrot.lane.b32.xlu0 %v2190, 16
    %v2271 = vpop.permute.xlu0 %2270
    %2272 = vrot.lane.b32.xlu0 %v2258, 16
    %v2273 = vpop.permute.xlu0 %2272
    %2278 = vrot.lane.b32.xlu0 %v2191, 24
    %v2279 = vpop.permute.xlu0 %2278
    %2280 = vrot.lane.b32.xlu0 %v2259, 24
    %v2281 = vpop.permute.xlu0 %2280
    %v2284 = vsel %vm1206, %v2188, %v2263
    %v2285 = vsel %vm1206, %v2256, %v2265
    %v2286 = vsel %vm1575, %v2284, %v2271
    %v2287 = vsel %vm1575, %v2285, %v2273
    %vm2288 = vcmask 195584
    %v2289 = vsel %vm2288, %v2286, %v2279
    %v2290 = vsel %vm2288, %v2287, %v2281
    %v2291 = vld [vmem:[%s6] sm:$0xff]
    %v2292 = vld [vmem:[%s6 + $0x8] sm:$0xff]
    %v2293 = vld [vmem:[%s6 + $0x10] sm:$0xff]
    %v2294 = vld [vmem:[%s6 + $0x18] sm:$0xff]
    %v2295 = vld [vmem:[%s7] sm:$0x1]
    %v2297 = vlaneseq
    %v2298 = vshrl.u32 %v2297, 7
    %v2299 = vsub.s32 0, %v2298
    %v2300 = vrot.slane %v2295, %v2299
    %v2303 = vsel %vm240, %v2289, 0
    %v2306 = vsel %vm240, %v2290, 0
    %2308 = vmatprep.subr.mxu0 0.0
    %2309 = vmatpush1.msra.mxu0 %v2291
    %2310 = vmatprep.subr.mxu0 0.0
    %2311 = vmatpush1.msra.mxu0 %v2292
    %2312 = vmatprep.subr.mxu0 0.0
    %2313 = vmatpush1.msra.mxu0 %v2293
    %2314 = vmatprep.subr.mxu0 0.0
    %2315 = vmatpush1.msra.mxu0 %v2294
    %2316 = vmatprep.subr.mxu0 0.0
    %2317 = vmatpush1.msra.mxu0 0.0
    %2318 = vmatprep.subr.mxu0 0.0
    %2319 = vmatpush1.msra.mxu0 0.0
    %2320 = vmatprep.subr.mxu0 0.0
    %2321 = vmatpush1.msra.mxu0 0.0
    %2322 = vmatprep.subr.mxu0 0.0
    %2323 = vmatpush1.msra.mxu0 0.0
    %2324 = vmatprep.subr.mxu0 0.0
    %2325 = vmatpush1.msra.mxu0 0.0
    %2326 = vmatprep.subr.mxu0 0.0
    %2327 = vmatpush1.msra.mxu0 0.0
    %2328 = vmatprep.subr.mxu0 0.0
    %2329 = vmatpush1.msra.mxu0 0.0
    %2330 = vmatprep.subr.mxu0 0.0
    %2331 = vmatpush1.msra.mxu0 0.0
    %2332 = vmatprep.subr.mxu0 0.0
    %2333 = vmatpush1.msra.mxu0 0.0
    %2334 = vmatprep.subr.mxu0 0.0
    %2335 = vmatpush1.msra.mxu0 0.0
    %2336 = vmatprep.subr.mxu0 0.0
    %2337 = vmatpush1.msra.mxu0 0.0
    %2338 = vmatprep.subr.mxu0 0.0
    %2339 = vmatpush1.msra.mxu0 0.0
    %2340 = vmatprep.subr.mxu0 0.0
    %2341 = vmatpush1.msra.mxu0 0.0
    %2342 = vmatprep.subr.mxu0 0.0
    %2343 = vmatpush1.msra.mxu0 0.0
    %2344 = vmatprep.subr.mxu0 0.0
    %2345 = vmatpush1.msra.mxu0 0.0
    %2346 = vmatprep.subr.mxu0 0.0
    %2347 = vmatpush1.msra.mxu0 0.0
    %2348 = vmatprep.subr.mxu0 0.0
    %2349 = vmatpush1.msra.mxu0 0.0
    %2350 = vmatprep.subr.mxu0 0.0
    %2351 = vmatpush1.msra.mxu0 0.0
    %2352 = vmatprep.subr.mxu0 0.0
    %2353 = vmatpush1.msra.mxu0 0.0
    %2354 = vmatprep.subr.mxu0 0.0
    %2355 = vmatpush1.msra.mxu0 0.0
    %2356 = vmatprep.subr.mxu0 0.0
    %2357 = vmatpush1.msra.mxu0 0.0
    %2358 = vmatprep.subr.mxu0 0.0
    %2359 = vmatpush1.msra.mxu0 0.0
    %2360 = vmatprep.subr.mxu0 0.0
    %2361 = vmatpush1.msra.mxu0 0.0
    %2362 = vmatprep.subr.mxu0 0.0
    %2363 = vmatpush1.msra.mxu0 0.0
    %2364 = vmatprep.subr.mxu0 0.0
    %2365 = vmatpush1.msra.mxu0 0.0
    %2366 = vmatprep.subr.mxu0 0.0
    %2367 = vmatpush1.msra.mxu0 0.0
    %2368 = vmatprep.subr.mxu0 0.0
    %2369 = vmatpush1.msra.mxu0 0.0
    %2370 = vmatprep.subr.mxu0 0.0
    %2371 = vmatpush1.msra.mxu0 0.0
    %2372 = vmatprep.mubr.f32.mxu0 0.0
    %2373 = vmatmul.mubr.f32.gmra.mrb[0].mxu0 %v2303
    %v2374 = vpop.f32.mrb[0].mxu0
    %v2375 = vadd.f32 %v2300, %v2374
    %v2376 = vpop.f32.mrb[0].mxu0
    %2377 = vmatprep.mubr.f32.mxu0 0.0
    %2378 = vmatmul.mubr.f32.gmra.mrb[0].mxu0 %v2306
    %v2379 = vpop.f32.mrb[0].mxu0
    %v2380 = vadd.f32 %v2300, %v2379
    %v2381 = vpop.f32.mrb[0].mxu0
    %2382 = vdwg.mxu0
    %v2383 = vadd.f32 %v206, %v2375
    %v2384 = vadd.f32 %v211, %v2380
    %v2385 = vld [vmem:[%s8] sm:$0x1]
    %v2386 = vld [vmem:[%s9] sm:$0x1]
    %v2387 = vsel %vm240, %v2383, 0.0
    %2388 = vadd.xlane.f32.xlu0 %v2387
    %v2389 = vpop.xlane.xlu0 %2388
    %v2390 = vsel %vm240, %v2384, 0.0
    %2391 = vadd.xlane.f32.xlu0 %v2390
    %v2392 = vpop.xlane.xlu0 %2391
    %v2393 = vrcp.pop 32.0
    %v2394 = vmul.f32 %v2389, %v2393
    %v2395 = vmul.f32 %v2392, %v2393
    %v2396 = vsub.f32 %v2383, %v2394
    %v2397 = vsub.f32 %v2384, %v2395
    %v2398 = vmul.f32 %v2396, %v2396
    %v2399 = vmul.f32 %v2397, %v2397
    %v2400 = vsel %vm240, %v2398, 0.0
    %2401 = vadd.xlane.f32.xlu0 %v2400
    %v2402 = vpop.xlane.xlu0 %2401
    %v2403 = vsel %vm240, %v2399, 0.0
    %2404 = vadd.xlane.f32.xlu0 %v2403
    %v2405 = vpop.xlane.xlu0 %2404
    %v2406 = vmul.f32 %v2402, %v2393
    %v2407 = vmul.f32 %v2405, %v2393
    %v2408 = vadd.f32 %v2406, 1e-05
    %v2409 = vadd.f32 %v2407, 1e-05
    %v2410 = vrsqrt.pop %v2408
    %v2411 = vrsqrt.pop %v2409
    %v2412 = vmul.f32 %v2396, %v2410
    %v2413 = vmul.f32 %v2397, %v2411
    %v2415 = vlaneseq
    %v2416 = vshrl.u32 %v2415, 7
    %v2417 = vsub.s32 0, %v2416
    %v2418 = vrot.slane %v2385, %v2417
    %v2420 = vmul.f32 %v2412, %v2418
    %v2421 = vmul.f32 %v2413, %v2418
    %v2423 = vlaneseq
    %v2424 = vshrl.u32 %v2423, 7
    %v2425 = vsub.s32 0, %v2424
    %v2426 = vrot.slane %v2386, %v2425
    %v2428 = vadd.f32 %v2420, %v2426
    %v2429 = vadd.f32 %v2421, %v2426
    %v2430 = vld [vmem:[%s10] sm:$0xff]
    %v2431 = vld [vmem:[%s10 + $0x8] sm:$0xff]
    %v2432 = vld [vmem:[%s10 + $0x10] sm:$0xff]
    %v2433 = vld [vmem:[%s10 + $0x18] sm:$0xff]
    %v2434 = vld [vmem:[#allocation3] sm:$0x1]
    %v2436 = vlaneseq
    %v2437 = vshrl.u32 %v2436, 7
    %v2438 = vsub.s32 0, %v2437
    %v2439 = vrot.slane %v2434, %v2438
    %v2442 = vsel %vm240, %v2428, 0
    %v2445 = vsel %vm240, %v2429, 0
    %2447 = vmatprep.subr.mxu0 0.0
    %2448 = vmatpush1.msra.mxu0 %v2430
    %2449 = vmatprep.subr.mxu0 0.0
    %2450 = vmatpush1.msra.mxu0 %v2431
    %2451 = vmatprep.subr.mxu0 0.0
    %2452 = vmatpush1.msra.mxu0 %v2432
    %2453 = vmatprep.subr.mxu0 0.0
    %2454 = vmatpush1.msra.mxu0 %v2433
    %2455 = vmatprep.subr.mxu0 0.0
    %2456 = vmatpush1.msra.mxu0 0.0
    %2457 = vmatprep.subr.mxu0 0.0
    %2458 = vmatpush1.msra.mxu0 0.0
    %2459 = vmatprep.subr.mxu0 0.0
    %2460 = vmatpush1.msra.mxu0 0.0
    %2461 = vmatprep.subr.mxu0 0.0
    %2462 = vmatpush1.msra.mxu0 0.0
    %2463 = vmatprep.subr.mxu0 0.0
    %2464 = vmatpush1.msra.mxu0 0.0
    %2465 = vmatprep.subr.mxu0 0.0
    %2466 = vmatpush1.msra.mxu0 0.0
    %2467 = vmatprep.subr.mxu0 0.0
    %2468 = vmatpush1.msra.mxu0 0.0
    %2469 = vmatprep.subr.mxu0 0.0
    %2470 = vmatpush1.msra.mxu0 0.0
    %2471 = vmatprep.subr.mxu0 0.0
    %2472 = vmatpush1.msra.mxu0 0.0
    %2473 = vmatprep.subr.mxu0 0.0
    %2474 = vmatpush1.msra.mxu0 0.0
    %2475 = vmatprep.subr.mxu0 0.0
    %2476 = vmatpush1.msra.mxu0 0.0
    %2477 = vmatprep.subr.mxu0 0.0
    %2478 = vmatpush1.msra.mxu0 0.0
    %2479 = vmatprep.subr.mxu0 0.0
    %2480 = vmatpush1.msra.mxu0 0.0
    %2481 = vmatprep.subr.mxu0 0.0
    %2482 = vmatpush1.msra.mxu0 0.0
    %2483 = vmatprep.subr.mxu0 0.0
    %2484 = vmatpush1.msra.mxu0 0.0
    %2485 = vmatprep.subr.mxu0 0.0
    %2486 = vmatpush1.msra.mxu0 0.0
    %2487 = vmatprep.subr.mxu0 0.0
    %2488 = vmatpush1.msra.mxu0 0.0
    %2489 = vmatprep.subr.mxu0 0.0
    %2490 = vmatpush1.msra.mxu0 0.0
    %2491 = vmatprep.subr.mxu0 0.0
    %2492 = vmatpush1.msra.mxu0 0.0
    %2493 = vmatprep.subr.mxu0 0.0
    %2494 = vmatpush1.msra.mxu0 0.0
    %2495 = vmatprep.subr.mxu0 0.0
    %2496 = vmatpush1.msra.mxu0 0.0
    %2497 = vmatprep.subr.mxu0 0.0
    %2498 = vmatpush1.msra.mxu0 0.0
    %2499 = vmatprep.subr.mxu0 0.0
    %2500 = vmatpush1.msra.mxu0 0.0
    %2501 = vmatprep.subr.mxu0 0.0
    %2502 = vmatpush1.msra.mxu0 0.0
    %2503 = vmatprep.subr.mxu0 0.0
    %2504 = vmatpush1.msra.mxu0 0.0
    %2505 = vmatprep.subr.mxu0 0.0
    %2506 = vmatpush1.msra.mxu0 0.0
    %2507 = vmatprep.subr.mxu0 0.0
    %2508 = vmatpush1.msra.mxu0 0.0
    %2509 = vmatprep.subr.mxu0 0.0
    %2510 = vmatpush1.msra.mxu0 0.0
    %2511 = vmatprep.mubr.f32.mxu0 0.0
    %2512 = vmatmul.mubr.f32.gmra.mrb[0].mxu0 %v2442
    %v2513 = vpop.f32.mrb[0].mxu0
    %v2514 = vadd.f32 %v2439, %v2513
    %v2515 = vpop.f32.mrb[0].mxu0
    %2516 = vmatprep.mubr.f32.mxu0 0.0
    %2517 = vmatmul.mubr.f32.gmra.mrb[0].mxu0 %v2445
    %v2518 = vpop.f32.mrb[0].mxu0
    %v2519 = vadd.f32 %v2439, %v2518
    %v2520 = vpop.f32.mrb[0].mxu0
    %2521 = vdwg.mxu0
    %v2522 = vmax.f32 %v2514, 0.0
    %v2523 = vmax.f32 %v2519, 0.0
    %v2524 = vld [vmem:[%s12] sm:$0xff]
    %v2525 = vld [vmem:[%s12 + $0x8] sm:$0xff]
    %v2526 = vld [vmem:[%s12 + $0x10] sm:$0xff]
    %v2527 = vld [vmem:[%s12 + $0x18] sm:$0xff]
    %v2528 = vld [vmem:[%s12 + $0x20] sm:$0xff]
    %v2529 = vld [vmem:[%s12 + $0x28] sm:$0xff]
    %v2530 = vld [vmem:[%s12 + $0x30] sm:$0xff]
    %v2531 = vld [vmem:[%s12 + $0x38] sm:$0xff]
    %v2532 = vld [vmem:[#allocation5] sm:$0x1]
    %v2534 = vlaneseq
    %v2535 = vshrl.u32 %v2534, 7
    %v2536 = vsub.s32 0, %v2535
    %v2537 = vrot.slane %v2532, %v2536
    %vm2539 = vcmask 523264
    %v2541 = vsel %vm2539, %v2522, 0
    %v2544 = vsel %vm2539, %v2523, 0
    %2546 = vmatprep.subr.mxu0 0.0
    %2547 = vmatpush1.msra.mxu0 %v2524
    %2548 = vmatprep.subr.mxu0 0.0
    %2549 = vmatpush1.msra.mxu0 %v2525
    %2550 = vmatprep.subr.mxu0 0.0
    %2551 = vmatpush1.msra.mxu0 %v2526
    %2552 = vmatprep.subr.mxu0 0.0
    %2553 = vmatpush1.msra.mxu0 %v2527
    %2554 = vmatprep.subr.mxu0 0.0
    %2555 = vmatpush1.msra.mxu0 %v2528
    %2556 = vmatprep.subr.mxu0 0.0
    %2557 = vmatpush1.msra.mxu0 %v2529
    %2558 = vmatprep.subr.mxu0 0.0
    %2559 = vmatpush1.msra.mxu0 %v2530
    %2560 = vmatprep.subr.mxu0 0.0
    %2561 = vmatpush1.msra.mxu0 %v2531
    %2562 = vmatprep.subr.mxu0 0.0
    %2563 = vmatpush1.msra.mxu0 0.0
    %2564 = vmatprep.subr.mxu0 0.0
    %2565 = vmatpush1.msra.mxu0 0.0
    %2566 = vmatprep.subr.mxu0 0.0
    %2567 = vmatpush1.msra.mxu0 0.0
    %2568 = vmatprep.subr.mxu0 0.0
    %2569 = vmatpush1.msra.mxu0 0.0
    %2570 = vmatprep.subr.mxu0 0.0
    %2571 = vmatpush1.msra.mxu0 0.0
    %2572 = vmatprep.subr.mxu0 0.0
    %2573 = vmatpush1.msra.mxu0 0.0
    %2574 = vmatprep.subr.mxu0 0.0
    %2575 = vmatpush1.msra.mxu0 0.0
    %2576 = vmatprep.subr.mxu0 0.0
    %2577 = vmatpush1.msra.mxu0 0.0
    %2578 = vmatprep.subr.mxu0 0.0
    %2579 = vmatpush1.msra.mxu0 0.0
    %2580 = vmatprep.subr.mxu0 0.0
    %2581 = vmatpush1.msra.mxu0 0.0
    %2582 = vmatprep.subr.mxu0 0.0
    %2583 = vmatpush1.msra.mxu0 0.0
    %2584 = vmatprep.subr.mxu0 0.0
    %2585 = vmatpush1.msra.mxu0 0.0
    %2586 = vmatprep.subr.mxu0 0.0
    %2587 = vmatpush1.msra.mxu0 0.0
    %2588 = vmatprep.subr.mxu0 0.0
    %2589 = vmatpush1.msra.mxu0 0.0
    %2590 = vmatprep.subr.mxu0 0.0
    %2591 = vmatpush1.msra.mxu0 0.0
    %2592 = vmatprep.subr.mxu0 0.0
    %2593 = vmatpush1.msra.mxu0 0.0
    %2594 = vmatprep.subr.mxu0 0.0
    %2595 = vmatpush1.msra.mxu0 0.0
    %2596 = vmatprep.subr.mxu0 0.0
    %2597 = vmatpush1.msra.mxu0 0.0
    %2598 = vmatprep.subr.mxu0 0.0
    %2599 = vmatpush1.msra.mxu0 0.0
    %2600 = vmatprep.subr.mxu0 0.0
    %2601 = vmatpush1.msra.mxu0 0.0
    %2602 = vmatprep.subr.mxu0 0.0
    %2603 = vmatpush1.msra.mxu0 0.0
    %2604 = vmatprep.subr.mxu0 0.0
    %2605 = vmatpush1.msra.mxu0 0.0
    %2606 = vmatprep.subr.mxu0 0.0
    %2607 = vmatpush1.msra.mxu0 0.0
    %2608 = vmatprep.subr.mxu0 0.0
    %2609 = vmatpush1.msra.mxu0 0.0
    %2610 = vmatprep.mubr.f32.mxu0 0.0
    %2611 = vmatmul.mubr.f32.gmra.mrb[0].mxu0 %v2541
    %v2612 = vpop.f32.mrb[0].mxu0
    %v2613 = vadd.f32 %v2537, %v2612
    %v2614 = vpop.f32.mrb[0].mxu0
    %2615 = vmatprep.mubr.f32.mxu0 0.0
    %2616 = vmatmul.mubr.f32.gmra.mrb[0].mxu0 %v2544
    %v2617 = vpop.f32.mrb[0].mxu0
    %v2618 = vadd.f32 %v2537, %v2617
    %v2619 = vpop.f32.mrb[0].mxu0
    %2620 = vdwg.mxu0
    %v2621 = vadd.f32 %v2428, %v2613
    %v2622 = vadd.f32 %v2429, %v2618
    %v2623 = vld [vmem:[%s14] sm:$0x1]
    %v2624 = vld [vmem:[%s15] sm:$0x1]
    %v2625 = vsel %vm240, %v2621, 0.0
    %2626 = vadd.xlane.f32.xlu0 %v2625
    %v2627 = vpop.xlane.xlu0 %2626
    %v2628 = vsel %vm240, %v2622, 0.0
    %2629 = vadd.xlane.f32.xlu0 %v2628
    %v2630 = vpop.xlane.xlu0 %2629
    %v2631 = vmul.f32 %v2627, %v2393
    %v2632 = vmul.f32 %v2630, %v2393
    %v2633 = vsub.f32 %v2621, %v2631
    %v2634 = vsub.f32 %v2622, %v2632
    %v2635 = vmul.f32 %v2633, %v2633
    %v2636 = vmul.f32 %v2634, %v2634
    %v2637 = vsel %vm240, %v2635, 0.0
    %2638 = vadd.xlane.f32.xlu0 %v2637
    %v2639 = vpop.xlane.xlu0 %2638
    %v2640 = vsel %vm240, %v2636, 0.0
    %2641 = vadd.xlane.f32.xlu0 %v2640
    %v2642 = vpop.xlane.xlu0 %2641
    %v2643 = vmul.f32 %v2639, %v2393
    %v2644 = vmul.f32 %v2642, %v2393
    %v2645 = vadd.f32 %v2643, 1e-05
    %v2646 = vadd.f32 %v2644, 1e-05
    %v2647 = vrsqrt.pop %v2645
    %v2648 = vrsqrt.pop %v2646
    %v2649 = vmul.f32 %v2633, %v2647
    %v2650 = vmul.f32 %v2634, %v2648
    %v2652 = vlaneseq
    %v2653 = vshrl.u32 %v2652, 7
    %v2654 = vsub.s32 0, %v2653
    %v2655 = vrot.slane %v2623, %v2654
    %v2657 = vmul.f32 %v2649, %v2655
    %v2658 = vmul.f32 %v2650, %v2655
    %v2660 = vlaneseq
    %v2661 = vshrl.u32 %v2660, 7
    %v2662 = vsub.s32 0, %v2661
    %v2663 = vrot.slane %v2624, %v2662
    %v2665 = vadd.f32 %v2657, %v2663
    %v2666 = vadd.f32 %v2658, %v2663
    %s2667 = scalar_lea.vmem %s4, 32
    %v2668 = vld [vmem:[%s2667] sm:$0xff]
    %v2669 = vld [vmem:[%s2667 + $0x8] sm:$0xff]
    %v2670 = vld [vmem:[%s2667 + $0x10] sm:$0xff]
    %v2671 = vld [vmem:[%s2667 + $0x18] sm:$0xff]
    %s2672 = scalar_lea.vmem %s5, 1
    %v2673 = vld [vmem:[%s2672] sm:$0x1]
    %v2675 = vlaneseq
    %v2676 = vshrl.u32 %v2675, 7
    %v2677 = vsub.s32 0, %v2676
    %v2678 = vrot.slane %v2673, %v2677
    %v2681 = vsel %vm240, %v2665, 0
    %v2684 = vsel %vm240, %v2666, 0
    %2686 = vmatprep.subr.mxu0 0.0
    %2687 = vmatpush1.msra.mxu0 %v2668
    %2688 = vmatprep.subr.mxu0 0.0
    %2689 = vmatpush1.msra.mxu0 %v2669
    %2690 = vmatprep.subr.mxu0 0.0
    %2691 = vmatpush1.msra.mxu0 %v2670
    %2692 = vmatprep.subr.mxu0 0.0
    %2693 = vmatpush1.msra.mxu0 %v2671
    %2694 = vmatprep.subr.mxu0 0.0
    %2695 = vmatpush1.msra.mxu0 0.0
    %2696 = vmatprep.subr.mxu0 0.0
    %2697 = vmatpush1.msra.mxu0 0.0
    %2698 = vmatprep.subr.mxu0 0.0
    %2699 = vmatpush1.msra.mxu0 0.0
    %2700 = vmatprep.subr.mxu0 0.0
    %2701 = vmatpush1.msra.mxu0 0.0
    %2702 = vmatprep.subr.mxu0 0.0
    %2703 = vmatpush1.msra.mxu0 0.0
    %2704 = vmatprep.subr.mxu0 0.0
    %2705 = vmatpush1.msra.mxu0 0.0
    %2706 = vmatprep.subr.mxu0 0.0
    %2707 = vmatpush1.msra.mxu0 0.0
    %2708 = vmatprep.subr.mxu0 0.0
    %2709 = vmatpush1.msra.mxu0 0.0
    %2710 = vmatprep.subr.mxu0 0.0
    %2711 = vmatpush1.msra.mxu0 0.0
    %2712 = vmatprep.subr.mxu0 0.0
    %2713 = vmatpush1.msra.mxu0 0.0
    %2714 = vmatprep.subr.mxu0 0.0
    %2715 = vmatpush1.msra.mxu0 0.0
    %2716 = vmatprep.subr.mxu0 0.0
    %2717 = vmatpush1.msra.mxu0 0.0
    %2718 = vmatprep.subr.mxu0 0.0
    %2719 = vmatpush1.msra.mxu0 0.0
    %2720 = vmatprep.subr.mxu0 0.0
    %2721 = vmatpush1.msra.mxu0 0.0
    %2722 = vmatprep.subr.mxu0 0.0
    %2723 = vmatpush1.msra.mxu0 0.0
    %2724 = vmatprep.subr.mxu0 0.0
    %2725 = vmatpush1.msra.mxu0 0.0
    %2726 = vmatprep.subr.mxu0 0.0
    %2727 = vmatpush1.msra.mxu0 0.0
    %2728 = vmatprep.subr.mxu0 0.0
    %2729 = vmatpush1.msra.mxu0 0.0
    %2730 = vmatprep.subr.mxu0 0.0
    %2731 = vmatpush1.msra.mxu0 0.0
    %2732 = vmatprep.subr.mxu0 0.0
    %2733 = vmatpush1.msra.mxu0 0.0
    %2734 = vmatprep.subr.mxu0 0.0
    %2735 = vmatpush1.msra.mxu0 0.0
    %2736 = vmatprep.subr.mxu0 0.0
    %2737 = vmatpush1.msra.mxu0 0.0
    %2738 = vmatprep.subr.mxu0 0.0
    %2739 = vmatpush1.msra.mxu0 0.0
    %2740 = vmatprep.subr.mxu0 0.0
    %2741 = vmatpush1.msra.mxu0 0.0
    %2742 = vmatprep.subr.mxu0 0.0
    %2743 = vmatpush1.msra.mxu0 0.0
    %2744 = vmatprep.subr.mxu0 0.0
    %2745 = vmatpush1.msra.mxu0 0.0
    %2746 = vmatprep.subr.mxu0 0.0
    %2747 = vmatpush1.msra.mxu0 0.0
    %2748 = vmatprep.subr.mxu0 0.0
    %2749 = vmatpush1.msra.mxu0 0.0
    %2750 = vmatprep.mubr.f32.mxu0 0.0
    %2751 = vmatmul.mubr.f32.gmra.mrb[0].mxu0 %v2681
    %v2752 = vpop.f32.mrb[0].mxu0
    %v2753 = vadd.f32 %v2678, %v2752
    %v2754 = vpop.f32.mrb[0].mxu0
    %2755 = vmatprep.mubr.f32.mxu0 0.0
    %2756 = vmatmul.mubr.f32.gmra.mrb[0].mxu0 %v2684
    %v2757 = vpop.f32.mrb[0].mxu0
    %v2758 = vadd.f32 %v2678, %v2757
    %v2759 = vpop.f32.mrb[0].mxu0
    %2760 = vdwg.mxu0
    %2763 = vrot.lane.b32.xlu0 %v2753, 120
    %v2764 = vpop.permute.xlu0 %2763
    %2765 = vrot.lane.b32.xlu0 %v2758, 120
    %v2766 = vpop.permute.xlu0 %2765
    %2769 = vrot.lane.b32.xlu0 %v2753, 112
    %v2770 = vpop.permute.xlu0 %2769
    %2771 = vrot.lane.b32.xlu0 %v2758, 112
    %v2772 = vpop.permute.xlu0 %2771
    %2775 = vrot.lane.b32.xlu0 %v2753, 104
    %v2776 = vpop.permute.xlu0 %2775
    %2777 = vrot.lane.b32.xlu0 %v2758, 104
    %v2778 = vpop.permute.xlu0 %2777
    %v2781 = vcombine.low %v2753, %v2770
    %v2782 = vcombine.high %v2753, %v2770
    %v2784 = vunpack.c.l.s4 1983009808
    %v2785 = vunpack.c.0.s8 %v2784
    %v2786 = vlaneseq
    %v2787 = vshrl.u32 %v2786, 7
    %v2788 = vsub.s32 %v2785, %v2787
    %v2789 = vrot.slane %v2781, %v2788
    %v2791 = vunpack.c.l.s4 1983009808
    %v2792 = vunpack.c.0.s8 %v2791
    %v2793 = vlaneseq
    %v2794 = vshrl.u32 %v2793, 7
    %v2795 = vsub.s32 %v2792, %v2794
    %v2796 = vrot.slane %v2782, %v2795
    %v2797 = vcombine.low %v2764, %v2776
    %v2798 = vcombine.high %v2764, %v2776
    %v2800 = vunpack.c.l.s4 1983009808
    %v2801 = vunpack.c.0.s8 %v2800
    %v2802 = vlaneseq
    %v2803 = vshrl.u32 %v2802, 7
    %v2804 = vsub.s32 %v2801, %v2803
    %v2805 = vrot.slane %v2797, %v2804
    %v2807 = vunpack.c.l.s4 1983009808
    %v2808 = vunpack.c.0.s8 %v2807
    %v2809 = vlaneseq
    %v2810 = vshrl.u32 %v2809, 7
    %v2811 = vsub.s32 %v2808, %v2810
    %v2812 = vrot.slane %v2798, %v2811
    %v2813 = vcombine.low %v2789, %v2805
    %v2814 = vcombine.high %v2789, %v2805
    %v2816 = vunpack.c.l.s4 1934713408
    %v2817 = vunpack.c.0.s8 %v2816
    %v2818 = vlaneseq
    %v2819 = vshrl.u32 %v2818, 7
    %v2820 = vsub.s32 %v2817, %v2819
    %v2821 = vrot.slane %v2813, %v2820
    %v2823 = vunpack.c.l.s4 1934713408
    %v2824 = vunpack.c.0.s8 %v2823
    %v2825 = vlaneseq
    %v2826 = vshrl.u32 %v2825, 7
    %v2827 = vsub.s32 %v2824, %v2826
    %v2828 = vrot.slane %v2814, %v2827
    %v2829 = vcombine.low %v2796, %v2812
    %v2830 = vcombine.high %v2796, %v2812
    %v2832 = vunpack.c.l.s4 1934713408
    %v2833 = vunpack.c.0.s8 %v2832
    %v2834 = vlaneseq
    %v2835 = vshrl.u32 %v2834, 7
    %v2836 = vsub.s32 %v2833, %v2835
    %v2837 = vrot.slane %v2829, %v2836
    %v2839 = vunpack.c.l.s4 1934713408
    %v2840 = vunpack.c.0.s8 %v2839
    %v2841 = vlaneseq
    %v2842 = vshrl.u32 %v2841, 7
    %v2843 = vsub.s32 %v2840, %v2842
    %v2844 = vrot.slane %v2830, %v2843
    %v2845 = vcombine.high %v2821, 0.0
    %v2846 = vcombine.high %v2828, 0.0
    %v2847 = vcombine.high %v2837, 0.0
    %v2848 = vcombine.high %v2844, 0.0
    %v2849 = vcombine.low %v2758, %v2772
    %v2850 = vcombine.high %v2758, %v2772
    %v2852 = vunpack.c.l.s4 1983009808
    %v2853 = vunpack.c.0.s8 %v2852
    %v2854 = vlaneseq
    %v2855 = vshrl.u32 %v2854, 7
    %v2856 = vsub.s32 %v2853, %v2855
    %v2857 = vrot.slane %v2849, %v2856
    %v2859 = vunpack.c.l.s4 1983009808
    %v2860 = vunpack.c.0.s8 %v2859
    %v2861 = vlaneseq
    %v2862 = vshrl.u32 %v2861, 7
    %v2863 = vsub.s32 %v2860, %v2862
    %v2864 = vrot.slane %v2850, %v2863
    %v2865 = vcombine.low %v2766, %v2778
    %v2866 = vcombine.high %v2766, %v2778
    %v2868 = vunpack.c.l.s4 1983009808
    %v2869 = vunpack.c.0.s8 %v2868
    %v2870 = vlaneseq
    %v2871 = vshrl.u32 %v2870, 7
    %v2872 = vsub.s32 %v2869, %v2871
    %v2873 = vrot.slane %v2865, %v2872
    %v2875 = vunpack.c.l.s4 1983009808
    %v2876 = vunpack.c.0.s8 %v2875
    %v2877 = vlaneseq
    %v2878 = vshrl.u32 %v2877, 7
    %v2879 = vsub.s32 %v2876, %v2878
    %v2880 = vrot.slane %v2866, %v2879
    %v2881 = vcombine.low %v2857, %v2873
    %v2882 = vcombine.high %v2857, %v2873
    %v2884 = vunpack.c.l.s4 1934713408
    %v2885 = vunpack.c.0.s8 %v2884
    %v2886 = vlaneseq
    %v2887 = vshrl.u32 %v2886, 7
    %v2888 = vsub.s32 %v2885, %v2887
    %v2889 = vrot.slane %v2881, %v2888
    %v2891 = vunpack.c.l.s4 1934713408
    %v2892 = vunpack.c.0.s8 %v2891
    %v2893 = vlaneseq
    %v2894 = vshrl.u32 %v2893, 7
    %v2895 = vsub.s32 %v2892, %v2894
    %v2896 = vrot.slane %v2882, %v2895
    %v2897 = vcombine.low %v2864, %v2880
    %v2898 = vcombine.high %v2864, %v2880
    %v2900 = vunpack.c.l.s4 1934713408
    %v2901 = vunpack.c.0.s8 %v2900
    %v2902 = vlaneseq
    %v2903 = vshrl.u32 %v2902, 7
    %v2904 = vsub.s32 %v2901, %v2903
    %v2905 = vrot.slane %v2897, %v2904
    %v2907 = vunpack.c.l.s4 1934713408
    %v2908 = vunpack.c.0.s8 %v2907
    %v2909 = vlaneseq
    %v2910 = vshrl.u32 %v2909, 7
    %v2911 = vsub.s32 %v2908, %v2910
    %v2912 = vrot.slane %v2898, %v2911
    %v2913 = vcombine.high %v2889, 0.0
    %v2914 = vcombine.high %v2896, 0.0
    %v2915 = vcombine.high %v2905, 0.0
    %v2916 = vcombine.high %v2912, 0.0
    %v2917 = vcombine.low %v2821, %v2828
    %v2919 = vunpack.c.l.s4 1983009808
    %v2920 = vunpack.c.0.s8 %v2919
    %v2921 = vlaneseq
    %v2922 = vshrl.u32 %v2921, 7
    %v2923 = vsub.s32 %v2920, %v2922
    %v2924 = vrot.slane %v2917, %v2923
    %v2925 = vcombine.low %v2845, %v2846
    %v2927 = vunpack.c.l.s4 1983009808
    %v2928 = vunpack.c.0.s8 %v2927
    %v2929 = vlaneseq
    %v2930 = vshrl.u32 %v2929, 7
    %v2931 = vsub.s32 %v2928, %v2930
    %v2932 = vrot.slane %v2925, %v2931
    %v2933 = vcombine.low %v2837, %v2844
    %v2935 = vunpack.c.l.s4 1983009808
    %v2936 = vunpack.c.0.s8 %v2935
    %v2937 = vlaneseq
    %v2938 = vshrl.u32 %v2937, 7
    %v2939 = vsub.s32 %v2936, %v2938
    %v2940 = vrot.slane %v2933, %v2939
    %v2941 = vcombine.low %v2847, %v2848
    %v2943 = vunpack.c.l.s4 1983009808
    %v2944 = vunpack.c.0.s8 %v2943
    %v2945 = vlaneseq
    %v2946 = vshrl.u32 %v2945, 7
    %v2947 = vsub.s32 %v2944, %v2946
    %v2948 = vrot.slane %v2941, %v2947
    %v2949 = vcombine.low %v2924, %v2932
    %v2950 = vcombine.high %v2924, %v2932
    %v2952 = vunpack.c.l.s4 1934713408
    %v2953 = vunpack.c.0.s8 %v2952
    %v2954 = vlaneseq
    %v2955 = vshrl.u32 %v2954, 7
    %v2956 = vsub.s32 %v2953, %v2955
    %v2957 = vrot.slane %v2949, %v2956
    %v2959 = vunpack.c.l.s4 1934713408
    %v2960 = vunpack.c.0.s8 %v2959
    %v2961 = vlaneseq
    %v2962 = vshrl.u32 %v2961, 7
    %v2963 = vsub.s32 %v2960, %v2962
    %v2964 = vrot.slane %v2950, %v2963
    %v2965 = vcombine.low %v2940, %v2948
    %v2966 = vcombine.high %v2940, %v2948
    %v2968 = vunpack.c.l.s4 1934713408
    %v2969 = vunpack.c.0.s8 %v2968
    %v2970 = vlaneseq
    %v2971 = vshrl.u32 %v2970, 7
    %v2972 = vsub.s32 %v2969, %v2971
    %v2973 = vrot.slane %v2965, %v2972
    %v2975 = vunpack.c.l.s4 1934713408
    %v2976 = vunpack.c.0.s8 %v2975
    %v2977 = vlaneseq
    %v2978 = vshrl.u32 %v2977, 7
    %v2979 = vsub.s32 %v2976, %v2978
    %v2980 = vrot.slane %v2966, %v2979
    %v2981 = vcombine.low %v2957, %v2973
    %v2982 = vcombine.high %v2957, %v2973
    %v2983 = vcombine.low %v2964, %v2980
    %v2984 = vcombine.high %v2964, %v2980
    %v2985 = vcombine.low %v2889, %v2896
    %v2987 = vunpack.c.l.s4 1983009808
    %v2988 = vunpack.c.0.s8 %v2987
    %v2989 = vlaneseq
    %v2990 = vshrl.u32 %v2989, 7
    %v2991 = vsub.s32 %v2988, %v2990
    %v2992 = vrot.slane %v2985, %v2991
    %v2993 = vcombine.low %v2913, %v2914
    %v2995 = vunpack.c.l.s4 1983009808
    %v2996 = vunpack.c.0.s8 %v2995
    %v2997 = vlaneseq
    %v2998 = vshrl.u32 %v2997, 7
    %v2999 = vsub.s32 %v2996, %v2998
    %v3000 = vrot.slane %v2993, %v2999
    %v3001 = vcombine.low %v2905, %v2912
    %v3003 = vunpack.c.l.s4 1983009808
    %v3004 = vunpack.c.0.s8 %v3003
    %v3005 = vlaneseq
    %v3006 = vshrl.u32 %v3005, 7
    %v3007 = vsub.s32 %v3004, %v3006
    %v3008 = vrot.slane %v3001, %v3007
    %v3009 = vcombine.low %v2915, %v2916
    %v3011 = vunpack.c.l.s4 1983009808
    %v3012 = vunpack.c.0.s8 %v3011
    %v3013 = vlaneseq
    %v3014 = vshrl.u32 %v3013, 7
    %v3015 = vsub.s32 %v3012, %v3014
    %v3016 = vrot.slane %v3009, %v3015
    %v3017 = vcombine.low %v2992, %v3000
    %v3018 = vcombine.high %v2992, %v3000
    %v3020 = vunpack.c.l.s4 1934713408
    %v3021 = vunpack.c.0.s8 %v3020
    %v3022 = vlaneseq
    %v3023 = vshrl.u32 %v3022, 7
    %v3024 = vsub.s32 %v3021, %v3023
    %v3025 = vrot.slane %v3017, %v3024
    %v3027 = vunpack.c.l.s4 1934713408
    %v3028 = vunpack.c.0.s8 %v3027
    %v3029 = vlaneseq
    %v3030 = vshrl.u32 %v3029, 7
    %v3031 = vsub.s32 %v3028, %v3030
    %v3032 = vrot.slane %v3018, %v3031
    %v3033 = vcombine.low %v3008, %v3016
    %v3034 = vcombine.high %v3008, %v3016
    %v3036 = vunpack.c.l.s4 1934713408
    %v3037 = vunpack.c.0.s8 %v3036
    %v3038 = vlaneseq
    %v3039 = vshrl.u32 %v3038, 7
    %v3040 = vsub.s32 %v3037, %v3039
    %v3041 = vrot.slane %v3033, %v3040
    %v3043 = vunpack.c.l.s4 1934713408
    %v3044 = vunpack.c.0.s8 %v3043
    %v3045 = vlaneseq
    %v3046 = vshrl.u32 %v3045, 7
    %v3047 = vsub.s32 %v3044, %v3046
    %v3048 = vrot.slane %v3034, %v3047
    %v3049 = vcombine.low %v3025, %v3041
    %v3050 = vcombine.high %v3025, %v3041
    %v3051 = vcombine.low %v3032, %v3048
    %v3052 = vcombine.high %v3032, %v3048
    %3053 = vrot.lane.b32.xlu0 %v2753, 96
    %v3054 = vpop.permute.xlu0 %3053
    %3055 = vrot.lane.b32.xlu0 %v2758, 96
    %v3056 = vpop.permute.xlu0 %3055
    %3057 = vrot.lane.b32.xlu0 %v2764, 96
    %v3058 = vpop.permute.xlu0 %3057
    %3059 = vrot.lane.b32.xlu0 %v2766, 96
    %v3060 = vpop.permute.xlu0 %3059
    %3061 = vrot.lane.b32.xlu0 %v2770, 96
    %v3062 = vpop.permute.xlu0 %3061
    %3063 = vrot.lane.b32.xlu0 %v2772, 96
    %v3064 = vpop.permute.xlu0 %3063
    %3065 = vrot.lane.b32.xlu0 %v2776, 96
    %v3066 = vpop.permute.xlu0 %3065
    %3067 = vrot.lane.b32.xlu0 %v2778, 96
    %v3068 = vpop.permute.xlu0 %3067
    %v3077 = vcombine.low %v3054, %v3062
    %v3078 = vcombine.high %v3054, %v3062
    %v3080 = vunpack.c.l.s4 1983009808
    %v3081 = vunpack.c.0.s8 %v3080
    %v3082 = vlaneseq
    %v3083 = vshrl.u32 %v3082, 7
    %v3084 = vsub.s32 %v3081, %v3083
    %v3085 = vrot.slane %v3077, %v3084
    %v3087 = vunpack.c.l.s4 1983009808
    %v3088 = vunpack.c.0.s8 %v3087
    %v3089 = vlaneseq
    %v3090 = vshrl.u32 %v3089, 7
    %v3091 = vsub.s32 %v3088, %v3090
    %v3092 = vrot.slane %v3078, %v3091
    %v3093 = vcombine.low %v3058, %v3066
    %v3094 = vcombine.high %v3058, %v3066
    %v3096 = vunpack.c.l.s4 1983009808
    %v3097 = vunpack.c.0.s8 %v3096
    %v3098 = vlaneseq
    %v3099 = vshrl.u32 %v3098, 7
    %v3100 = vsub.s32 %v3097, %v3099
    %v3101 = vrot.slane %v3093, %v3100
    %v3103 = vunpack.c.l.s4 1983009808
    %v3104 = vunpack.c.0.s8 %v3103
    %v3105 = vlaneseq
    %v3106 = vshrl.u32 %v3105, 7
    %v3107 = vsub.s32 %v3104, %v3106
    %v3108 = vrot.slane %v3094, %v3107
    %v3109 = vcombine.low %v3085, %v3101
    %v3110 = vcombine.high %v3085, %v3101
    %v3112 = vunpack.c.l.s4 1934713408
    %v3113 = vunpack.c.0.s8 %v3112
    %v3114 = vlaneseq
    %v3115 = vshrl.u32 %v3114, 7
    %v3116 = vsub.s32 %v3113, %v3115
    %v3117 = vrot.slane %v3109, %v3116
    %v3119 = vunpack.c.l.s4 1934713408
    %v3120 = vunpack.c.0.s8 %v3119
    %v3121 = vlaneseq
    %v3122 = vshrl.u32 %v3121, 7
    %v3123 = vsub.s32 %v3120, %v3122
    %v3124 = vrot.slane %v3110, %v3123
    %v3125 = vcombine.low %v3092, %v3108
    %v3126 = vcombine.high %v3092, %v3108
    %v3128 = vunpack.c.l.s4 1934713408
    %v3129 = vunpack.c.0.s8 %v3128
    %v3130 = vlaneseq
    %v3131 = vshrl.u32 %v3130, 7
    %v3132 = vsub.s32 %v3129, %v3131
    %v3133 = vrot.slane %v3125, %v3132
    %v3135 = vunpack.c.l.s4 1934713408
    %v3136 = vunpack.c.0.s8 %v3135
    %v3137 = vlaneseq
    %v3138 = vshrl.u32 %v3137, 7
    %v3139 = vsub.s32 %v3136, %v3138
    %v3140 = vrot.slane %v3126, %v3139
    %v3141 = vcombine.high %v3117, 0.0
    %v3142 = vcombine.high %v3124, 0.0
    %v3143 = vcombine.high %v3133, 0.0
    %v3144 = vcombine.high %v3140, 0.0
    %v3145 = vcombine.low %v3056, %v3064
    %v3146 = vcombine.high %v3056, %v3064
    %v3148 = vunpack.c.l.s4 1983009808
    %v3149 = vunpack.c.0.s8 %v3148
    %v3150 = vlaneseq
    %v3151 = vshrl.u32 %v3150, 7
    %v3152 = vsub.s32 %v3149, %v3151
    %v3153 = vrot.slane %v3145, %v3152
    %v3155 = vunpack.c.l.s4 1983009808
    %v3156 = vunpack.c.0.s8 %v3155
    %v3157 = vlaneseq
    %v3158 = vshrl.u32 %v3157, 7
    %v3159 = vsub.s32 %v3156, %v3158
    %v3160 = vrot.slane %v3146, %v3159
    %v3161 = vcombine.low %v3060, %v3068
    %v3162 = vcombine.high %v3060, %v3068
    %v3164 = vunpack.c.l.s4 1983009808
    %v3165 = vunpack.c.0.s8 %v3164
    %v3166 = vlaneseq
    %v3167 = vshrl.u32 %v3166, 7
    %v3168 = vsub.s32 %v3165, %v3167
    %v3169 = vrot.slane %v3161, %v3168
    %v3171 = vunpack.c.l.s4 1983009808
    %v3172 = vunpack.c.0.s8 %v3171
    %v3173 = vlaneseq
    %v3174 = vshrl.u32 %v3173, 7
    %v3175 = vsub.s32 %v3172, %v3174
    %v3176 = vrot.slane %v3162, %v3175
    %v3177 = vcombine.low %v3153, %v3169
    %v3178 = vcombine.high %v3153, %v3169
    %v3180 = vunpack.c.l.s4 1934713408
    %v3181 = vunpack.c.0.s8 %v3180
    %v3182 = vlaneseq
    %v3183 = vshrl.u32 %v3182, 7
    %v3184 = vsub.s32 %v3181, %v3183
    %v3185 = vrot.slane %v3177, %v3184
    %v3187 = vunpack.c.l.s4 1934713408
    %v3188 = vunpack.c.0.s8 %v3187
    %v3189 = vlaneseq
    %v3190 = vshrl.u32 %v3189, 7
    %v3191 = vsub.s32 %v3188, %v3190
    %v3192 = vrot.slane %v3178, %v3191
    %v3193 = vcombine.low %v3160, %v3176
    %v3194 = vcombine.high %v3160, %v3176
    %v3196 = vunpack.c.l.s4 1934713408
    %v3197 = vunpack.c.0.s8 %v3196
    %v3198 = vlaneseq
    %v3199 = vshrl.u32 %v3198, 7
    %v3200 = vsub.s32 %v3197, %v3199
    %v3201 = vrot.slane %v3193, %v3200
    %v3203 = vunpack.c.l.s4 1934713408
    %v3204 = vunpack.c.0.s8 %v3203
    %v3205 = vlaneseq
    %v3206 = vshrl.u32 %v3205, 7
    %v3207 = vsub.s32 %v3204, %v3206
    %v3208 = vrot.slane %v3194, %v3207
    %v3209 = vcombine.high %v3185, 0.0
    %v3210 = vcombine.high %v3192, 0.0
    %v3211 = vcombine.high %v3201, 0.0
    %v3212 = vcombine.high %v3208, 0.0
    %v3213 = vcombine.low %v3117, %v3124
    %v3215 = vunpack.c.l.s4 1983009808
    %v3216 = vunpack.c.0.s8 %v3215
    %v3217 = vlaneseq
    %v3218 = vshrl.u32 %v3217, 7
    %v3219 = vsub.s32 %v3216, %v3218
    %v3220 = vrot.slane %v3213, %v3219
    %v3221 = vcombine.low %v3141, %v3142
    %v3223 = vunpack.c.l.s4 1983009808
    %v3224 = vunpack.c.0.s8 %v3223
    %v3225 = vlaneseq
    %v3226 = vshrl.u32 %v3225, 7
    %v3227 = vsub.s32 %v3224, %v3226
    %v3228 = vrot.slane %v3221, %v3227
    %v3229 = vcombine.low %v3133, %v3140
    %v3231 = vunpack.c.l.s4 1983009808
    %v3232 = vunpack.c.0.s8 %v3231
    %v3233 = vlaneseq
    %v3234 = vshrl.u32 %v3233, 7
    %v3235 = vsub.s32 %v3232, %v3234
    %v3236 = vrot.slane %v3229, %v3235
    %v3237 = vcombine.low %v3143, %v3144
    %v3239 = vunpack.c.l.s4 1983009808
    %v3240 = vunpack.c.0.s8 %v3239
    %v3241 = vlaneseq
    %v3242 = vshrl.u32 %v3241, 7
    %v3243 = vsub.s32 %v3240, %v3242
    %v3244 = vrot.slane %v3237, %v3243
    %v3245 = vcombine.low %v3220, %v3228
    %v3246 = vcombine.high %v3220, %v3228
    %v3248 = vunpack.c.l.s4 1934713408
    %v3249 = vunpack.c.0.s8 %v3248
    %v3250 = vlaneseq
    %v3251 = vshrl.u32 %v3250, 7
    %v3252 = vsub.s32 %v3249, %v3251
    %v3253 = vrot.slane %v3245, %v3252
    %v3255 = vunpack.c.l.s4 1934713408
    %v3256 = vunpack.c.0.s8 %v3255
    %v3257 = vlaneseq
    %v3258 = vshrl.u32 %v3257, 7
    %v3259 = vsub.s32 %v3256, %v3258
    %v3260 = vrot.slane %v3246, %v3259
    %v3261 = vcombine.low %v3236, %v3244
    %v3262 = vcombine.high %v3236, %v3244
    %v3264 = vunpack.c.l.s4 1934713408
    %v3265 = vunpack.c.0.s8 %v3264
    %v3266 = vlaneseq
    %v3267 = vshrl.u32 %v3266, 7
    %v3268 = vsub.s32 %v3265, %v3267
    %v3269 = vrot.slane %v3261, %v3268
    %v3271 = vunpack.c.l.s4 1934713408
    %v3272 = vunpack.c.0.s8 %v3271
    %v3273 = vlaneseq
    %v3274 = vshrl.u32 %v3273, 7
    %v3275 = vsub.s32 %v3272, %v3274
    %v3276 = vrot.slane %v3262, %v3275
    %v3277 = vcombine.low %v3253, %v3269
    %v3278 = vcombine.high %v3253, %v3269
    %v3279 = vcombine.low %v3260, %v3276
    %v3280 = vcombine.high %v3260, %v3276
    %v3281 = vcombine.low %v3185, %v3192
    %v3283 = vunpack.c.l.s4 1983009808
    %v3284 = vunpack.c.0.s8 %v3283
    %v3285 = vlaneseq
    %v3286 = vshrl.u32 %v3285, 7
    %v3287 = vsub.s32 %v3284, %v3286
    %v3288 = vrot.slane %v3281, %v3287
    %v3289 = vcombine.low %v3209, %v3210
    %v3291 = vunpack.c.l.s4 1983009808
    %v3292 = vunpack.c.0.s8 %v3291
    %v3293 = vlaneseq
    %v3294 = vshrl.u32 %v3293, 7
    %v3295 = vsub.s32 %v3292, %v3294
    %v3296 = vrot.slane %v3289, %v3295
    %v3297 = vcombine.low %v3201, %v3208
    %v3299 = vunpack.c.l.s4 1983009808
    %v3300 = vunpack.c.0.s8 %v3299
    %v3301 = vlaneseq
    %v3302 = vshrl.u32 %v3301, 7
    %v3303 = vsub.s32 %v3300, %v3302
    %v3304 = vrot.slane %v3297, %v3303
    %v3305 = vcombine.low %v3211, %v3212
    %v3307 = vunpack.c.l.s4 1983009808
    %v3308 = vunpack.c.0.s8 %v3307
    %v3309 = vlaneseq
    %v3310 = vshrl.u32 %v3309, 7
    %v3311 = vsub.s32 %v3308, %v3310
    %v3312 = vrot.slane %v3305, %v3311
    %v3313 = vcombine.low %v3288, %v3296
    %v3314 = vcombine.high %v3288, %v3296
    %v3316 = vunpack.c.l.s4 1934713408
    %v3317 = vunpack.c.0.s8 %v3316
    %v3318 = vlaneseq
    %v3319 = vshrl.u32 %v3318, 7
    %v3320 = vsub.s32 %v3317, %v3319
    %v3321 = vrot.slane %v3313, %v3320
    %v3323 = vunpack.c.l.s4 1934713408
    %v3324 = vunpack.c.0.s8 %v3323
    %v3325 = vlaneseq
    %v3326 = vshrl.u32 %v3325, 7
    %v3327 = vsub.s32 %v3324, %v3326
    %v3328 = vrot.slane %v3314, %v3327
    %v3329 = vcombine.low %v3304, %v3312
    %v3330 = vcombine.high %v3304, %v3312
    %v3332 = vunpack.c.l.s4 1934713408
    %v3333 = vunpack.c.0.s8 %v3332
    %v3334 = vlaneseq
    %v3335 = vshrl.u32 %v3334, 7
    %v3336 = vsub.s32 %v3333, %v3335
    %v3337 = vrot.slane %v3329, %v3336
    %v3339 = vunpack.c.l.s4 1934713408
    %v3340 = vunpack.c.0.s8 %v3339
    %v3341 = vlaneseq
    %v3342 = vshrl.u32 %v3341, 7
    %v3343 = vsub.s32 %v3340, %v3342
    %v3344 = vrot.slane %v3330, %v3343
    %v3345 = vcombine.low %v3321, %v3337
    %v3346 = vcombine.high %v3321, %v3337
    %v3347 = vcombine.low %v3328, %v3344
    %v3348 = vcombine.high %v3328, %v3344
    %3349 = vrot.lane.b32.xlu0 %v2753, 64
    %v3350 = vpop.permute.xlu0 %3349
    %3351 = vrot.lane.b32.xlu0 %v2758, 64
    %v3352 = vpop.permute.xlu0 %3351
    %3353 = vrot.lane.b32.xlu0 %v2764, 64
    %v3354 = vpop.permute.xlu0 %3353
    %3355 = vrot.lane.b32.xlu0 %v2766, 64
    %v3356 = vpop.permute.xlu0 %3355
    %3357 = vrot.lane.b32.xlu0 %v2770, 64
    %v3358 = vpop.permute.xlu0 %3357
    %3359 = vrot.lane.b32.xlu0 %v2772, 64
    %v3360 = vpop.permute.xlu0 %3359
    %3361 = vrot.lane.b32.xlu0 %v2776, 64
    %v3362 = vpop.permute.xlu0 %3361
    %3363 = vrot.lane.b32.xlu0 %v2778, 64
    %v3364 = vpop.permute.xlu0 %3363
    %v3373 = vcombine.low %v3350, %v3358
    %v3374 = vcombine.high %v3350, %v3358
    %v3376 = vunpack.c.l.s4 1983009808
    %v3377 = vunpack.c.0.s8 %v3376
    %v3378 = vlaneseq
    %v3379 = vshrl.u32 %v3378, 7
    %v3380 = vsub.s32 %v3377, %v3379
    %v3381 = vrot.slane %v3373, %v3380
    %v3383 = vunpack.c.l.s4 1983009808
    %v3384 = vunpack.c.0.s8 %v3383
    %v3385 = vlaneseq
    %v3386 = vshrl.u32 %v3385, 7
    %v3387 = vsub.s32 %v3384, %v3386
    %v3388 = vrot.slane %v3374, %v3387
    %v3389 = vcombine.low %v3354, %v3362
    %v3390 = vcombine.high %v3354, %v3362
    %v3392 = vunpack.c.l.s4 1983009808
    %v3393 = vunpack.c.0.s8 %v3392
    %v3394 = vlaneseq
    %v3395 = vshrl.u32 %v3394, 7
    %v3396 = vsub.s32 %v3393, %v3395
    %v3397 = vrot.slane %v3389, %v3396
    %v3399 = vunpack.c.l.s4 1983009808
    %v3400 = vunpack.c.0.s8 %v3399
    %v3401 = vlaneseq
    %v3402 = vshrl.u32 %v3401, 7
    %v3403 = vsub.s32 %v3400, %v3402
    %v3404 = vrot.slane %v3390, %v3403
    %v3405 = vcombine.low %v3381, %v3397
    %v3406 = vcombine.high %v3381, %v3397
    %v3408 = vunpack.c.l.s4 1934713408
    %v3409 = vunpack.c.0.s8 %v3408
    %v3410 = vlaneseq
    %v3411 = vshrl.u32 %v3410, 7
    %v3412 = vsub.s32 %v3409, %v3411
    %v3413 = vrot.slane %v3405, %v3412
    %v3415 = vunpack.c.l.s4 1934713408
    %v3416 = vunpack.c.0.s8 %v3415
    %v3417 = vlaneseq
    %v3418 = vshrl.u32 %v3417, 7
    %v3419 = vsub.s32 %v3416, %v3418
    %v3420 = vrot.slane %v3406, %v3419
    %v3421 = vcombine.low %v3388, %v3404
    %v3422 = vcombine.high %v3388, %v3404
    %v3424 = vunpack.c.l.s4 1934713408
    %v3425 = vunpack.c.0.s8 %v3424
    %v3426 = vlaneseq
    %v3427 = vshrl.u32 %v3426, 7
    %v3428 = vsub.s32 %v3425, %v3427
    %v3429 = vrot.slane %v3421, %v3428
    %v3431 = vunpack.c.l.s4 1934713408
    %v3432 = vunpack.c.0.s8 %v3431
    %v3433 = vlaneseq
    %v3434 = vshrl.u32 %v3433, 7
    %v3435 = vsub.s32 %v3432, %v3434
    %v3436 = vrot.slane %v3422, %v3435
    %v3437 = vcombine.high %v3413, 0.0
    %v3438 = vcombine.high %v3420, 0.0
    %v3439 = vcombine.high %v3429, 0.0
    %v3440 = vcombine.high %v3436, 0.0
    %v3441 = vcombine.low %v3352, %v3360
    %v3442 = vcombine.high %v3352, %v3360
    %v3444 = vunpack.c.l.s4 1983009808
    %v3445 = vunpack.c.0.s8 %v3444
    %v3446 = vlaneseq
    %v3447 = vshrl.u32 %v3446, 7
    %v3448 = vsub.s32 %v3445, %v3447
    %v3449 = vrot.slane %v3441, %v3448
    %v3451 = vunpack.c.l.s4 1983009808
    %v3452 = vunpack.c.0.s8 %v3451
    %v3453 = vlaneseq
    %v3454 = vshrl.u32 %v3453, 7
    %v3455 = vsub.s32 %v3452, %v3454
    %v3456 = vrot.slane %v3442, %v3455
    %v3457 = vcombine.low %v3356, %v3364
    %v3458 = vcombine.high %v3356, %v3364
    %v3460 = vunpack.c.l.s4 1983009808
    %v3461 = vunpack.c.0.s8 %v3460
    %v3462 = vlaneseq
    %v3463 = vshrl.u32 %v3462, 7
    %v3464 = vsub.s32 %v3461, %v3463
    %v3465 = vrot.slane %v3457, %v3464
    %v3467 = vunpack.c.l.s4 1983009808
    %v3468 = vunpack.c.0.s8 %v3467
    %v3469 = vlaneseq
    %v3470 = vshrl.u32 %v3469, 7
    %v3471 = vsub.s32 %v3468, %v3470
    %v3472 = vrot.slane %v3458, %v3471
    %v3473 = vcombine.low %v3449, %v3465
    %v3474 = vcombine.high %v3449, %v3465
    %v3476 = vunpack.c.l.s4 1934713408
    %v3477 = vunpack.c.0.s8 %v3476
    %v3478 = vlaneseq
    %v3479 = vshrl.u32 %v3478, 7
    %v3480 = vsub.s32 %v3477, %v3479
    %v3481 = vrot.slane %v3473, %v3480
    %v3483 = vunpack.c.l.s4 1934713408
    %v3484 = vunpack.c.0.s8 %v3483
    %v3485 = vlaneseq
    %v3486 = vshrl.u32 %v3485, 7
    %v3487 = vsub.s32 %v3484, %v3486
    %v3488 = vrot.slane %v3474, %v3487
    %v3489 = vcombine.low %v3456, %v3472
    %v3490 = vcombine.high %v3456, %v3472
    %v3492 = vunpack.c.l.s4 1934713408
    %v3493 = vunpack.c.0.s8 %v3492
    %v3494 = vlaneseq
    %v3495 = vshrl.u32 %v3494, 7
    %v3496 = vsub.s32 %v3493, %v3495
    %v3497 = vrot.slane %v3489, %v3496
    %v3499 = vunpack.c.l.s4 1934713408
    %v3500 = vunpack.c.0.s8 %v3499
    %v3501 = vlaneseq
    %v3502 = vshrl.u32 %v3501, 7
    %v3503 = vsub.s32 %v3500, %v3502
    %v3504 = vrot.slane %v3490, %v3503
    %v3505 = vcombine.high %v3481, 0.0
    %v3506 = vcombine.high %v3488, 0.0
    %v3507 = vcombine.high %v3497, 0.0
    %v3508 = vcombine.high %v3504, 0.0
    %v3509 = vcombine.low %v3413, %v3420
    %v3511 = vunpack.c.l.s4 1983009808
    %v3512 = vunpack.c.0.s8 %v3511
    %v3513 = vlaneseq
    %v3514 = vshrl.u32 %v3513, 7
    %v3515 = vsub.s32 %v3512, %v3514
    %v3516 = vrot.slane %v3509, %v3515
    %v3517 = vcombine.low %v3437, %v3438
    %v3519 = vunpack.c.l.s4 1983009808
    %v3520 = vunpack.c.0.s8 %v3519
    %v3521 = vlaneseq
    %v3522 = vshrl.u32 %v3521, 7
    %v3523 = vsub.s32 %v3520, %v3522
    %v3524 = vrot.slane %v3517, %v3523
    %v3525 = vcombine.low %v3429, %v3436
    %v3527 = vunpack.c.l.s4 1983009808
    %v3528 = vunpack.c.0.s8 %v3527
    %v3529 = vlaneseq
    %v3530 = vshrl.u32 %v3529, 7
    %v3531 = vsub.s32 %v3528, %v3530
    %v3532 = vrot.slane %v3525, %v3531
    %v3533 = vcombine.low %v3439, %v3440
    %v3535 = vunpack.c.l.s4 1983009808
    %v3536 = vunpack.c.0.s8 %v3535
    %v3537 = vlaneseq
    %v3538 = vshrl.u32 %v3537, 7
    %v3539 = vsub.s32 %v3536, %v3538
    %v3540 = vrot.slane %v3533, %v3539
    %v3541 = vcombine.low %v3516, %v3524
    %v3542 = vcombine.high %v3516, %v3524
    %v3544 = vunpack.c.l.s4 1934713408
    %v3545 = vunpack.c.0.s8 %v3544
    %v3546 = vlaneseq
    %v3547 = vshrl.u32 %v3546, 7
    %v3548 = vsub.s32 %v3545, %v3547
    %v3549 = vrot.slane %v3541, %v3548
    %v3551 = vunpack.c.l.s4 1934713408
    %v3552 = vunpack.c.0.s8 %v3551
    %v3553 = vlaneseq
    %v3554 = vshrl.u32 %v3553, 7
    %v3555 = vsub.s32 %v3552, %v3554
    %v3556 = vrot.slane %v3542, %v3555
    %v3557 = vcombine.low %v3532, %v3540
    %v3558 = vcombine.high %v3532, %v3540
    %v3560 = vunpack.c.l.s4 1934713408
    %v3561 = vunpack.c.0.s8 %v3560
    %v3562 = vlaneseq
    %v3563 = vshrl.u32 %v3562, 7
    %v3564 = vsub.s32 %v3561, %v3563
    %v3565 = vrot.slane %v3557, %v3564
    %v3567 = vunpack.c.l.s4 1934713408
    %v3568 = vunpack.c.0.s8 %v3567
    %v3569 = vlaneseq
    %v3570 = vshrl.u32 %v3569, 7
    %v3571 = vsub.s32 %v3568, %v3570
    %v3572 = vrot.slane %v3558, %v3571
    %v3573 = vcombine.low %v3549, %v3565
    %v3574 = vcombine.high %v3549, %v3565
    %v3575 = vcombine.low %v3556, %v3572
    %v3576 = vcombine.high %v3556, %v3572
    %v3577 = vcombine.low %v3481, %v3488
    %v3579 = vunpack.c.l.s4 1983009808
    %v3580 = vunpack.c.0.s8 %v3579
    %v3581 = vlaneseq
    %v3582 = vshrl.u32 %v3581, 7
    %v3583 = vsub.s32 %v3580, %v3582
    %v3584 = vrot.slane %v3577, %v3583
    %v3585 = vcombine.low %v3505, %v3506
    %v3587 = vunpack.c.l.s4 1983009808
    %v3588 = vunpack.c.0.s8 %v3587
    %v3589 = vlaneseq
    %v3590 = vshrl.u32 %v3589, 7
    %v3591 = vsub.s32 %v3588, %v3590
    %v3592 = vrot.slane %v3585, %v3591
    %v3593 = vcombine.low %v3497, %v3504
    %v3595 = vunpack.c.l.s4 1983009808
    %v3596 = vunpack.c.0.s8 %v3595
    %v3597 = vlaneseq
    %v3598 = vshrl.u32 %v3597, 7
    %v3599 = vsub.s32 %v3596, %v3598
    %v3600 = vrot.slane %v3593, %v3599
    %v3601 = vcombine.low %v3507, %v3508
    %v3603 = vunpack.c.l.s4 1983009808
    %v3604 = vunpack.c.0.s8 %v3603
    %v3605 = vlaneseq
    %v3606 = vshrl.u32 %v3605, 7
    %v3607 = vsub.s32 %v3604, %v3606
    %v3608 = vrot.slane %v3601, %v3607
    %v3609 = vcombine.low %v3584, %v3592
    %v3610 = vcombine.high %v3584, %v3592
    %v3612 = vunpack.c.l.s4 1934713408
    %v3613 = vunpack.c.0.s8 %v3612
    %v3614 = vlaneseq
    %v3615 = vshrl.u32 %v3614, 7
    %v3616 = vsub.s32 %v3613, %v3615
    %v3617 = vrot.slane %v3609, %v3616
    %v3619 = vunpack.c.l.s4 1934713408
    %v3620 = vunpack.c.0.s8 %v3619
    %v3621 = vlaneseq
    %v3622 = vshrl.u32 %v3621, 7
    %v3623 = vsub.s32 %v3620, %v3622
    %v3624 = vrot.slane %v3610, %v3623
    %v3625 = vcombine.low %v3600, %v3608
    %v3626 = vcombine.high %v3600, %v3608
    %v3628 = vunpack.c.l.s4 1934713408
    %v3629 = vunpack.c.0.s8 %v3628
    %v3630 = vlaneseq
    %v3631 = vshrl.u32 %v3630, 7
    %v3632 = vsub.s32 %v3629, %v3631
    %v3633 = vrot.slane %v3625, %v3632
    %v3635 = vunpack.c.l.s4 1934713408
    %v3636 = vunpack.c.0.s8 %v3635
    %v3637 = vlaneseq
    %v3638 = vshrl.u32 %v3637, 7
    %v3639 = vsub.s32 %v3636, %v3638
    %v3640 = vrot.slane %v3626, %v3639
    %v3641 = vcombine.low %v3617, %v3633
    %v3642 = vcombine.high %v3617, %v3633
    %v3643 = vcombine.low %v3624, %v3640
    %v3644 = vcombine.high %v3624, %v3640
    %v3646 = vsel %vm1206, %v2981, 0
    %v3649 = vsel %vm1206, %v3049, 0
    %v3652 = vsel %vm1206, %v3277, 0
    %v3655 = vsel %vm1206, %v3345, 0
    %3657 = vmatprep.subr.mxu0 0.0
    %3658 = vmatpush1.xpose.msra.mxu0 %v3652
    %3659 = vmatprep.subr.mxu0 0.0
    %3660 = vmatpush1.xpose.msra.mxu0 %v3655
    %3661 = vmatprep.subr.mxu0 0.0
    %3662 = vmatpush1.xpose.msra.mxu0 0.0
    %3663 = vmatprep.subr.mxu0 0.0
    %3664 = vmatpush1.xpose.msra.mxu0 0.0
    %3665 = vmatprep.subr.mxu0 0.0
    %3666 = vmatpush1.xpose.msra.mxu0 0.0
    %3667 = vmatprep.subr.mxu0 0.0
    %3668 = vmatpush1.xpose.msra.mxu0 0.0
    %3669 = vmatprep.subr.mxu0 0.0
    %3670 = vmatpush1.xpose.msra.mxu0 0.0
    %3671 = vmatprep.subr.mxu0 0.0
    %3672 = vmatpush1.xpose.msra.mxu0 0.0
    %3673 = vmatprep.subr.mxu0 0.0
    %3674 = vmatpush1.xpose.msra.mxu0 0.0
    %3675 = vmatprep.subr.mxu0 0.0
    %3676 = vmatpush1.xpose.msra.mxu0 0.0
    %3677 = vmatprep.subr.mxu0 0.0
    %3678 = vmatpush1.xpose.msra.mxu0 0.0
    %3679 = vmatprep.subr.mxu0 0.0
    %3680 = vmatpush1.xpose.msra.mxu0 0.0
    %3681 = vmatprep.subr.mxu0 0.0
    %3682 = vmatpush1.xpose.msra.mxu0 0.0
    %3683 = vmatprep.subr.mxu0 0.0
    %3684 = vmatpush1.xpose.msra.mxu0 0.0
    %3685 = vmatprep.subr.mxu0 0.0
    %3686 = vmatpush1.xpose.msra.mxu0 0.0
    %3687 = vmatprep.subr.mxu0 0.0
    %3688 = vmatpush1.xpose.msra.mxu0 0.0
    %3689 = vmatprep.subr.mxu0 0.0
    %3690 = vmatpush1.xpose.msra.mxu0 0.0
    %3691 = vmatprep.subr.mxu0 0.0
    %3692 = vmatpush1.xpose.msra.mxu0 0.0
    %3693 = vmatprep.subr.mxu0 0.0
    %3694 = vmatpush1.xpose.msra.mxu0 0.0
    %3695 = vmatprep.subr.mxu0 0.0
    %3696 = vmatpush1.xpose.msra.mxu0 0.0
    %3697 = vmatprep.subr.mxu0 0.0
    %3698 = vmatpush1.xpose.msra.mxu0 0.0
    %3699 = vmatprep.subr.mxu0 0.0
    %3700 = vmatpush1.xpose.msra.mxu0 0.0
    %3701 = vmatprep.subr.mxu0 0.0
    %3702 = vmatpush1.xpose.msra.mxu0 0.0
    %3703 = vmatprep.subr.mxu0 0.0
    %3704 = vmatpush1.xpose.msra.mxu0 0.0
    %3705 = vmatprep.subr.mxu0 0.0
    %3706 = vmatpush1.xpose.msra.mxu0 0.0
    %3707 = vmatprep.subr.mxu0 0.0
    %3708 = vmatpush1.xpose.msra.mxu0 0.0
    %3709 = vmatprep.subr.mxu0 0.0
    %3710 = vmatpush1.xpose.msra.mxu0 0.0
    %3711 = vmatprep.subr.mxu0 0.0
    %3712 = vmatpush1.xpose.msra.mxu0 0.0
    %3713 = vmatprep.subr.mxu0 0.0
    %3714 = vmatpush1.xpose.msra.mxu0 0.0
    %3715 = vmatprep.subr.mxu0 0.0
    %3716 = vmatpush1.xpose.msra.mxu0 0.0
    %3717 = vmatprep.subr.mxu0 0.0
    %3718 = vmatpush1.xpose.msra.mxu0 0.0
    %3719 = vmatprep.subr.mxu0 0.0
    %3720 = vmatpush1.xpose.msra.mxu0 0.0
    %3721 = vmatprep.mubr.f32.mxu0 0.0
    %3722 = vmatmul.mubr.f32.gmra.mrb[0].mxu0 %v3646
    %v3723 = vpop.f32.mrb[0].mxu0
    %v3724 = vadd.f32 0.0, %v3723
    %v3725 = vpop.f32.mrb[0].mxu0
    %3726 = vmatprep.mubr.f32.mxu0 0.0
    %3727 = vmatmul.mubr.f32.gmra.mrb[0].mxu0 %v3649
    %v3728 = vpop.f32.mrb[0].mxu0
    %v3729 = vadd.f32 0.0, %v3728
    %v3730 = vpop.f32.mrb[0].mxu0
    %3731 = vdwg.mxu0
    %v3733 = vsel %vm1206, %v2982, 0
    %v3736 = vsel %vm1206, %v3050, 0
    %v3739 = vsel %vm1206, %v3278, 0
    %v3742 = vsel %vm1206, %v3346, 0
    %3744 = vmatprep.subr.mxu0 0.0
    %3745 = vmatpush1.xpose.msra.mxu0 %v3739
    %3746 = vmatprep.subr.mxu0 0.0
    %3747 = vmatpush1.xpose.msra.mxu0 %v3742
    %3748 = vmatprep.subr.mxu0 0.0
    %3749 = vmatpush1.xpose.msra.mxu0 0.0
    %3750 = vmatprep.subr.mxu0 0.0
    %3751 = vmatpush1.xpose.msra.mxu0 0.0
    %3752 = vmatprep.subr.mxu0 0.0
    %3753 = vmatpush1.xpose.msra.mxu0 0.0
    %3754 = vmatprep.subr.mxu0 0.0
    %3755 = vmatpush1.xpose.msra.mxu0 0.0
    %3756 = vmatprep.subr.mxu0 0.0
    %3757 = vmatpush1.xpose.msra.mxu0 0.0
    %3758 = vmatprep.subr.mxu0 0.0
    %3759 = vmatpush1.xpose.msra.mxu0 0.0
    %3760 = vmatprep.subr.mxu0 0.0
    %3761 = vmatpush1.xpose.msra.mxu0 0.0
    %3762 = vmatprep.subr.mxu0 0.0
    %3763 = vmatpush1.xpose.msra.mxu0 0.0
    %3764 = vmatprep.subr.mxu0 0.0
    %3765 = vmatpush1.xpose.msra.mxu0 0.0
    %3766 = vmatprep.subr.mxu0 0.0
    %3767 = vmatpush1.xpose.msra.mxu0 0.0
    %3768 = vmatprep.subr.mxu0 0.0
    %3769 = vmatpush1.xpose.msra.mxu0 0.0
    %3770 = vmatprep.subr.mxu0 0.0
    %3771 = vmatpush1.xpose.msra.mxu0 0.0
    %3772 = vmatprep.subr.mxu0 0.0
    %3773 = vmatpush1.xpose.msra.mxu0 0.0
    %3774 = vmatprep.subr.mxu0 0.0
    %3775 = vmatpush1.xpose.msra.mxu0 0.0
    %3776 = vmatprep.subr.mxu0 0.0
    %3777 = vmatpush1.xpose.msra.mxu0 0.0
    %3778 = vmatprep.subr.mxu0 0.0
    %3779 = vmatpush1.xpose.msra.mxu0 0.0
    %3780 = vmatprep.subr.mxu0 0.0
    %3781 = vmatpush1.xpose.msra.mxu0 0.0
    %3782 = vmatprep.subr.mxu0 0.0
    %3783 = vmatpush1.xpose.msra.mxu0 0.0
    %3784 = vmatprep.subr.mxu0 0.0
    %3785 = vmatpush1.xpose.msra.mxu0 0.0
    %3786 = vmatprep.subr.mxu0 0.0
    %3787 = vmatpush1.xpose.msra.mxu0 0.0
    %3788 = vmatprep.subr.mxu0 0.0
    %3789 = vmatpush1.xpose.msra.mxu0 0.0
    %3790 = vmatprep.subr.mxu0 0.0
    %3791 = vmatpush1.xpose.msra.mxu0 0.0
    %3792 = vmatprep.subr.mxu0 0.0
    %3793 = vmatpush1.xpose.msra.mxu0 0.0
    %3794 = vmatprep.subr.mxu0 0.0
    %3795 = vmatpush1.xpose.msra.mxu0 0.0
    %3796 = vmatprep.subr.mxu0 0.0
    %3797 = vmatpush1.xpose.msra.mxu0 0.0
    %3798 = vmatprep.subr.mxu0 0.0
    %3799 = vmatpush1.xpose.msra.mxu0 0.0
    %3800 = vmatprep.subr.mxu0 0.0
    %3801 = vmatpush1.xpose.msra.mxu0 0.0
    %3802 = vmatprep.subr.mxu0 0.0
    %3803 = vmatpush1.xpose.msra.mxu0 0.0
    %3804 = vmatprep.subr.mxu0 0.0
    %3805 = vmatpush1.xpose.msra.mxu0 0.0
    %3806 = vmatprep.subr.mxu0 0.0
    %3807 = vmatpush1.xpose.msra.mxu0 0.0
    %3808 = vmatprep.mubr.f32.mxu0 0.0
    %3809 = vmatmul.mubr.f32.gmra.mrb[0].mxu0 %v3733
    %v3810 = vpop.f32.mrb[0].mxu0
    %v3811 = vadd.f32 0.0, %v3810
    %v3812 = vpop.f32.mrb[0].mxu0
    %3813 = vmatprep.mubr.f32.mxu0 0.0
    %3814 = vmatmul.mubr.f32.gmra.mrb[0].mxu0 %v3736
    %v3815 = vpop.f32.mrb[0].mxu0
    %v3816 = vadd.f32 0.0, %v3815
    %v3817 = vpop.f32.mrb[0].mxu0
    %3818 = vdwg.mxu0
    %v3820 = vsel %vm1206, %v2983, 0
    %v3823 = vsel %vm1206, %v3051, 0
    %v3826 = vsel %vm1206, %v3279, 0
    %v3829 = vsel %vm1206, %v3347, 0
    %3831 = vmatprep.subr.mxu0 0.0
    %3832 = vmatpush1.xpose.msra.mxu0 %v3826
    %3833 = vmatprep.subr.mxu0 0.0
    %3834 = vmatpush1.xpose.msra.mxu0 %v3829
    %3835 = vmatprep.subr.mxu0 0.0
    %3836 = vmatpush1.xpose.msra.mxu0 0.0
    %3837 = vmatprep.subr.mxu0 0.0
    %3838 = vmatpush1.xpose.msra.mxu0 0.0
    %3839 = vmatprep.subr.mxu0 0.0
    %3840 = vmatpush1.xpose.msra.mxu0 0.0
    %3841 = vmatprep.subr.mxu0 0.0
    %3842 = vmatpush1.xpose.msra.mxu0 0.0
    %3843 = vmatprep.subr.mxu0 0.0
    %3844 = vmatpush1.xpose.msra.mxu0 0.0
    %3845 = vmatprep.subr.mxu0 0.0
    %3846 = vmatpush1.xpose.msra.mxu0 0.0
    %3847 = vmatprep.subr.mxu0 0.0
    %3848 = vmatpush1.xpose.msra.mxu0 0.0
    %3849 = vmatprep.subr.mxu0 0.0
    %3850 = vmatpush1.xpose.msra.mxu0 0.0
    %3851 = vmatprep.subr.mxu0 0.0
    %3852 = vmatpush1.xpose.msra.mxu0 0.0
    %3853 = vmatprep.subr.mxu0 0.0
    %3854 = vmatpush1.xpose.msra.mxu0 0.0
    %3855 = vmatprep.subr.mxu0 0.0
    %3856 = vmatpush1.xpose.msra.mxu0 0.0
    %3857 = vmatprep.subr.mxu0 0.0
    %3858 = vmatpush1.xpose.msra.mxu0 0.0
    %3859 = vmatprep.subr.mxu0 0.0
    %3860 = vmatpush1.xpose.msra.mxu0 0.0
    %3861 = vmatprep.subr.mxu0 0.0
    %3862 = vmatpush1.xpose.msra.mxu0 0.0
    %3863 = vmatprep.subr.mxu0 0.0
    %3864 = vmatpush1.xpose.msra.mxu0 0.0
    %3865 = vmatprep.subr.mxu0 0.0
    %3866 = vmatpush1.xpose.msra.mxu0 0.0
    %3867 = vmatprep.subr.mxu0 0.0
    %3868 = vmatpush1.xpose.msra.mxu0 0.0
    %3869 = vmatprep.subr.mxu0 0.0
    %3870 = vmatpush1.xpose.msra.mxu0 0.0
    %3871 = vmatprep.subr.mxu0 0.0
    %3872 = vmatpush1.xpose.msra.mxu0 0.0
    %3873 = vmatprep.subr.mxu0 0.0
    %3874 = vmatpush1.xpose.msra.mxu0 0.0
    %3875 = vmatprep.subr.mxu0 0.0
    %3876 = vmatpush1.xpose.msra.mxu0 0.0
    %3877 = vmatprep.subr.mxu0 0.0
    %3878 = vmatpush1.xpose.msra.mxu0 0.0
    %3879 = vmatprep.subr.mxu0 0.0
    %3880 = vmatpush1.xpose.msra.mxu0 0.0
    %3881 = vmatprep.subr.mxu0 0.0
    %3882 = vmatpush1.xpose.msra.mxu0 0.0
    %3883 = vmatprep.subr.mxu0 0.0
    %3884 = vmatpush1.xpose.msra.mxu0 0.0
    %3885 = vmatprep.subr.mxu0 0.0
    %3886 = vmatpush1.xpose.msra.mxu0 0.0
    %3887 = vmatprep.subr.mxu0 0.0
    %3888 = vmatpush1.xpose.msra.mxu0 0.0
    %3889 = vmatprep.subr.mxu0 0.0
    %3890 = vmatpush1.xpose.msra.mxu0 0.0
    %3891 = vmatprep.subr.mxu0 0.0
    %3892 = vmatpush1.xpose.msra.mxu0 0.0
    %3893 = vmatprep.subr.mxu0 0.0
    %3894 = vmatpush1.xpose.msra.mxu0 0.0
    %3895 = vmatprep.mubr.f32.mxu0 0.0
    %3896 = vmatmul.mubr.f32.gmra.mrb[0].mxu0 %v3820
    %v3897 = vpop.f32.mrb[0].mxu0
    %v3898 = vadd.f32 0.0, %v3897
    %v3899 = vpop.f32.mrb[0].mxu0
    %3900 = vmatprep.mubr.f32.mxu0 0.0
    %3901 = vmatmul.mubr.f32.gmra.mrb[0].mxu0 %v3823
    %v3902 = vpop.f32.mrb[0].mxu0
    %v3903 = vadd.f32 0.0, %v3902
    %v3904 = vpop.f32.mrb[0].mxu0
    %3905 = vdwg.mxu0
    %v3907 = vsel %vm1206, %v2984, 0
    %v3910 = vsel %vm1206, %v3052, 0
    %v3913 = vsel %vm1206, %v3280, 0
    %v3916 = vsel %vm1206, %v3348, 0
    %3918 = vmatprep.subr.mxu0 0.0
    %3919 = vmatpush1.xpose.msra.mxu0 %v3913
    %3920 = vmatprep.subr.mxu0 0.0
    %3921 = vmatpush1.xpose.msra.mxu0 %v3916
    %3922 = vmatprep.subr.mxu0 0.0
    %3923 = vmatpush1.xpose.msra.mxu0 0.0
    %3924 = vmatprep.subr.mxu0 0.0
    %3925 = vmatpush1.xpose.msra.mxu0 0.0
    %3926 = vmatprep.subr.mxu0 0.0
    %3927 = vmatpush1.xpose.msra.mxu0 0.0
    %3928 = vmatprep.subr.mxu0 0.0
    %3929 = vmatpush1.xpose.msra.mxu0 0.0
    %3930 = vmatprep.subr.mxu0 0.0
    %3931 = vmatpush1.xpose.msra.mxu0 0.0
    %3932 = vmatprep.subr.mxu0 0.0
    %3933 = vmatpush1.xpose.msra.mxu0 0.0
    %3934 = vmatprep.subr.mxu0 0.0
    %3935 = vmatpush1.xpose.msra.mxu0 0.0
    %3936 = vmatprep.subr.mxu0 0.0
    %3937 = vmatpush1.xpose.msra.mxu0 0.0
    %3938 = vmatprep.subr.mxu0 0.0
    %3939 = vmatpush1.xpose.msra.mxu0 0.0
    %3940 = vmatprep.subr.mxu0 0.0
    %3941 = vmatpush1.xpose.msra.mxu0 0.0
    %3942 = vmatprep.subr.mxu0 0.0
    %3943 = vmatpush1.xpose.msra.mxu0 0.0
    %3944 = vmatprep.subr.mxu0 0.0
    %3945 = vmatpush1.xpose.msra.mxu0 0.0
    %3946 = vmatprep.subr.mxu0 0.0
    %3947 = vmatpush1.xpose.msra.mxu0 0.0
    %3948 = vmatprep.subr.mxu0 0.0
    %3949 = vmatpush1.xpose.msra.mxu0 0.0
    %3950 = vmatprep.subr.mxu0 0.0
    %3951 = vmatpush1.xpose.msra.mxu0 0.0
    %3952 = vmatprep.subr.mxu0 0.0
    %3953 = vmatpush1.xpose.msra.mxu0 0.0
    %3954 = vmatprep.subr.mxu0 0.0
    %3955 = vmatpush1.xpose.msra.mxu0 0.0
    %3956 = vmatprep.subr.mxu0 0.0
    %3957 = vmatpush1.xpose.msra.mxu0 0.0
    %3958 = vmatprep.subr.mxu0 0.0
    %3959 = vmatpush1.xpose.msra.mxu0 0.0
    %3960 = vmatprep.subr.mxu0 0.0
    %3961 = vmatpush1.xpose.msra.mxu0 0.0
    %3962 = vmatprep.subr.mxu0 0.0
    %3963 = vmatpush1.xpose.msra.mxu0 0.0
    %3964 = vmatprep.subr.mxu0 0.0
    %3965 = vmatpush1.xpose.msra.mxu0 0.0
    %3966 = vmatprep.subr.mxu0 0.0
    %3967 = vmatpush1.xpose.msra.mxu0 0.0
    %3968 = vmatprep.subr.mxu0 0.0
    %3969 = vmatpush1.xpose.msra.mxu0 0.0
    %3970 = vmatprep.subr.mxu0 0.0
    %3971 = vmatpush1.xpose.msra.mxu0 0.0
    %3972 = vmatprep.subr.mxu0 0.0
    %3973 = vmatpush1.xpose.msra.mxu0 0.0
    %3974 = vmatprep.subr.mxu0 0.0
    %3975 = vmatpush1.xpose.msra.mxu0 0.0
    %3976 = vmatprep.subr.mxu0 0.0
    %3977 = vmatpush1.xpose.msra.mxu0 0.0
    %3978 = vmatprep.subr.mxu0 0.0
    %3979 = vmatpush1.xpose.msra.mxu0 0.0
    %3980 = vmatprep.subr.mxu0 0.0
    %3981 = vmatpush1.xpose.msra.mxu0 0.0
    %3982 = vmatprep.mubr.f32.mxu0 0.0
    %3983 = vmatmul.mubr.f32.gmra.mrb[0].mxu0 %v3907
    %v3984 = vpop.f32.mrb[0].mxu0
    %v3985 = vadd.f32 0.0, %v3984
    %v3986 = vpop.f32.mrb[0].mxu0
    %3987 = vmatprep.mubr.f32.mxu0 0.0
    %3988 = vmatmul.mubr.f32.gmra.mrb[0].mxu0 %v3910
    %v3989 = vpop.f32.mrb[0].mxu0
    %v3990 = vadd.f32 0.0, %v3989
    %v3991 = vpop.f32.mrb[0].mxu0
    %3992 = vdwg.mxu0
    %v3993 = vmul.f32 %v3724, 0.35355338
    %v3994 = vmul.f32 %v3729, 0.35355338
    %v3995 = vmul.f32 %v3811, 0.35355338
    %v3996 = vmul.f32 %v3816, 0.35355338
    %v3997 = vmul.f32 %v3898, 0.35355338
    %v3998 = vmul.f32 %v3903, 0.35355338
    %v3999 = vmul.f32 %v3985, 0.35355338
    %v4000 = vmul.f32 %v3990, 0.35355338
    %v4001 = vsel %vm1565, %v3993, -1e+30
    %v4002 = vsel %vm1566, %v3994, -1e+30
    %v4003 = vsel %vm1565, %v3995, -1e+30
    %v4004 = vsel %vm1566, %v3996, -1e+30
    %v4005 = vsel %vm1565, %v3997, -1e+30
    %v4006 = vsel %vm1566, %v3998, -1e+30
    %v4007 = vsel %vm1565, %v3999, -1e+30
    %v4008 = vsel %vm1566, %v4000, -1e+30
    %v4009 = vsel %vm1575, %v4001, -inf
    %4010 = vmax.xlane.f32.xlu0 %v4009
    %v4011 = vpop.xlane.xlu0 %4010
    %v4012 = vsel %vm1575, %v4002, -inf
    %4013 = vmax.xlane.f32.xlu0 %v4012
    %v4014 = vpop.xlane.xlu0 %4013
    %v4015 = vsel %vm1575, %v4003, -inf
    %4016 = vmax.xlane.f32.xlu0 %v4015
    %v4017 = vpop.xlane.xlu0 %4016
    %v4018 = vsel %vm1575, %v4004, -inf
    %4019 = vmax.xlane.f32.xlu0 %v4018
    %v4020 = vpop.xlane.xlu0 %4019
    %v4021 = vsel %vm1575, %v4005, -inf
    %4022 = vmax.xlane.f32.xlu0 %v4021
    %v4023 = vpop.xlane.xlu0 %4022
    %v4024 = vsel %vm1575, %v4006, -inf
    %4025 = vmax.xlane.f32.xlu0 %v4024
    %v4026 = vpop.xlane.xlu0 %4025
    %v4027 = vsel %vm1575, %v4007, -inf
    %4028 = vmax.xlane.f32.xlu0 %v4027
    %v4029 = vpop.xlane.xlu0 %4028
    %v4030 = vsel %vm1575, %v4008, -inf
    %4031 = vmax.xlane.f32.xlu0 %v4030
    %v4032 = vpop.xlane.xlu0 %4031
    %v4033 = vsub.f32 %v4001, %v4011
    %v4034 = vsub.f32 %v4002, %v4014
    %v4035 = vsub.f32 %v4003, %v4017
    %v4036 = vsub.f32 %v4004, %v4020
    %v4037 = vsub.f32 %v4005, %v4023
    %v4038 = vsub.f32 %v4006, %v4026
    %v4039 = vsub.f32 %v4007, %v4029
    %v4040 = vsub.f32 %v4008, %v4032
    %v4041 = vmul.f32 %v4033, 1.442695
    %v4042 = vpow.pop %v4041
    %v4043 = vmul.f32 %v4034, 1.442695
    %v4044 = vpow.pop %v4043
    %v4045 = vmul.f32 %v4035, 1.442695
    %v4046 = vpow.pop %v4045
    %v4047 = vmul.f32 %v4036, 1.442695
    %v4048 = vpow.pop %v4047
    %v4049 = vmul.f32 %v4037, 1.442695
    %v4050 = vpow.pop %v4049
    %v4051 = vmul.f32 %v4038, 1.442695
    %v4052 = vpow.pop %v4051
    %v4053 = vmul.f32 %v4039, 1.442695
    %v4054 = vpow.pop %v4053
    %v4055 = vmul.f32 %v4040, 1.442695
    %v4056 = vpow.pop %v4055
    %v4057 = vsel %vm1575, %v4042, 0.0
    %4058 = vadd.xlane.f32.xlu0 %v4057
    %v4059 = vpop.xlane.xlu0 %4058
    %v4060 = vsel %vm1575, %v4044, 0.0
    %4061 = vadd.xlane.f32.xlu0 %v4060
    %v4062 = vpop.xlane.xlu0 %4061
    %v4063 = vsel %vm1575, %v4046, 0.0
    %4064 = vadd.xlane.f32.xlu0 %v4063
    %v4065 = vpop.xlane.xlu0 %4064
    %v4066 = vsel %vm1575, %v4048, 0.0
    %4067 = vadd.xlane.f32.xlu0 %v4066
    %v4068 = vpop.xlane.xlu0 %4067
    %v4069 = vsel %vm1575, %v4050, 0.0
    %4070 = vadd.xlane.f32.xlu0 %v4069
    %v4071 = vpop.xlane.xlu0 %4070
    %v4072 = vsel %vm1575, %v4052, 0.0
    %4073 = vadd.xlane.f32.xlu0 %v4072
    %v4074 = vpop.xlane.xlu0 %4073
    %v4075 = vsel %vm1575, %v4054, 0.0
    %4076 = vadd.xlane.f32.xlu0 %v4075
    %v4077 = vpop.xlane.xlu0 %4076
    %v4078 = vsel %vm1575, %v4056, 0.0
    %4079 = vadd.xlane.f32.xlu0 %v4078
    %v4080 = vpop.xlane.xlu0 %4079
    %v4081 = vrcp.pop %v4059
    %v4082 = vmul.f32 %v4042, %v4081
    %v4083 = vrcp.pop %v4062
    %v4084 = vmul.f32 %v4044, %v4083
    %v4085 = vrcp.pop %v4065
    %v4086 = vmul.f32 %v4046, %v4085
    %v4087 = vrcp.pop %v4068
    %v4088 = vmul.f32 %v4048, %v4087
    %v4089 = vrcp.pop %v4071
    %v4090 = vmul.f32 %v4050, %v4089
    %v4091 = vrcp.pop %v4074
    %v4092 = vmul.f32 %v4052, %v4091
    %v4093 = vrcp.pop %v4077
    %v4094 = vmul.f32 %v4054, %v4093
    %v4095 = vrcp.pop %v4080
    %v4096 = vmul.f32 %v4056, %v4095
    %v4098 = vsel %vm1575, %v4082, 0
    %v4101 = vsel %vm1575, %v4084, 0
    %4103 = vmatprep.subr.mxu0 0.0
    %4104 = vmatpush1.msra.mxu0 %v3573
    %4105 = vmatprep.subr.mxu0 0.0
    %4106 = vmatpush1.msra.mxu0 %v3641
    %4107 = vmatprep.subr.mxu0 0.0
    %4108 = vmatpush1.msra.mxu0 0.0
    %4109 = vmatprep.subr.mxu0 0.0
    %4110 = vmatpush1.msra.mxu0 0.0
    %4111 = vmatprep.subr.mxu0 0.0
    %4112 = vmatpush1.msra.mxu0 0.0
    %4113 = vmatprep.subr.mxu0 0.0
    %4114 = vmatpush1.msra.mxu0 0.0
    %4115 = vmatprep.subr.mxu0 0.0
    %4116 = vmatpush1.msra.mxu0 0.0
    %4117 = vmatprep.subr.mxu0 0.0
    %4118 = vmatpush1.msra.mxu0 0.0
    %4119 = vmatprep.subr.mxu0 0.0
    %4120 = vmatpush1.msra.mxu0 0.0
    %4121 = vmatprep.subr.mxu0 0.0
    %4122 = vmatpush1.msra.mxu0 0.0
    %4123 = vmatprep.subr.mxu0 0.0
    %4124 = vmatpush1.msra.mxu0 0.0
    %4125 = vmatprep.subr.mxu0 0.0
    %4126 = vmatpush1.msra.mxu0 0.0
    %4127 = vmatprep.subr.mxu0 0.0
    %4128 = vmatpush1.msra.mxu0 0.0
    %4129 = vmatprep.subr.mxu0 0.0
    %4130 = vmatpush1.msra.mxu0 0.0
    %4131 = vmatprep.subr.mxu0 0.0
    %4132 = vmatpush1.msra.mxu0 0.0
    %4133 = vmatprep.subr.mxu0 0.0
    %4134 = vmatpush1.msra.mxu0 0.0
    %4135 = vmatprep.subr.mxu0 0.0
    %4136 = vmatpush1.msra.mxu0 0.0
    %4137 = vmatprep.subr.mxu0 0.0
    %4138 = vmatpush1.msra.mxu0 0.0
    %4139 = vmatprep.subr.mxu0 0.0
    %4140 = vmatpush1.msra.mxu0 0.0
    %4141 = vmatprep.subr.mxu0 0.0
    %4142 = vmatpush1.msra.mxu0 0.0
    %4143 = vmatprep.subr.mxu0 0.0
    %4144 = vmatpush1.msra.mxu0 0.0
    %4145 = vmatprep.subr.mxu0 0.0
    %4146 = vmatpush1.msra.mxu0 0.0
    %4147 = vmatprep.subr.mxu0 0.0
    %4148 = vmatpush1.msra.mxu0 0.0
    %4149 = vmatprep.subr.mxu0 0.0
    %4150 = vmatpush1.msra.mxu0 0.0
    %4151 = vmatprep.subr.mxu0 0.0
    %4152 = vmatpush1.msra.mxu0 0.0
    %4153 = vmatprep.subr.mxu0 0.0
    %4154 = vmatpush1.msra.mxu0 0.0
    %4155 = vmatprep.subr.mxu0 0.0
    %4156 = vmatpush1.msra.mxu0 0.0
    %4157 = vmatprep.subr.mxu0 0.0
    %4158 = vmatpush1.msra.mxu0 0.0
    %4159 = vmatprep.subr.mxu0 0.0
    %4160 = vmatpush1.msra.mxu0 0.0
    %4161 = vmatprep.subr.mxu0 0.0
    %4162 = vmatpush1.msra.mxu0 0.0
    %4163 = vmatprep.subr.mxu0 0.0
    %4164 = vmatpush1.msra.mxu0 0.0
    %4165 = vmatprep.subr.mxu0 0.0
    %4166 = vmatpush1.msra.mxu0 0.0
    %4167 = vmatprep.mubr.f32.mxu0 0.0
    %4168 = vmatmul.mubr.f32.gmra.mrb[0].mxu0 %v4098
    %v4169 = vpop.f32.mrb[0].mxu0
    %v4170 = vadd.f32 0.0, %v4169
    %v4171 = vpop.f32.mrb[0].mxu0
    %4172 = vmatprep.mubr.f32.mxu0 0.0
    %4173 = vmatmul.mubr.f32.gmra.mrb[0].mxu0 %v4101
    %v4174 = vpop.f32.mrb[0].mxu0
    %v4175 = vadd.f32 0.0, %v4174
    %v4176 = vpop.f32.mrb[0].mxu0
    %4177 = vdwg.mxu0
    %v4179 = vsel %vm1575, %v4086, 0
    %v4182 = vsel %vm1575, %v4088, 0
    %4184 = vmatprep.subr.mxu0 0.0
    %4185 = vmatpush1.msra.mxu0 %v3574
    %4186 = vmatprep.subr.mxu0 0.0
    %4187 = vmatpush1.msra.mxu0 %v3642
    %4188 = vmatprep.subr.mxu0 0.0
    %4189 = vmatpush1.msra.mxu0 0.0
    %4190 = vmatprep.subr.mxu0 0.0
    %4191 = vmatpush1.msra.mxu0 0.0
    %4192 = vmatprep.subr.mxu0 0.0
    %4193 = vmatpush1.msra.mxu0 0.0
    %4194 = vmatprep.subr.mxu0 0.0
    %4195 = vmatpush1.msra.mxu0 0.0
    %4196 = vmatprep.subr.mxu0 0.0
    %4197 = vmatpush1.msra.mxu0 0.0
    %4198 = vmatprep.subr.mxu0 0.0
    %4199 = vmatpush1.msra.mxu0 0.0
    %4200 = vmatprep.subr.mxu0 0.0
    %4201 = vmatpush1.msra.mxu0 0.0
    %4202 = vmatprep.subr.mxu0 0.0
    %4203 = vmatpush1.msra.mxu0 0.0
    %4204 = vmatprep.subr.mxu0 0.0
    %4205 = vmatpush1.msra.mxu0 0.0
    %4206 = vmatprep.subr.mxu0 0.0
    %4207 = vmatpush1.msra.mxu0 0.0
    %4208 = vmatprep.subr.mxu0 0.0
    %4209 = vmatpush1.msra.mxu0 0.0
    %4210 = vmatprep.subr.mxu0 0.0
    %4211 = vmatpush1.msra.mxu0 0.0
    %4212 = vmatprep.subr.mxu0 0.0
    %4213 = vmatpush1.msra.mxu0 0.0
    %4214 = vmatprep.subr.mxu0 0.0
    %4215 = vmatpush1.msra.mxu0 0.0
    %4216 = vmatprep.subr.mxu0 0.0
    %4217 = vmatpush1.msra.mxu0 0.0
    %4218 = vmatprep.subr.mxu0 0.0
    %4219 = vmatpush1.msra.mxu0 0.0
    %4220 = vmatprep.subr.mxu0 0.0
    %4221 = vmatpush1.msra.mxu0 0.0
    %4222 = vmatprep.subr.mxu0 0.0
    %4223 = vmatpush1.msra.mxu0 0.0
    %4224 = vmatprep.subr.mxu0 0.0
    %4225 = vmatpush1.msra.mxu0 0.0
    %4226 = vmatprep.subr.mxu0 0.0
    %4227 = vmatpush1.msra.mxu0 0.0
    %4228 = vmatprep.subr.mxu0 0.0
    %4229 = vmatpush1.msra.mxu0 0.0
    %4230 = vmatprep.subr.mxu0 0.0
    %4231 = vmatpush1.msra.mxu0 0.0
    %4232 = vmatprep.subr.mxu0 0.0
    %4233 = vmatpush1.msra.mxu0 0.0
    %4234 = vmatprep.subr.mxu0 0.0
    %4235 = vmatpush1.msra.mxu0 0.0
    %4236 = vmatprep.subr.mxu0 0.0
    %4237 = vmatpush1.msra.mxu0 0.0
    %4238 = vmatprep.subr.mxu0 0.0
    %4239 = vmatpush1.msra.mxu0 0.0
    %4240 = vmatprep.subr.mxu0 0.0
    %4241 = vmatpush1.msra.mxu0 0.0
    %4242 = vmatprep.subr.mxu0 0.0
    %4243 = vmatpush1.msra.mxu0 0.0
    %4244 = vmatprep.subr.mxu0 0.0
    %4245 = vmatpush1.msra.mxu0 0.0
    %4246 = vmatprep.subr.mxu0 0.0
    %4247 = vmatpush1.msra.mxu0 0.0
    %4248 = vmatprep.mubr.f32.mxu0 0.0
    %4249 = vmatmul.mubr.f32.gmra.mrb[0].mxu0 %v4179
    %v4250 = vpop.f32.mrb[0].mxu0
    %v4251 = vadd.f32 0.0, %v4250
    %v4252 = vpop.f32.mrb[0].mxu0
    %4253 = vmatprep.mubr.f32.mxu0 0.0
    %4254 = vmatmul.mubr.f32.gmra.mrb[0].mxu0 %v4182
    %v4255 = vpop.f32.mrb[0].mxu0
    %v4256 = vadd.f32 0.0, %v4255
    %v4257 = vpop.f32.mrb[0].mxu0
    %4258 = vdwg.mxu0
    %v4260 = vsel %vm1575, %v4090, 0
    %v4263 = vsel %vm1575, %v4092, 0
    %4265 = vmatprep.subr.mxu0 0.0
    %4266 = vmatpush1.msra.mxu0 %v3575
    %4267 = vmatprep.subr.mxu0 0.0
    %4268 = vmatpush1.msra.mxu0 %v3643
    %4269 = vmatprep.subr.mxu0 0.0
    %4270 = vmatpush1.msra.mxu0 0.0
    %4271 = vmatprep.subr.mxu0 0.0
    %4272 = vmatpush1.msra.mxu0 0.0
    %4273 = vmatprep.subr.mxu0 0.0
    %4274 = vmatpush1.msra.mxu0 0.0
    %4275 = vmatprep.subr.mxu0 0.0
    %4276 = vmatpush1.msra.mxu0 0.0
    %4277 = vmatprep.subr.mxu0 0.0
    %4278 = vmatpush1.msra.mxu0 0.0
    %4279 = vmatprep.subr.mxu0 0.0
    %4280 = vmatpush1.msra.mxu0 0.0
    %4281 = vmatprep.subr.mxu0 0.0
    %4282 = vmatpush1.msra.mxu0 0.0
    %4283 = vmatprep.subr.mxu0 0.0
    %4284 = vmatpush1.msra.mxu0 0.0
    %4285 = vmatprep.subr.mxu0 0.0
    %4286 = vmatpush1.msra.mxu0 0.0
    %4287 = vmatprep.subr.mxu0 0.0
    %4288 = vmatpush1.msra.mxu0 0.0
    %4289 = vmatprep.subr.mxu0 0.0
    %4290 = vmatpush1.msra.mxu0 0.0
    %4291 = vmatprep.subr.mxu0 0.0
    %4292 = vmatpush1.msra.mxu0 0.0
    %4293 = vmatprep.subr.mxu0 0.0
    %4294 = vmatpush1.msra.mxu0 0.0
    %4295 = vmatprep.subr.mxu0 0.0
    %4296 = vmatpush1.msra.mxu0 0.0
    %4297 = vmatprep.subr.mxu0 0.0
    %4298 = vmatpush1.msra.mxu0 0.0
    %4299 = vmatprep.subr.mxu0 0.0
    %4300 = vmatpush1.msra.mxu0 0.0
    %4301 = vmatprep.subr.mxu0 0.0
    %4302 = vmatpush1.msra.mxu0 0.0
    %4303 = vmatprep.subr.mxu0 0.0
    %4304 = vmatpush1.msra.mxu0 0.0
    %4305 = vmatprep.subr.mxu0 0.0
    %4306 = vmatpush1.msra.mxu0 0.0
    %4307 = vmatprep.subr.mxu0 0.0
    %4308 = vmatpush1.msra.mxu0 0.0
    %4309 = vmatprep.subr.mxu0 0.0
    %4310 = vmatpush1.msra.mxu0 0.0
    %4311 = vmatprep.subr.mxu0 0.0
    %4312 = vmatpush1.msra.mxu0 0.0
    %4313 = vmatprep.subr.mxu0 0.0
    %4314 = vmatpush1.msra.mxu0 0.0
    %4315 = vmatprep.subr.mxu0 0.0
    %4316 = vmatpush1.msra.mxu0 0.0
    %4317 = vmatprep.subr.mxu0 0.0
    %4318 = vmatpush1.msra.mxu0 0.0
    %4319 = vmatprep.subr.mxu0 0.0
    %4320 = vmatpush1.msra.mxu0 0.0
    %4321 = vmatprep.subr.mxu0 0.0
    %4322 = vmatpush1.msra.mxu0 0.0
    %4323 = vmatprep.subr.mxu0 0.0
    %4324 = vmatpush1.msra.mxu0 0.0
    %4325 = vmatprep.subr.mxu0 0.0
    %4326 = vmatpush1.msra.mxu0 0.0
    %4327 = vmatprep.subr.mxu0 0.0
    %4328 = vmatpush1.msra.mxu0 0.0
    %4329 = vmatprep.mubr.f32.mxu0 0.0
    %4330 = vmatmul.mubr.f32.gmra.mrb[0].mxu0 %v4260
    %v4331 = vpop.f32.mrb[0].mxu0
    %v4332 = vadd.f32 0.0, %v4331
    %v4333 = vpop.f32.mrb[0].mxu0
    %4334 = vmatprep.mubr.f32.mxu0 0.0
    %4335 = vmatmul.mubr.f32.gmra.mrb[0].mxu0 %v4263
    %v4336 = vpop.f32.mrb[0].mxu0
    %v4337 = vadd.f32 0.0, %v4336
    %v4338 = vpop.f32.mrb[0].mxu0
    %4339 = vdwg.mxu0
    %v4341 = vsel %vm1575, %v4094, 0
    %v4344 = vsel %vm1575, %v4096, 0
    %4346 = vmatprep.subr.mxu0 0.0
    %4347 = vmatpush1.msra.mxu0 %v3576
    %4348 = vmatprep.subr.mxu0 0.0
    %4349 = vmatpush1.msra.mxu0 %v3644
    %4350 = vmatprep.subr.mxu0 0.0
    %4351 = vmatpush1.msra.mxu0 0.0
    %4352 = vmatprep.subr.mxu0 0.0
    %4353 = vmatpush1.msra.mxu0 0.0
    %4354 = vmatprep.subr.mxu0 0.0
    %4355 = vmatpush1.msra.mxu0 0.0
    %4356 = vmatprep.subr.mxu0 0.0
    %4357 = vmatpush1.msra.mxu0 0.0
    %4358 = vmatprep.subr.mxu0 0.0
    %4359 = vmatpush1.msra.mxu0 0.0
    %4360 = vmatprep.subr.mxu0 0.0
    %4361 = vmatpush1.msra.mxu0 0.0
    %4362 = vmatprep.subr.mxu0 0.0
    %4363 = vmatpush1.msra.mxu0 0.0
    %4364 = vmatprep.subr.mxu0 0.0
    %4365 = vmatpush1.msra.mxu0 0.0
    %4366 = vmatprep.subr.mxu0 0.0
    %4367 = vmatpush1.msra.mxu0 0.0
    %4368 = vmatprep.subr.mxu0 0.0
    %4369 = vmatpush1.msra.mxu0 0.0
    %4370 = vmatprep.subr.mxu0 0.0
    %4371 = vmatpush1.msra.mxu0 0.0
    %4372 = vmatprep.subr.mxu0 0.0
    %4373 = vmatpush1.msra.mxu0 0.0
    %4374 = vmatprep.subr.mxu0 0.0
    %4375 = vmatpush1.msra.mxu0 0.0
    %4376 = vmatprep.subr.mxu0 0.0
    %4377 = vmatpush1.msra.mxu0 0.0
    %4378 = vmatprep.subr.mxu0 0.0
    %4379 = vmatpush1.msra.mxu0 0.0
    %4380 = vmatprep.subr.mxu0 0.0
    %4381 = vmatpush1.msra.mxu0 0.0
    %4382 = vmatprep.subr.mxu0 0.0
    %4383 = vmatpush1.msra.mxu0 0.0
    %4384 = vmatprep.subr.mxu0 0.0
    %4385 = vmatpush1.msra.mxu0 0.0
    %4386 = vmatprep.subr.mxu0 0.0
    %4387 = vmatpush1.msra.mxu0 0.0
    %4388 = vmatprep.subr.mxu0 0.0
    %4389 = vmatpush1.msra.mxu0 0.0
    %4390 = vmatprep.subr.mxu0 0.0
    %4391 = vmatpush1.msra.mxu0 0.0
    %4392 = vmatprep.subr.mxu0 0.0
    %4393 = vmatpush1.msra.mxu0 0.0
    %4394 = vmatprep.subr.mxu0 0.0
    %4395 = vmatpush1.msra.mxu0 0.0
    %4396 = vmatprep.subr.mxu0 0.0
    %4397 = vmatpush1.msra.mxu0 0.0
    %4398 = vmatprep.subr.mxu0 0.0
    %4399 = vmatpush1.msra.mxu0 0.0
    %4400 = vmatprep.subr.mxu0 0.0
    %4401 = vmatpush1.msra.mxu0 0.0
    %4402 = vmatprep.subr.mxu0 0.0
    %4403 = vmatpush1.msra.mxu0 0.0
    %4404 = vmatprep.subr.mxu0 0.0
    %4405 = vmatpush1.msra.mxu0 0.0
    %4406 = vmatprep.subr.mxu0 0.0
    %4407 = vmatpush1.msra.mxu0 0.0
    %4408 = vmatprep.subr.mxu0 0.0
    %4409 = vmatpush1.msra.mxu0 0.0
    %4410 = vmatprep.mubr.f32.mxu0 0.0
    %4411 = vmatmul.mubr.f32.gmra.mrb[0].mxu0 %v4341
    %v4412 = vpop.f32.mrb[0].mxu0
    %v4413 = vadd.f32 0.0, %v4412
    %v4414 = vpop.f32.mrb[0].mxu0
    %4415 = vmatprep.mubr.f32.mxu0 0.0
    %4416 = vmatmul.mubr.f32.gmra.mrb[0].mxu0 %v4344
    %v4417 = vpop.f32.mrb[0].mxu0
    %v4418 = vadd.f32 0.0, %v4417
    %v4419 = vpop.f32.mrb[0].mxu0
    %4420 = vdwg.mxu0
    %v4421 = vcombine.low %v4170, %v4332
    %v4422 = vcombine.high %v4170, %v4332
    %v4424 = vunpack.c.l.s4 1983009808
    %v4425 = vunpack.c.0.s8 %v4424
    %v4426 = vlaneseq
    %v4427 = vshrl.u32 %v4426, 7
    %v4428 = vsub.s32 %v4425, %v4427
    %v4429 = vrot.slane %v4421, %v4428
    %v4431 = vunpack.c.l.s4 1983009808
    %v4432 = vunpack.c.0.s8 %v4431
    %v4433 = vlaneseq
    %v4434 = vshrl.u32 %v4433, 7
    %v4435 = vsub.s32 %v4432, %v4434
    %v4436 = vrot.slane %v4422, %v4435
    %v4437 = vcombine.low %v4251, %v4413
    %v4438 = vcombine.high %v4251, %v4413
    %v4440 = vunpack.c.l.s4 1983009808
    %v4441 = vunpack.c.0.s8 %v4440
    %v4442 = vlaneseq
    %v4443 = vshrl.u32 %v4442, 7
    %v4444 = vsub.s32 %v4441, %v4443
    %v4445 = vrot.slane %v4437, %v4444
    %v4447 = vunpack.c.l.s4 1983009808
    %v4448 = vunpack.c.0.s8 %v4447
    %v4449 = vlaneseq
    %v4450 = vshrl.u32 %v4449, 7
    %v4451 = vsub.s32 %v4448, %v4450
    %v4452 = vrot.slane %v4438, %v4451
    %v4453 = vcombine.low %v4429, %v4445
    %v4454 = vcombine.high %v4429, %v4445
    %v4456 = vunpack.c.l.s4 1934713408
    %v4457 = vunpack.c.0.s8 %v4456
    %v4458 = vlaneseq
    %v4459 = vshrl.u32 %v4458, 7
    %v4460 = vsub.s32 %v4457, %v4459
    %v4461 = vrot.slane %v4453, %v4460
    %v4463 = vunpack.c.l.s4 1934713408
    %v4464 = vunpack.c.0.s8 %v4463
    %v4465 = vlaneseq
    %v4466 = vshrl.u32 %v4465, 7
    %v4467 = vsub.s32 %v4464, %v4466
    %v4468 = vrot.slane %v4454, %v4467
    %v4469 = vcombine.low %v4436, %v4452
    %v4470 = vcombine.high %v4436, %v4452
    %v4472 = vunpack.c.l.s4 1934713408
    %v4473 = vunpack.c.0.s8 %v4472
    %v4474 = vlaneseq
    %v4475 = vshrl.u32 %v4474, 7
    %v4476 = vsub.s32 %v4473, %v4475
    %v4477 = vrot.slane %v4469, %v4476
    %v4479 = vunpack.c.l.s4 1934713408
    %v4480 = vunpack.c.0.s8 %v4479
    %v4481 = vlaneseq
    %v4482 = vshrl.u32 %v4481, 7
    %v4483 = vsub.s32 %v4480, %v4482
    %v4484 = vrot.slane %v4470, %v4483
    %v4485 = vcombine.high %v4461, 0.0
    %v4486 = vcombine.high %v4468, 0.0
    %v4487 = vcombine.high %v4477, 0.0
    %v4488 = vcombine.high %v4484, 0.0
    %v4489 = vcombine.low %v4175, %v4337
    %v4490 = vcombine.high %v4175, %v4337
    %v4492 = vunpack.c.l.s4 1983009808
    %v4493 = vunpack.c.0.s8 %v4492
    %v4494 = vlaneseq
    %v4495 = vshrl.u32 %v4494, 7
    %v4496 = vsub.s32 %v4493, %v4495
    %v4497 = vrot.slane %v4489, %v4496
    %v4499 = vunpack.c.l.s4 1983009808
    %v4500 = vunpack.c.0.s8 %v4499
    %v4501 = vlaneseq
    %v4502 = vshrl.u32 %v4501, 7
    %v4503 = vsub.s32 %v4500, %v4502
    %v4504 = vrot.slane %v4490, %v4503
    %v4505 = vcombine.low %v4256, %v4418
    %v4506 = vcombine.high %v4256, %v4418
    %v4508 = vunpack.c.l.s4 1983009808
    %v4509 = vunpack.c.0.s8 %v4508
    %v4510 = vlaneseq
    %v4511 = vshrl.u32 %v4510, 7
    %v4512 = vsub.s32 %v4509, %v4511
    %v4513 = vrot.slane %v4505, %v4512
    %v4515 = vunpack.c.l.s4 1983009808
    %v4516 = vunpack.c.0.s8 %v4515
    %v4517 = vlaneseq
    %v4518 = vshrl.u32 %v4517, 7
    %v4519 = vsub.s32 %v4516, %v4518
    %v4520 = vrot.slane %v4506, %v4519
    %v4521 = vcombine.low %v4497, %v4513
    %v4522 = vcombine.high %v4497, %v4513
    %v4524 = vunpack.c.l.s4 1934713408
    %v4525 = vunpack.c.0.s8 %v4524
    %v4526 = vlaneseq
    %v4527 = vshrl.u32 %v4526, 7
    %v4528 = vsub.s32 %v4525, %v4527
    %v4529 = vrot.slane %v4521, %v4528
    %v4531 = vunpack.c.l.s4 1934713408
    %v4532 = vunpack.c.0.s8 %v4531
    %v4533 = vlaneseq
    %v4534 = vshrl.u32 %v4533, 7
    %v4535 = vsub.s32 %v4532, %v4534
    %v4536 = vrot.slane %v4522, %v4535
    %v4537 = vcombine.low %v4504, %v4520
    %v4538 = vcombine.high %v4504, %v4520
    %v4540 = vunpack.c.l.s4 1934713408
    %v4541 = vunpack.c.0.s8 %v4540
    %v4542 = vlaneseq
    %v4543 = vshrl.u32 %v4542, 7
    %v4544 = vsub.s32 %v4541, %v4543
    %v4545 = vrot.slane %v4537, %v4544
    %v4547 = vunpack.c.l.s4 1934713408
    %v4548 = vunpack.c.0.s8 %v4547
    %v4549 = vlaneseq
    %v4550 = vshrl.u32 %v4549, 7
    %v4551 = vsub.s32 %v4548, %v4550
    %v4552 = vrot.slane %v4538, %v4551
    %v4553 = vcombine.high %v4529, 0.0
    %v4554 = vcombine.high %v4536, 0.0
    %v4555 = vcombine.high %v4545, 0.0
    %v4556 = vcombine.high %v4552, 0.0
    %v4557 = vcombine.low %v4461, %v4468
    %v4559 = vunpack.c.l.s4 1983009808
    %v4560 = vunpack.c.0.s8 %v4559
    %v4561 = vlaneseq
    %v4562 = vshrl.u32 %v4561, 7
    %v4563 = vsub.s32 %v4560, %v4562
    %v4564 = vrot.slane %v4557, %v4563
    %v4565 = vcombine.low %v4485, %v4486
    %v4567 = vunpack.c.l.s4 1983009808
    %v4568 = vunpack.c.0.s8 %v4567
    %v4569 = vlaneseq
    %v4570 = vshrl.u32 %v4569, 7
    %v4571 = vsub.s32 %v4568, %v4570
    %v4572 = vrot.slane %v4565, %v4571
    %v4573 = vcombine.low %v4477, %v4484
    %v4575 = vunpack.c.l.s4 1983009808
    %v4576 = vunpack.c.0.s8 %v4575
    %v4577 = vlaneseq
    %v4578 = vshrl.u32 %v4577, 7
    %v4579 = vsub.s32 %v4576, %v4578
    %v4580 = vrot.slane %v4573, %v4579
    %v4581 = vcombine.low %v4487, %v4488
    %v4583 = vunpack.c.l.s4 1983009808
    %v4584 = vunpack.c.0.s8 %v4583
    %v4585 = vlaneseq
    %v4586 = vshrl.u32 %v4585, 7
    %v4587 = vsub.s32 %v4584, %v4586
    %v4588 = vrot.slane %v4581, %v4587
    %v4589 = vcombine.low %v4564, %v4572
    %v4590 = vcombine.high %v4564, %v4572
    %v4592 = vunpack.c.l.s4 1934713408
    %v4593 = vunpack.c.0.s8 %v4592
    %v4594 = vlaneseq
    %v4595 = vshrl.u32 %v4594, 7
    %v4596 = vsub.s32 %v4593, %v4595
    %v4597 = vrot.slane %v4589, %v4596
    %v4599 = vunpack.c.l.s4 1934713408
    %v4600 = vunpack.c.0.s8 %v4599
    %v4601 = vlaneseq
    %v4602 = vshrl.u32 %v4601, 7
    %v4603 = vsub.s32 %v4600, %v4602
    %v4604 = vrot.slane %v4590, %v4603
    %v4605 = vcombine.low %v4580, %v4588
    %v4606 = vcombine.high %v4580, %v4588
    %v4608 = vunpack.c.l.s4 1934713408
    %v4609 = vunpack.c.0.s8 %v4608
    %v4610 = vlaneseq
    %v4611 = vshrl.u32 %v4610, 7
    %v4612 = vsub.s32 %v4609, %v4611
    %v4613 = vrot.slane %v4605, %v4612
    %v4615 = vunpack.c.l.s4 1934713408
    %v4616 = vunpack.c.0.s8 %v4615
    %v4617 = vlaneseq
    %v4618 = vshrl.u32 %v4617, 7
    %v4619 = vsub.s32 %v4616, %v4618
    %v4620 = vrot.slane %v4606, %v4619
    %v4621 = vcombine.low %v4597, %v4613
    %v4622 = vcombine.high %v4597, %v4613
    %v4623 = vcombine.low %v4604, %v4620
    %v4624 = vcombine.high %v4604, %v4620
    %v4625 = vcombine.low %v4529, %v4536
    %v4627 = vunpack.c.l.s4 1983009808
    %v4628 = vunpack.c.0.s8 %v4627
    %v4629 = vlaneseq
    %v4630 = vshrl.u32 %v4629, 7
    %v4631 = vsub.s32 %v4628, %v4630
    %v4632 = vrot.slane %v4625, %v4631
    %v4633 = vcombine.low %v4553, %v4554
    %v4635 = vunpack.c.l.s4 1983009808
    %v4636 = vunpack.c.0.s8 %v4635
    %v4637 = vlaneseq
    %v4638 = vshrl.u32 %v4637, 7
    %v4639 = vsub.s32 %v4636, %v4638
    %v4640 = vrot.slane %v4633, %v4639
    %v4641 = vcombine.low %v4545, %v4552
    %v4643 = vunpack.c.l.s4 1983009808
    %v4644 = vunpack.c.0.s8 %v4643
    %v4645 = vlaneseq
    %v4646 = vshrl.u32 %v4645, 7
    %v4647 = vsub.s32 %v4644, %v4646
    %v4648 = vrot.slane %v4641, %v4647
    %v4649 = vcombine.low %v4555, %v4556
    %v4651 = vunpack.c.l.s4 1983009808
    %v4652 = vunpack.c.0.s8 %v4651
    %v4653 = vlaneseq
    %v4654 = vshrl.u32 %v4653, 7
    %v4655 = vsub.s32 %v4652, %v4654
    %v4656 = vrot.slane %v4649, %v4655
    %v4657 = vcombine.low %v4632, %v4640
    %v4658 = vcombine.high %v4632, %v4640
    %v4660 = vunpack.c.l.s4 1934713408
    %v4661 = vunpack.c.0.s8 %v4660
    %v4662 = vlaneseq
    %v4663 = vshrl.u32 %v4662, 7
    %v4664 = vsub.s32 %v4661, %v4663
    %v4665 = vrot.slane %v4657, %v4664
    %v4667 = vunpack.c.l.s4 1934713408
    %v4668 = vunpack.c.0.s8 %v4667
    %v4669 = vlaneseq
    %v4670 = vshrl.u32 %v4669, 7
    %v4671 = vsub.s32 %v4668, %v4670
    %v4672 = vrot.slane %v4658, %v4671
    %v4673 = vcombine.low %v4648, %v4656
    %v4674 = vcombine.high %v4648, %v4656
    %v4676 = vunpack.c.l.s4 1934713408
    %v4677 = vunpack.c.0.s8 %v4676
    %v4678 = vlaneseq
    %v4679 = vshrl.u32 %v4678, 7
    %v4680 = vsub.s32 %v4677, %v4679
    %v4681 = vrot.slane %v4673, %v4680
    %v4683 = vunpack.c.l.s4 1934713408
    %v4684 = vunpack.c.0.s8 %v4683
    %v4685 = vlaneseq
    %v4686 = vshrl.u32 %v4685, 7
    %v4687 = vsub.s32 %v4684, %v4686
    %v4688 = vrot.slane %v4674, %v4687
    %v4689 = vcombine.low %v4665, %v4681
    %v4690 = vcombine.high %v4665, %v4681
    %v4691 = vcombine.low %v4672, %v4688
    %v4692 = vcombine.high %v4672, %v4688
    %4695 = vrot.lane.b32.xlu0 %v4622, 8
    %v4696 = vpop.permute.xlu0 %4695
    %4697 = vrot.lane.b32.xlu0 %v4690, 8
    %v4698 = vpop.permute.xlu0 %4697
    %4703 = vrot.lane.b32.xlu0 %v4623, 16
    %v4704 = vpop.permute.xlu0 %4703
    %4705 = vrot.lane.b32.xlu0 %v4691, 16
    %v4706 = vpop.permute.xlu0 %4705
    %4711 = vrot.lane.b32.xlu0 %v4624, 24
    %v4712 = vpop.permute.xlu0 %4711
    %4713 = vrot.lane.b32.xlu0 %v4692, 24
    %v4714 = vpop.permute.xlu0 %4713
    %v4717 = vsel %vm1206, %v4621, %v4696
    %v4718 = vsel %vm1206, %v4689, %v4698
    %v4719 = vsel %vm1575, %v4717, %v4704
    %v4720 = vsel %vm1575, %v4718, %v4706
    %v4721 = vsel %vm2288, %v4719, %v4712
    %v4722 = vsel %vm2288, %v4720, %v4714
    %s4723 = scalar_lea.vmem %s6, 32
    %v4724 = vld [vmem:[%s4723] sm:$0xff]
    %v4725 = vld [vmem:[%s4723 + $0x8] sm:$0xff]
    %v4726 = vld [vmem:[%s4723 + $0x10] sm:$0xff]
    %v4727 = vld [vmem:[%s4723 + $0x18] sm:$0xff]
    %s4728 = scalar_lea.vmem %s7, 1
    %v4729 = vld [vmem:[%s4728] sm:$0x1]
    %v4731 = vlaneseq
    %v4732 = vshrl.u32 %v4731, 7
    %v4733 = vsub.s32 0, %v4732
    %v4734 = vrot.slane %v4729, %v4733
    %v4737 = vsel %vm240, %v4721, 0
    %v4740 = vsel %vm240, %v4722, 0
    %4742 = vmatprep.subr.mxu0 0.0
    %4743 = vmatpush1.msra.mxu0 %v4724
    %4744 = vmatprep.subr.mxu0 0.0
    %4745 = vmatpush1.msra.mxu0 %v4725
    %4746 = vmatprep.subr.mxu0 0.0
    %4747 = vmatpush1.msra.mxu0 %v4726
    %4748 = vmatprep.subr.mxu0 0.0
    %4749 = vmatpush1.msra.mxu0 %v4727
    %4750 = vmatprep.subr.mxu0 0.0
    %4751 = vmatpush1.msra.mxu0 0.0
    %4752 = vmatprep.subr.mxu0 0.0
    %4753 = vmatpush1.msra.mxu0 0.0
    %4754 = vmatprep.subr.mxu0 0.0
    %4755 = vmatpush1.msra.mxu0 0.0
    %4756 = vmatprep.subr.mxu0 0.0
    %4757 = vmatpush1.msra.mxu0 0.0
    %4758 = vmatprep.subr.mxu0 0.0
    %4759 = vmatpush1.msra.mxu0 0.0
    %4760 = vmatprep.subr.mxu0 0.0
    %4761 = vmatpush1.msra.mxu0 0.0
    %4762 = vmatprep.subr.mxu0 0.0
    %4763 = vmatpush1.msra.mxu0 0.0
    %4764 = vmatprep.subr.mxu0 0.0
    %4765 = vmatpush1.msra.mxu0 0.0
    %4766 = vmatprep.subr.mxu0 0.0
    %4767 = vmatpush1.msra.mxu0 0.0
    %4768 = vmatprep.subr.mxu0 0.0
    %4769 = vmatpush1.msra.mxu0 0.0
    %4770 = vmatprep.subr.mxu0 0.0
    %4771 = vmatpush1.msra.mxu0 0.0
    %4772 = vmatprep.subr.mxu0 0.0
    %4773 = vmatpush1.msra.mxu0 0.0
    %4774 = vmatprep.subr.mxu0 0.0
    %4775 = vmatpush1.msra.mxu0 0.0
    %4776 = vmatprep.subr.mxu0 0.0
    %4777 = vmatpush1.msra.mxu0 0.0
    %4778 = vmatprep.subr.mxu0 0.0
    %4779 = vmatpush1.msra.mxu0 0.0
    %4780 = vmatprep.subr.mxu0 0.0
    %4781 = vmatpush1.msra.mxu0 0.0
    %4782 = vmatprep.subr.mxu0 0.0
    %4783 = vmatpush1.msra.mxu0 0.0
    %4784 = vmatprep.subr.mxu0 0.0
    %4785 = vmatpush1.msra.mxu0 0.0
    %4786 = vmatprep.subr.mxu0 0.0
    %4787 = vmatpush1.msra.mxu0 0.0
    %4788 = vmatprep.subr.mxu0 0.0
    %4789 = vmatpush1.msra.mxu0 0.0
    %4790 = vmatprep.subr.mxu0 0.0
    %4791 = vmatpush1.msra.mxu0 0.0
    %4792 = vmatprep.subr.mxu0 0.0
    %4793 = vmatpush1.msra.mxu0 0.0
    %4794 = vmatprep.subr.mxu0 0.0
    %4795 = vmatpush1.msra.mxu0 0.0
    %4796 = vmatprep.subr.mxu0 0.0
    %4797 = vmatpush1.msra.mxu0 0.0
    %4798 = vmatprep.subr.mxu0 0.0
    %4799 = vmatpush1.msra.mxu0 0.0
    %4800 = vmatprep.subr.mxu0 0.0
    %4801 = vmatpush1.msra.mxu0 0.0
    %4802 = vmatprep.subr.mxu0 0.0
    %4803 = vmatpush1.msra.mxu0 0.0
    %4804 = vmatprep.subr.mxu0 0.0
    %4805 = vmatpush1.msra.mxu0 0.0
    %4806 = vmatprep.mubr.f32.mxu0 0.0
    %4807 = vmatmul.mubr.f32.gmra.mrb[0].mxu0 %v4737
    %v4808 = vpop.f32.mrb[0].mxu0
    %v4809 = vadd.f32 %v4734, %v4808
    %v4810 = vpop.f32.mrb[0].mxu0
    %4811 = vmatprep.mubr.f32.mxu0 0.0
    %4812 = vmatmul.mubr.f32.gmra.mrb[0].mxu0 %v4740
    %v4813 = vpop.f32.mrb[0].mxu0
    %v4814 = vadd.f32 %v4734, %v4813
    %v4815 = vpop.f32.mrb[0].mxu0
    %4816 = vdwg.mxu0
    %v4817 = vadd.f32 %v2665, %v4809
    %v4818 = vadd.f32 %v2666, %v4814
    %s4819 = scalar_lea.vmem %s8, 1
    %v4820 = vld [vmem:[%s4819] sm:$0x1]
    %s4821 = scalar_lea.vmem %s9, 1
    %v4822 = vld [vmem:[%s4821] sm:$0x1]
    %v4823 = vsel %vm240, %v4817, 0.0
    %4824 = vadd.xlane.f32.xlu0 %v4823
    %v4825 = vpop.xlane.xlu0 %4824
    %v4826 = vsel %vm240, %v4818, 0.0
    %4827 = vadd.xlane.f32.xlu0 %v4826
    %v4828 = vpop.xlane.xlu0 %4827
    %v4829 = vmul.f32 %v4825, %v2393
    %v4830 = vmul.f32 %v4828, %v2393
    %v4831 = vsub.f32 %v4817, %v4829
    %v4832 = vsub.f32 %v4818, %v4830
    %v4833 = vmul.f32 %v4831, %v4831
    %v4834 = vmul.f32 %v4832, %v4832
    %v4835 = vsel %vm240, %v4833, 0.0
    %4836 = vadd.xlane.f32.xlu0 %v4835
    %v4837 = vpop.xlane.xlu0 %4836
    %v4838 = vsel %vm240, %v4834, 0.0
    %4839 = vadd.xlane.f32.xlu0 %v4838
    %v4840 = vpop.xlane.xlu0 %4839
    %v4841 = vmul.f32 %v4837, %v2393
    %v4842 = vmul.f32 %v4840, %v2393
    %v4843 = vadd.f32 %v4841, 1e-05
    %v4844 = vadd.f32 %v4842, 1e-05
    %v4845 = vrsqrt.pop %v4843
    %v4846 = vrsqrt.pop %v4844
    %v4847 = vmul.f32 %v4831, %v4845
    %v4848 = vmul.f32 %v4832, %v4846
    %v4850 = vlaneseq
    %v4851 = vshrl.u32 %v4850, 7
    %v4852 = vsub.s32 0, %v4851
    %v4853 = vrot.slane %v4820, %v4852
    %v4855 = vmul.f32 %v4847, %v4853
    %v4856 = vmul.f32 %v4848, %v4853
    %v4858 = vlaneseq
    %v4859 = vshrl.u32 %v4858, 7
    %v4860 = vsub.s32 0, %v4859
    %v4861 = vrot.slane %v4822, %v4860
    %v4863 = vadd.f32 %v4855, %v4861
    %v4864 = vadd.f32 %v4856, %v4861
    %s4865 = scalar_lea.vmem %s10, 32
    %v4866 = vld [vmem:[%s4865] sm:$0xff]
    %v4867 = vld [vmem:[%s4865 + $0x8] sm:$0xff]
    %v4868 = vld [vmem:[%s4865 + $0x10] sm:$0xff]
    %v4869 = vld [vmem:[%s4865 + $0x18] sm:$0xff]
    %s4870 = scalar_lea.vmem [#allocation3], 1
    %v4871 = vld [vmem:[%s4870] sm:$0x1]
    %v4873 = vlaneseq
    %v4874 = vshrl.u32 %v4873, 7
    %v4875 = vsub.s32 0, %v4874
    %v4876 = vrot.slane %v4871, %v4875
    %v4879 = vsel %vm240, %v4863, 0
    %v4882 = vsel %vm240, %v4864, 0
    %4884 = vmatprep.subr.mxu0 0.0
    %4885 = vmatpush1.msra.mxu0 %v4866
    %4886 = vmatprep.subr.mxu0 0.0
    %4887 = vmatpush1.msra.mxu0 %v4867
    %4888 = vmatprep.subr.mxu0 0.0
    %4889 = vmatpush1.msra.mxu0 %v4868
    %4890 = vmatprep.subr.mxu0 0.0
    %4891 = vmatpush1.msra.mxu0 %v4869
    %4892 = vmatprep.subr.mxu0 0.0
    %4893 = vmatpush1.msra.mxu0 0.0
    %4894 = vmatprep.subr.mxu0 0.0
    %4895 = vmatpush1.msra.mxu0 0.0
    %4896 = vmatprep.subr.mxu0 0.0
    %4897 = vmatpush1.msra.mxu0 0.0
    %4898 = vmatprep.subr.mxu0 0.0
    %4899 = vmatpush1.msra.mxu0 0.0
    %4900 = vmatprep.subr.mxu0 0.0
    %4901 = vmatpush1.msra.mxu0 0.0
    %4902 = vmatprep.subr.mxu0 0.0
    %4903 = vmatpush1.msra.mxu0 0.0
    %4904 = vmatprep.subr.mxu0 0.0
    %4905 = vmatpush1.msra.mxu0 0.0
    %4906 = vmatprep.subr.mxu0 0.0
    %4907 = vmatpush1.msra.mxu0 0.0
    %4908 = vmatprep.subr.mxu0 0.0
    %4909 = vmatpush1.msra.mxu0 0.0
    %4910 = vmatprep.subr.mxu0 0.0
    %4911 = vmatpush1.msra.mxu0 0.0
    %4912 = vmatprep.subr.mxu0 0.0
    %4913 = vmatpush1.msra.mxu0 0.0
    %4914 = vmatprep.subr.mxu0 0.0
    %4915 = vmatpush1.msra.mxu0 0.0
    %4916 = vmatprep.subr.mxu0 0.0
    %4917 = vmatpush1.msra.mxu0 0.0
    %4918 = vmatprep.subr.mxu0 0.0
    %4919 = vmatpush1.msra.mxu0 0.0
    %4920 = vmatprep.subr.mxu0 0.0
    %4921 = vmatpush1.msra.mxu0 0.0
    %4922 = vmatprep.subr.mxu0 0.0
    %4923 = vmatpush1.msra.mxu0 0.0
    %4924 = vmatprep.subr.mxu0 0.0
    %4925 = vmatpush1.msra.mxu0 0.0
    %4926 = vmatprep.subr.mxu0 0.0
    %4927 = vmatpush1.msra.mxu0 0.0
    %4928 = vmatprep.subr.mxu0 0.0
    %4929 = vmatpush1.msra.mxu0 0.0
    %4930 = vmatprep.subr.mxu0 0.0
    %4931 = vmatpush1.msra.mxu0 0.0
    %4932 = vmatprep.subr.mxu0 0.0
    %4933 = vmatpush1.msra.mxu0 0.0
    %4934 = vmatprep.subr.mxu0 0.0
    %4935 = vmatpush1.msra.mxu0 0.0
    %4936 = vmatprep.subr.mxu0 0.0
    %4937 = vmatpush1.msra.mxu0 0.0
    %4938 = vmatprep.subr.mxu0 0.0
    %4939 = vmatpush1.msra.mxu0 0.0
    %4940 = vmatprep.subr.mxu0 0.0
    %4941 = vmatpush1.msra.mxu0 0.0
    %4942 = vmatprep.subr.mxu0 0.0
    %4943 = vmatpush1.msra.mxu0 0.0
    %4944 = vmatprep.subr.mxu0 0.0
    %4945 = vmatpush1.msra.mxu0 0.0
    %4946 = vmatprep.subr.mxu0 0.0
    %4947 = vmatpush1.msra.mxu0 0.0
    %4948 = vmatprep.mubr.f32.mxu0 0.0
    %4949 = vmatmul.mubr.f32.gmra.mrb[0].mxu0 %v4879
    %v4950 = vpop.f32.mrb[0].mxu0
    %v4951 = vadd.f32 %v4876, %v4950
    %v4952 = vpop.f32.mrb[0].mxu0
    %4953 = vmatprep.mubr.f32.mxu0 0.0
    %4954 = vmatmul.mubr.f32.gmra.mrb[0].mxu0 %v4882
    %v4955 = vpop.f32.mrb[0].mxu0
    %v4956 = vadd.f32 %v4876, %v4955
    %v4957 = vpop.f32.mrb[0].mxu0
    %4958 = vdwg.mxu0
    %v4959 = vmax.f32 %v4951, 0.0
    %v4960 = vmax.f32 %v4956, 0.0
    %s4961 = scalar_lea.vmem %s12, 64
    %v4962 = vld [vmem:[%s4961] sm:$0xff]
    %v4963 = vld [vmem:[%s4961 + $0x8] sm:$0xff]
    %v4964 = vld [vmem:[%s4961 + $0x10] sm:$0xff]
    %v4965 = vld [vmem:[%s4961 + $0x18] sm:$0xff]
    %v4966 = vld [vmem:[%s4961 + $0x20] sm:$0xff]
    %v4967 = vld [vmem:[%s4961 + $0x28] sm:$0xff]
    %v4968 = vld [vmem:[%s4961 + $0x30] sm:$0xff]
    %v4969 = vld [vmem:[%s4961 + $0x38] sm:$0xff]
    %s4970 = scalar_lea.vmem [#allocation5], 1
    %v4971 = vld [vmem:[%s4970] sm:$0x1]
    %v4973 = vlaneseq
    %v4974 = vshrl.u32 %v4973, 7
    %v4975 = vsub.s32 0, %v4974
    %v4976 = vrot.slane %v4971, %v4975
    %v4979 = vsel %vm2539, %v4959, 0
    %v4982 = vsel %vm2539, %v4960, 0
    %4984 = vmatprep.subr.mxu0 0.0
    %4985 = vmatpush1.msra.mxu0 %v4962
    %4986 = vmatprep.subr.mxu0 0.0
    %4987 = vmatpush1.msra.mxu0 %v4963
    %4988 = vmatprep.subr.mxu0 0.0
    %4989 = vmatpush1.msra.mxu0 %v4964
    %4990 = vmatprep.subr.mxu0 0.0
    %4991 = vmatpush1.msra.mxu0 %v4965
    %4992 = vmatprep.subr.mxu0 0.0
    %4993 = vmatpush1.msra.mxu0 %v4966
    %4994 = vmatprep.subr.mxu0 0.0
    %4995 = vmatpush1.msra.mxu0 %v4967
    %4996 = vmatprep.subr.mxu0 0.0
    %4997 = vmatpush1.msra.mxu0 %v4968
    %4998 = vmatprep.subr.mxu0 0.0
    %4999 = vmatpush1.msra.mxu0 %v4969
    %5000 = vmatprep.subr.mxu0 0.0
    %5001 = vmatpush1.msra.mxu0 0.0
    %5002 = vmatprep.subr.mxu0 0.0
    %5003 = vmatpush1.msra.mxu0 0.0
    %5004 = vmatprep.subr.mxu0 0.0
    %5005 = vmatpush1.msra.mxu0 0.0
    %5006 = vmatprep.subr.mxu0 0.0
    %5007 = vmatpush1.msra.mxu0 0.0
    %5008 = vmatprep.subr.mxu0 0.0
    %5009 = vmatpush1.msra.mxu0 0.0
    %5010 = vmatprep.subr.mxu0 0.0
    %5011 = vmatpush1.msra.mxu0 0.0
    %5012 = vmatprep.subr.mxu0 0.0
    %5013 = vmatpush1.msra.mxu0 0.0
    %5014 = vmatprep.subr.mxu0 0.0
    %5015 = vmatpush1.msra.mxu0 0.0
    %5016 = vmatprep.subr.mxu0 0.0
    %5017 = vmatpush1.msra.mxu0 0.0
    %5018 = vmatprep.subr.mxu0 0.0
    %5019 = vmatpush1.msra.mxu0 0.0
    %5020 = vmatprep.subr.mxu0 0.0
    %5021 = vmatpush1.msra.mxu0 0.0
    %5022 = vmatprep.subr.mxu0 0.0
    %5023 = vmatpush1.msra.mxu0 0.0
    %5024 = vmatprep.subr.mxu0 0.0
    %5025 = vmatpush1.msra.mxu0 0.0
    %5026 = vmatprep.subr.mxu0 0.0
    %5027 = vmatpush1.msra.mxu0 0.0
    %5028 = vmatprep.subr.mxu0 0.0
    %5029 = vmatpush1.msra.mxu0 0.0
    %5030 = vmatprep.subr.mxu0 0.0
    %5031 = vmatpush1.msra.mxu0 0.0
    %5032 = vmatprep.subr.mxu0 0.0
    %5033 = vmatpush1.msra.mxu0 0.0
    %5034 = vmatprep.subr.mxu0 0.0
    %5035 = vmatpush1.msra.mxu0 0.0
    %5036 = vmatprep.subr.mxu0 0.0
    %5037 = vmatpush1.msra.mxu0 0.0
    %5038 = vmatprep.subr.mxu0 0.0
    %5039 = vmatpush1.msra.mxu0 0.0
    %5040 = vmatprep.subr.mxu0 0.0
    %5041 = vmatpush1.msra.mxu0 0.0
    %5042 = vmatprep.subr.mxu0 0.0
    %5043 = vmatpush1.msra.mxu0 0.0
    %5044 = vmatprep.subr.mxu0 0.0
    %5045 = vmatpush1.msra.mxu0 0.0
    %5046 = vmatprep.subr.mxu0 0.0
    %5047 = vmatpush1.msra.mxu0 0.0
    %5048 = vmatprep.mubr.f32.mxu0 0.0
    %5049 = vmatmul.mubr.f32.gmra.mrb[0].mxu0 %v4979
    %v5050 = vpop.f32.mrb[0].mxu0
    %v5051 = vadd.f32 %v4976, %v5050
    %v5052 = vpop.f32.mrb[0].mxu0
    %5053 = vmatprep.mubr.f32.mxu0 0.0
    %5054 = vmatmul.mubr.f32.gmra.mrb[0].mxu0 %v4982
    %v5055 = vpop.f32.mrb[0].mxu0
    %v5056 = vadd.f32 %v4976, %v5055
    %v5057 = vpop.f32.mrb[0].mxu0
    %5058 = vdwg.mxu0
    %v5059 = vadd.f32 %v4863, %v5051
    %v5060 = vadd.f32 %v4864, %v5056
    %s5061 = scalar_lea.vmem %s14, 1
    %v5062 = vld [vmem:[%s5061] sm:$0x1]
    %s5063 = scalar_lea.vmem %s15, 1
    %v5064 = vld [vmem:[%s5063] sm:$0x1]
    %v5065 = vsel %vm240, %v5059, 0.0
    %5066 = vadd.xlane.f32.xlu0 %v5065
    %v5067 = vpop.xlane.xlu0 %5066
    %v5068 = vsel %vm240, %v5060, 0.0
    %5069 = vadd.xlane.f32.xlu0 %v5068
    %v5070 = vpop.xlane.xlu0 %5069
    %v5071 = vmul.f32 %v5067, %v2393
    %v5072 = vmul.f32 %v5070, %v2393
    %v5073 = vsub.f32 %v5059, %v5071
    %v5074 = vsub.f32 %v5060, %v5072
    %v5075 = vmul.f32 %v5073, %v5073
    %v5076 = vmul.f32 %v5074, %v5074
    %v5077 = vsel %vm240, %v5075, 0.0
    %5078 = vadd.xlane.f32.xlu0 %v5077
    %v5079 = vpop.xlane.xlu0 %5078
    %v5080 = vsel %vm240, %v5076, 0.0
    %5081 = vadd.xlane.f32.xlu0 %v5080
    %v5082 = vpop.xlane.xlu0 %5081
    %v5083 = vmul.f32 %v5079, %v2393
    %v5084 = vmul.f32 %v5082, %v2393
    %v5085 = vadd.f32 %v5083, 1e-05
    %v5086 = vadd.f32 %v5084, 1e-05
    %v5087 = vrsqrt.pop %v5085
    %v5088 = vrsqrt.pop %v5086
    %v5089 = vmul.f32 %v5073, %v5087
    %v5090 = vmul.f32 %v5074, %v5088
    %v5092 = vlaneseq
    %v5093 = vshrl.u32 %v5092, 7
    %v5094 = vsub.s32 0, %v5093
    %v5095 = vrot.slane %v5062, %v5094
    %v5097 = vmul.f32 %v5089, %v5095
    %v5098 = vmul.f32 %v5090, %v5095
    %v5100 = vlaneseq
    %v5101 = vshrl.u32 %v5100, 7
    %v5102 = vsub.s32 0, %v5101
    %v5103 = vrot.slane %v5064, %v5102
    %v5105 = vadd.f32 %v5097, %v5103
    %v5106 = vadd.f32 %v5098, %v5103
    %v5107 = vld [vmem:[#allocation7] sm:$0x1]
    %v5108 = vld [vmem:[#allocation8] sm:$0x1]
    %v5109 = vsel %vm240, %v5105, 0.0
    %5110 = vadd.xlane.f32.xlu0 %v5109
    %v5111 = vpop.xlane.xlu0 %5110
    %v5112 = vsel %vm240, %v5106, 0.0
    %5113 = vadd.xlane.f32.xlu0 %v5112
    %v5114 = vpop.xlane.xlu0 %5113
    %v5115 = vmul.f32 %v5111, %v2393
    %v5116 = vmul.f32 %v5114, %v2393
    %v5117 = vsub.f32 %v5105, %v5115
    %v5118 = vsub.f32 %v5106, %v5116
    %v5119 = vmul.f32 %v5117, %v5117
    %v5120 = vmul.f32 %v5118, %v5118
    %v5121 = vsel %vm240, %v5119, 0.0
    %5122 = vadd.xlane.f32.xlu0 %v5121
    %v5123 = vpop.xlane.xlu0 %5122
    %v5124 = vsel %vm240, %v5120, 0.0
    %5125 = vadd.xlane.f32.xlu0 %v5124
    %v5126 = vpop.xlane.xlu0 %5125
    %v5127 = vmul.f32 %v5123, %v2393
    %v5128 = vmul.f32 %v5126, %v2393
    %v5129 = vadd.f32 %v5127, 1e-05
    %v5130 = vadd.f32 %v5128, 1e-05
    %v5131 = vrsqrt.pop %v5129
    %v5132 = vrsqrt.pop %v5130
    %v5133 = vmul.f32 %v5117, %v5131
    %v5134 = vmul.f32 %v5118, %v5132
    %v5136 = vlaneseq
    %v5137 = vshrl.u32 %v5136, 7
    %v5138 = vsub.s32 0, %v5137
    %v5139 = vrot.slane %v5107, %v5138
    %v5141 = vmul.f32 %v5133, %v5139
    %v5142 = vmul.f32 %v5134, %v5139
    %v5144 = vlaneseq
    %v5145 = vshrl.u32 %v5144, 7
    %v5146 = vsub.s32 0, %v5145
    %v5147 = vrot.slane %v5108, %v5146
    %v5149 = vadd.f32 %v5141, %v5147
    %v5150 = vadd.f32 %v5142, %v5147
    %v5151 = vlaneseq
    %v5152 = vshrl.u32 %v5151, 7
    %v5153 = vld [vmem:[%s2] sm:$0x1]
    %v5154 = vlaneseq
    %v5155 = vshrl.u32 %v5154, 7
    %v5156 = vsub.s32 0, %v5155
    %v5157 = vrot.slane %v5153, %v5156
    %vm5158 = vcmp.eq.s32.totalorder %v5152, %v5157
    %v5159 = vsel %vm5158, 1, 0
    %v5160 = vcvt.s32.f32 %v5159
    %vm5161 = vcmask 123904
    %v5162 = vsel %vm5161, %v5160, 0.0
    %5163 = vadd.xlane.f32.xlu0 %v5162
    %v5164 = vpop.xlane.xlu0 %5163
    %v5165 = vmax.f32 %v5164, 1.0
    %v5167 = vsel %vm1575, %v5160, 0
    %5169 = vmatprep.subr.mxu0 0.0
    %5170 = vmatpush1.msra.mxu0 %v5149
    %5171 = vmatprep.subr.mxu0 0.0
    %5172 = vmatpush1.msra.mxu0 %v5150
    %5173 = vmatprep.subr.mxu0 0.0
    %5174 = vmatpush1.msra.mxu0 0.0
    %5175 = vmatprep.subr.mxu0 0.0
    %5176 = vmatpush1.msra.mxu0 0.0
    %5177 = vmatprep.subr.mxu0 0.0
    %5178 = vmatpush1.msra.mxu0 0.0
    %5179 = vmatprep.subr.mxu0 0.0
    %5180 = vmatpush1.msra.mxu0 0.0
    %5181 = vmatprep.subr.mxu0 0.0
    %5182 = vmatpush1.msra.mxu0 0.0
    %5183 = vmatprep.subr.mxu0 0.0
    %5184 = vmatpush1.msra.mxu0 0.0
    %5185 = vmatprep.subr.mxu0 0.0
    %5186 = vmatpush1.msra.mxu0 0.0
    %5187 = vmatprep.subr.mxu0 0.0
    %5188 = vmatpush1.msra.mxu0 0.0
    %5189 = vmatprep.subr.mxu0 0.0
    %5190 = vmatpush1.msra.mxu0 0.0
    %5191 = vmatprep.subr.mxu0 0.0
    %5192 = vmatpush1.msra.mxu0 0.0
    %5193 = vmatprep.subr.mxu0 0.0
    %5194 = vmatpush1.msra.mxu0 0.0
    %5195 = vmatprep.subr.mxu0 0.0
    %5196 = vmatpush1.msra.mxu0 0.0
    %5197 = vmatprep.subr.mxu0 0.0
    %5198 = vmatpush1.msra.mxu0 0.0
    %5199 = vmatprep.subr.mxu0 0.0
    %5200 = vmatpush1.msra.mxu0 0.0
    %5201 = vmatprep.subr.mxu0 0.0
    %5202 = vmatpush1.msra.mxu0 0.0
    %5203 = vmatprep.subr.mxu0 0.0
    %5204 = vmatpush1.msra.mxu0 0.0
    %5205 = vmatprep.subr.mxu0 0.0
    %5206 = vmatpush1.msra.mxu0 0.0
    %5207 = vmatprep.subr.mxu0 0.0
    %5208 = vmatpush1.msra.mxu0 0.0
    %5209 = vmatprep.subr.mxu0 0.0
    %5210 = vmatpush1.msra.mxu0 0.0
    %5211 = vmatprep.subr.mxu0 0.0
    %5212 = vmatpush1.msra.mxu0 0.0
    %5213 = vmatprep.subr.mxu0 0.0
    %5214 = vmatpush1.msra.mxu0 0.0
    %5215 = vmatprep.subr.mxu0 0.0
    %5216 = vmatpush1.msra.mxu0 0.0
    %5217 = vmatprep.subr.mxu0 0.0
    %5218 = vmatpush1.msra.mxu0 0.0
    %5219 = vmatprep.subr.mxu0 0.0
    %5220 = vmatpush1.msra.mxu0 0.0
    %5221 = vmatprep.subr.mxu0 0.0
    %5222 = vmatpush1.msra.mxu0 0.0
    %5223 = vmatprep.subr.mxu0 0.0
    %5224 = vmatpush1.msra.mxu0 0.0
    %5225 = vmatprep.subr.mxu0 0.0
    %5226 = vmatpush1.msra.mxu0 0.0
    %5227 = vmatprep.subr.mxu0 0.0
    %5228 = vmatpush1.msra.mxu0 0.0
    %5229 = vmatprep.subr.mxu0 0.0
    %5230 = vmatpush1.msra.mxu0 0.0
    %5231 = vmatprep.subr.mxu0 0.0
    %5232 = vmatpush1.msra.mxu0 0.0
    %5233 = vmatprep.mubr.f32.mxu0 0.0
    %5234 = vmatmul.mubr.f32.gmra.mrb[0].mxu0 %v5167
    %v5235 = vpop.f32.mrb[0].mxu0
    %v5236 = vadd.f32 0.0, %v5235
    %v5237 = vpop.f32.mrb[0].mxu0
    %5238 = vdwg.mxu0
    %v5239 = vrcp.pop %v5165
    %v5240 = vmul.f32 %v5236, %v5239
    %v5241 = vld [vmem:[%s18] sm:$0xff]
    %v5242 = vld [vmem:[%s18 + $0x8] sm:$0xff]
    %v5243 = vld [vmem:[%s18 + $0x10] sm:$0xff]
    %v5244 = vld [vmem:[%s18 + $0x18] sm:$0xff]
    %v5245 = vld [vmem:[%s19] sm:$0x1]
    %v5247 = vlaneseq
    %v5248 = vshrl.u32 %v5247, 7
    %v5249 = vsub.s32 0, %v5248
    %v5250 = vrot.slane %v5245, %v5249
    %v5253 = vsel %vm240, %v5240, 0
    %5255 = vmatprep.subr.mxu0 0.0
    %5256 = vmatpush1.msra.mxu0 %v5241
    %5257 = vmatprep.subr.mxu0 0.0
    %5258 = vmatpush1.msra.mxu0 %v5242
    %5259 = vmatprep.subr.mxu0 0.0
    %5260 = vmatpush1.msra.mxu0 %v5243
    %5261 = vmatprep.subr.mxu0 0.0
    %5262 = vmatpush1.msra.mxu0 %v5244
    %5263 = vmatprep.subr.mxu0 0.0
    %5264 = vmatpush1.msra.mxu0 0.0
    %5265 = vmatprep.subr.mxu0 0.0
    %5266 = vmatpush1.msra.mxu0 0.0
    %5267 = vmatprep.subr.mxu0 0.0
    %5268 = vmatpush1.msra.mxu0 0.0
    %5269 = vmatprep.subr.mxu0 0.0
    %5270 = vmatpush1.msra.mxu0 0.0
    %5271 = vmatprep.subr.mxu0 0.0
    %5272 = vmatpush1.msra.mxu0 0.0
    %5273 = vmatprep.subr.mxu0 0.0
    %5274 = vmatpush1.msra.mxu0 0.0
    %5275 = vmatprep.subr.mxu0 0.0
    %5276 = vmatpush1.msra.mxu0 0.0
    %5277 = vmatprep.subr.mxu0 0.0
    %5278 = vmatpush1.msra.mxu0 0.0
    %5279 = vmatprep.subr.mxu0 0.0
    %5280 = vmatpush1.msra.mxu0 0.0
    %5281 = vmatprep.subr.mxu0 0.0
    %5282 = vmatpush1.msra.mxu0 0.0
    %5283 = vmatprep.subr.mxu0 0.0
    %5284 = vmatpush1.msra.mxu0 0.0
    %5285 = vmatprep.subr.mxu0 0.0
    %5286 = vmatpush1.msra.mxu0 0.0
    %5287 = vmatprep.subr.mxu0 0.0
    %5288 = vmatpush1.msra.mxu0 0.0
    %5289 = vmatprep.subr.mxu0 0.0
    %5290 = vmatpush1.msra.mxu0 0.0
    %5291 = vmatprep.subr.mxu0 0.0
    %5292 = vmatpush1.msra.mxu0 0.0
    %5293 = vmatprep.subr.mxu0 0.0
    %5294 = vmatpush1.msra.mxu0 0.0
    %5295 = vmatprep.subr.mxu0 0.0
    %5296 = vmatpush1.msra.mxu0 0.0
    %5297 = vmatprep.subr.mxu0 0.0
    %5298 = vmatpush1.msra.mxu0 0.0
    %5299 = vmatprep.subr.mxu0 0.0
    %5300 = vmatpush1.msra.mxu0 0.0
    %5301 = vmatprep.subr.mxu0 0.0
    %5302 = vmatpush1.msra.mxu0 0.0
    %5303 = vmatprep.subr.mxu0 0.0
    %5304 = vmatpush1.msra.mxu0 0.0
    %5305 = vmatprep.subr.mxu0 0.0
    %5306 = vmatpush1.msra.mxu0 0.0
    %5307 = vmatprep.subr.mxu0 0.0
    %5308 = vmatpush1.msra.mxu0 0.0
    %5309 = vmatprep.subr.mxu0 0.0
    %5310 = vmatpush1.msra.mxu0 0.0
    %5311 = vmatprep.subr.mxu0 0.0
    %5312 = vmatpush1.msra.mxu0 0.0
    %5313 = vmatprep.subr.mxu0 0.0
    %5314 = vmatpush1.msra.mxu0 0.0
    %5315 = vmatprep.subr.mxu0 0.0
    %5316 = vmatpush1.msra.mxu0 0.0
    %5317 = vmatprep.subr.mxu0 0.0
    %5318 = vmatpush1.msra.mxu0 0.0
    %5319 = vmatprep.mubr.f32.mxu0 0.0
    %5320 = vmatmul.mubr.f32.gmra.mrb[0].mxu0 %v5253
    %v5321 = vpop.f32.mrb[0].mxu0
    %v5322 = vadd.f32 %v5250, %v5321
    %v5323 = vpop.f32.mrb[0].mxu0
    %5324 = vdwg.mxu0
    %v5325 = vmax.f32 %v5322, 0.0
    %v5326 = vld [vmem:[%s20] sm:$0xff]
    %v5327 = vld [vmem:[%s20 + $0x8] sm:$0xff]
    %v5328 = vld [vmem:[#allocation2] sm:$0x1]
    %v5330 = vlaneseq
    %v5331 = vshrl.u32 %v5330, 7
    %v5332 = vsub.s32 0, %v5331
    %v5333 = vrot.slane %v5328, %v5332
    %v5336 = vsel %vm1575, %v5325, 0
    %5338 = vmatprep.subr.mxu0 0.0
    %5339 = vmatpush1.msra.mxu0 %v5326
    %5340 = vmatprep.subr.mxu0 0.0
    %5341 = vmatpush1.msra.mxu0 %v5327
    %5342 = vmatprep.subr.mxu0 0.0
    %5343 = vmatpush1.msra.mxu0 0.0
    %5344 = vmatprep.subr.mxu0 0.0
    %5345 = vmatpush1.msra.mxu0 0.0
    %5346 = vmatprep.subr.mxu0 0.0
    %5347 = vmatpush1.msra.mxu0 0.0
    %5348 = vmatprep.subr.mxu0 0.0
    %5349 = vmatpush1.msra.mxu0 0.0
    %5350 = vmatprep.subr.mxu0 0.0
    %5351 = vmatpush1.msra.mxu0 0.0
    %5352 = vmatprep.subr.mxu0 0.0
    %5353 = vmatpush1.msra.mxu0 0.0
    %5354 = vmatprep.subr.mxu0 0.0
    %5355 = vmatpush1.msra.mxu0 0.0
    %5356 = vmatprep.subr.mxu0 0.0
    %5357 = vmatpush1.msra.mxu0 0.0
    %5358 = vmatprep.subr.mxu0 0.0
    %5359 = vmatpush1.msra.mxu0 0.0
    %5360 = vmatprep.subr.mxu0 0.0
    %5361 = vmatpush1.msra.mxu0 0.0
    %5362 = vmatprep.subr.mxu0 0.0
    %5363 = vmatpush1.msra.mxu0 0.0
    %5364 = vmatprep.subr.mxu0 0.0
    %5365 = vmatpush1.msra.mxu0 0.0
    %5366 = vmatprep.subr.mxu0 0.0
    %5367 = vmatpush1.msra.mxu0 0.0
    %5368 = vmatprep.subr.mxu0 0.0
    %5369 = vmatpush1.msra.mxu0 0.0
    %5370 = vmatprep.subr.mxu0 0.0
    %5371 = vmatpush1.msra.mxu0 0.0
    %5372 = vmatprep.subr.mxu0 0.0
    %5373 = vmatpush1.msra.mxu0 0.0
    %5374 = vmatprep.subr.mxu0 0.0
    %5375 = vmatpush1.msra.mxu0 0.0
    %5376 = vmatprep.subr.mxu0 0.0
    %5377 = vmatpush1.msra.mxu0 0.0
    %5378 = vmatprep.subr.mxu0 0.0
    %5379 = vmatpush1.msra.mxu0 0.0
    %5380 = vmatprep.subr.mxu0 0.0
    %5381 = vmatpush1.msra.mxu0 0.0
    %5382 = vmatprep.subr.mxu0 0.0
    %5383 = vmatpush1.msra.mxu0 0.0
    %5384 = vmatprep.subr.mxu0 0.0
    %5385 = vmatpush1.msra.mxu0 0.0
    %5386 = vmatprep.subr.mxu0 0.0
    %5387 = vmatpush1.msra.mxu0 0.0
    %5388 = vmatprep.subr.mxu0 0.0
    %5389 = vmatpush1.msra.mxu0 0.0
    %5390 = vmatprep.subr.mxu0 0.0
    %5391 = vmatpush1.msra.mxu0 0.0
    %5392 = vmatprep.subr.mxu0 0.0
    %5393 = vmatpush1.msra.mxu0 0.0
    %5394 = vmatprep.subr.mxu0 0.0
    %5395 = vmatpush1.msra.mxu0 0.0
    %5396 = vmatprep.subr.mxu0 0.0
    %5397 = vmatpush1.msra.mxu0 0.0
    %5398 = vmatprep.subr.mxu0 0.0
    %5399 = vmatpush1.msra.mxu0 0.0
    %5400 = vmatprep.subr.mxu0 0.0
    %5401 = vmatpush1.msra.mxu0 0.0
    %5402 = vmatprep.mubr.f32.mxu0 0.0
    %5403 = vmatmul.mubr.f32.gmra.mrb[0].mxu0 %v5336
    %v5404 = vpop.f32.mrb[0].mxu0
    %v5405 = vadd.f32 %v5333, %v5404
    %v5406 = vpop.f32.mrb[0].mxu0
    %5407 = vdwg.mxu0
    %vm5408 = vcmask 1024
    %5409 = vst.msk [vmem:[%s22] sm:$0x3] %vm5408, %v5405
    // Predicated region
    $region106: #{graph_transformer_regression_forward.1} parent=1 // pred_check
      _
    $region107: #{graph_transformer_regression_forward.1} parent=1 // pred_check_branch
      %5411 = sbr.rel (0) target = $region109
    $region108: #{graph_transformer_regression_forward.1} parent=1 // pred_region
      _
    $region109: #{graph_transformer_regression_forward.1} parent=1 // pred_fallthru
      _
    // Predicated region
    $region110: #{graph_transformer_regression_forward.1} parent=1 // pred_check
      _
    $region111: #{graph_transformer_regression_forward.1} parent=1 // pred_check_branch
      %5413 = sbr.rel (0) target = $region113
    $region112: #{graph_transformer_regression_forward.1} parent=1 // pred_region
      _
    $region113: #{graph_transformer_regression_forward.1} parent=1 // pred_fallthru
      _
    %5414 = vsyncpa [#allocation4], 1
    %5415 = vsyncpa [#allocation6], 1
    %5416 = vsyncpa [#allocation9], 1

</llo_original>
